<compile_context>
chip_gen: v5e
topology: v5e:2x2
jax: 0.10.0
libtpu: 0.0.40
codegen_flags: <defaults>
</compile_context>

<pallas_src>
import functools

import jax
import jax.numpy as jnp
from jax.experimental import pallas as pl
from jax.experimental.pallas import tpu as pltpu


def _round_up(x, m):
    return ((x + m - 1) // m) * m


# ----------------------------------------------------------------------------
# Pallas kernel: tiled (X @ W) + bias [+ ReLU]   (BN scale pre-folded into W)
# ----------------------------------------------------------------------------
def _matmul_bias_kernel(x_ref, w_ref, b_ref, o_ref, acc_ref, *, relu):
    @pl.when(pl.program_id(2) == 0)
    def _():
        acc_ref[...] = jnp.zeros_like(acc_ref)

    acc_ref[...] += jnp.dot(x_ref[...], w_ref[...],
                            preferred_element_type=jnp.float32)

    @pl.when(pl.program_id(2) == pl.num_programs(2) - 1)
    def _():
        y = acc_ref[...] + b_ref[...]          # f32 epilogue
        if relu:
            y = jnp.maximum(y, 0.0)
        o_ref[...] = y.astype(o_ref.dtype)


def _pick_tk(K, tm, tn, out_bytes, budget_bytes=20 * 1024 * 1024):
    """Largest 128-aligned tk (preferring full K -> single reduction step)
    whose double-buffered bf16 tiles + f32 accumulator fit the VMEM budget."""
    tk = _round_up(K, 128)

    def working_set(t):
        return (2 * (tm * t + t * tn) * 2      # bf16 x/w tiles, double-buffered
                + tm * tn * 4                  # f32 accumulator scratch
                + 2 * tm * tn * out_bytes)     # output tiles, double-buffered

    while tk > 128 and working_set(tk) > budget_bytes:
        tk = _round_up(tk // 2, 128)
    return tk


def fused_matmul_bias(x, w, bias, *, relu, out_dtype):
    """x: (M, K), w: (K, N) f32 (BN scale already folded), bias: (N,) f32.

    bf16 MXU operands, f32 accumulation, + bias (+ ReLU) epilogue, out_dtype
    output.  Single-K-step grid whenever the tiles fit VMEM.
    """
    M, K = x.shape
    K2, N = w.shape
    assert K == K2, (K, K2)
    out_bytes = jnp.dtype(out_dtype).itemsize

    # M tiling: expose >=2 M tiles when M is big enough so the parallel i-axis
    # can shard across the two v7x TensorCores.
    if M >= 32:
        tm = min(256, _round_up(-(-M // 2), 16))
    else:
        tm = _round_up(max(M, 1), 16)
    Mp = _round_up(M, tm)

    # N tiling: lane-dense 128-aligned tiles for N >= 128; for small N keep the
    # full (unpadded) dim as the block (legal: block dim == full array dim) —
    # halves the conv2 weight stream and avoids the Linear's padding DMA.
    if N >= 128:
        tn = min(256, _round_up(N, 128))
        Np = _round_up(N, tn)
    else:
        tn = N
        Np = N

    # K tiling: full 128-rounded K in one step whenever it fits the budget.
    tk = _pick_tk(K, tm, tn, out_bytes)
    Kp = _round_up(K, tk)
    n_k = Kp // tk

    xp = jnp.pad(x.astype(jnp.bfloat16), ((0, Mp - M), (0, Kp - K)))
    wp = jnp.pad(w.astype(jnp.bfloat16), ((0, Kp - K), (0, Np - N)))
    bp = jnp.pad(bias.astype(jnp.float32), (0, Np - N)).reshape(1, Np)

    w_spec = pl.BlockSpec((tk, tn), lambda i, j, k: (k, j))
    if n_k > 1:
        # Only relevant if the K reduction is split; deepen the weight pipeline.
        w_spec = pl.BlockSpec((tk, tn), lambda i, j, k: (k, j),
                              pipeline_mode=pl.Buffered(3))

    grid = (Mp // tm, Np // tn, n_k)
    out = pl.pallas_call(
        functools.partial(_matmul_bias_kernel, relu=relu),
        out_shape=jax.ShapeDtypeStruct((Mp, Np), out_dtype),
        grid_spec=pltpu.PrefetchScalarGridSpec(
            num_scalar_prefetch=0,
            grid=grid,
            in_specs=[
                pl.BlockSpec((tm, tk), lambda i, j, k: (i, k)),
                w_spec,
                pl.BlockSpec((1, tn), lambda i, j, k: (0, j)),
            ],
            out_specs=pl.BlockSpec((tm, tn), lambda i, j, k: (i, j)),
            scratch_shapes=[pltpu.VMEM((tm, tn), jnp.float32)],
        ),
        compiler_params=pltpu.CompilerParams(
            dimension_semantics=("parallel", "parallel", "arbitrary"),
            # Budget, not a tuning constant: safe on v7x (64 MiB physical),
            # generous vs. the tiny (<4 MiB) working sets at these shapes.
            vmem_limit_bytes=48 * 1024 * 1024,
        ),
    )(xp, wp, bp)
    return out[:M, :N]


# ----------------------------------------------------------------------------
# Glue: im2col (valid padding, stride 1) and BN folding (eval mode)
# ----------------------------------------------------------------------------
def im2col(x_nhwc, kh, kw):
    # TODO(synk): fuse this into the kernel (tap-offset reduction axes) to
    # avoid materializing the kh*kw patch tensor in HBM.
    B, H, W, C = x_nhwc.shape
    Ho, Wo = H - kh + 1, W - kw + 1
    cols = [
        x_nhwc[:, dy:dy + Ho, dx:dx + Wo, :]
        for dy in range(kh)
        for dx in range(kw)
    ]
    patches = jnp.concatenate(cols, axis=-1)          # (B, Ho, Wo, kh*kw*C)
    return patches.reshape(B * Ho * Wo, kh * kw * C), (B, Ho, Wo)


def fold_bn(conv_bias, gamma, beta, running_mean, running_var, eps=1e-5):
    scale = gamma / jnp.sqrt(running_var + eps)       # folded into the weights
    shift = beta + (conv_bias - running_mean) * scale  # kernel-epilogue bias
    return scale, shift


# ----------------------------------------------------------------------------
# FeatureRegression forward
# ----------------------------------------------------------------------------
def feature_regression_forward(x_nchw, params):
    # conv1: 7x7 valid, Cin -> 128, fused with BN1 + ReLU.  bf16 output.
    x = jnp.transpose(x_nchw, (0, 2, 3, 1)).astype(jnp.bfloat16)  # NCHW -> NHWC
    p1, (B, H1, W1) = im2col(x, 7, 7)
    s1, b1 = fold_bn(params["conv1_b"], params["bn1_gamma"], params["bn1_beta"],
                     params["bn1_mean"], params["bn1_var"])
    # Fold BN scale into the weights in f32 (before the bf16 cast in the wrapper).
    w1 = (jnp.transpose(params["conv1_w"], (2, 3, 1, 0)).reshape(-1, 128)
          * s1[None, :])
    y1 = fused_matmul_bias(p1, w1, b1, relu=True,
                           out_dtype=jnp.bfloat16).reshape(B, H1, W1, 128)

    # conv2: 5x5 valid, 128 -> 64, fused with BN2 + ReLU.  bf16 output.
    p2, (B, H2, W2) = im2col(y1, 5, 5)
    s2, b2 = fold_bn(params["conv2_b"], params["bn2_gamma"], params["bn2_beta"],
                     params["bn2_mean"], params["bn2_var"])
    w2 = (jnp.transpose(params["conv2_w"], (2, 3, 1, 0)).reshape(-1, 64)
          * s2[None, :])
    y2 = fused_matmul_bias(p2, w2, b2, relu=True,
                           out_dtype=jnp.bfloat16).reshape(B, H2, W2, 64)

    # Linear: reproduce PyTorch's NCHW .view(B,-1) by permuting lin_w rows
    # (weight side, off the hot path) so the NHWC-flattened features are used
    # directly.  Unpadded N=out_dim block, single (1,1,1)-grid step, f32 out.
    feat = y2.reshape(B, H2 * W2 * 64)                            # NHWC flatten
    out_dim = params["lin_w"].shape[0]
    wl = (params["lin_w"].reshape(out_dim, 64, H2, W2)
          .transpose(0, 2, 3, 1).reshape(out_dim, -1).T)          # (H2*W2*64, out)
    out = fused_matmul_bias(feat, wl, params["lin_b"], relu=False,
                            out_dtype=jnp.float32)
    return out


# ----------------------------------------------------------------------------
# Deterministic parameter init + demo
# ----------------------------------------------------------------------------
def init_params(key, input_dim, output_dim):
    ks = jax.random.split(key, 8)
    p = {}
    p["conv1_w"] = 0.05 * jax.random.normal(ks[0], (128, input_dim, 7, 7), jnp.float32)
    p["conv1_b"] = 0.01 * jax.random.normal(ks[1], (128,), jnp.float32)
    p["bn1_gamma"] = 1.0 + 0.1 * jax.random.normal(ks[2], (128,), jnp.float32)
    p["bn1_beta"] = 0.05 * jax.random.normal(ks[3], (128,), jnp.float32)
    p["bn1_mean"] = jnp.zeros((128,), jnp.float32)
    p["bn1_var"] = jnp.ones((128,), jnp.float32)

    p["conv2_w"] = 0.05 * jax.random.normal(ks[4], (64, 128, 5, 5), jnp.float32)
    p["conv2_b"] = 0.01 * jax.random.normal(ks[5], (64,), jnp.float32)
    p["bn2_gamma"] = jnp.ones((64,), jnp.float32)
    p["bn2_beta"] = jnp.zeros((64,), jnp.float32)
    p["bn2_mean"] = jnp.zeros((64,), jnp.float32)
    p["bn2_var"] = jnp.ones((64,), jnp.float32)

    p["lin_w"] = 0.02 * jax.random.normal(ks[6], (output_dim, 64 * 5 * 5), jnp.float32)
    p["lin_b"] = 0.01 * jax.random.normal(ks[7], (output_dim,), jnp.float32)
    return p


if __name__ == "__main__":
    # Spatial must be 15x15 so that 15 -(7x7)-> 9 -(5x5)-> 5 and the Linear
    # sees 64*5*5 features.  input_dim shrunk 225 -> 32 for a small demo.
    B, C_IN, HW, OUT = 2, 32, 15, 6

    key = jax.random.PRNGKey(0)
    k_x, k_p = jax.random.split(key)
    x = jax.random.normal(k_x, (B, C_IN, HW, HW), jnp.float32)   # NCHW, like PyTorch
    params = init_params(k_p, C_IN, OUT)

    fwd = jax.jit(feature_regression_forward)
    out = jax.block_until_ready(fwd(x, params))
    assert out.shape == (B, OUT), out.shape
    assert bool(jnp.all(jnp.isfinite(out)))
    print("KERNEL_OK")
</pallas_src>

<mosaic_0001>
module attributes {stable_mosaic.version = 11 : i64} {
  func.func @_matmul_bias_kernel(%arg0: i32, %arg1: i32, %arg2: i32, %arg3: memref<96x1664xbf16, #tpu.memory_space<vmem>>, %arg4: memref<1664x128xbf16, #tpu.memory_space<vmem>>, %arg5: memref<1x128xf32, #tpu.memory_space<vmem>>, %arg6: memref<96x128xbf16, #tpu.memory_space<vmem>>, %arg7: memref<96x128xf32, #tpu.memory_space<vmem>>) attributes {dimension_semantics = [#tpu.dimension_semantics<parallel>, #tpu.dimension_semantics<parallel>, #tpu.dimension_semantics<arbitrary>], iteration_bounds = array<i64: 2, 1, 1>, scalar_prefetch = 0 : i64, scratch_operands = 1 : i64, tpu.core_type = #tpu.core_type<tc>, window_params = [{transform_indices = @transform_0, window_bounds = array<i64: 96, 1664>}, {transform_indices = @transform_1, window_bounds = array<i64: 1664, 128>}, {transform_indices = @transform_2, window_bounds = array<i64: 1, 128>}, {transform_indices = @transform_3, window_bounds = array<i64: 96, 128>}]} {
    %c0_i32 = arith.constant 0 : i32
    %0 = arith.cmpi eq, %arg2, %c0_i32 : i32
    %1 = arith.extui %0 : i1 to i32
    %c0_i32_0 = arith.constant 0 : i32
    %2 = arith.cmpi ne, %1, %c0_i32_0 : i32
    scf.if %2 {
      %cst_10 = arith.constant 0.000000e+00 : f32
      %12 = vector.broadcast %cst_10 : f32 to vector<96x128xf32>
      %c0_11 = arith.constant 0 : index
      %c0_12 = arith.constant 0 : index
      %13 = vector.load %arg7[%c0_11, %c0_12] : memref<96x128xf32, #tpu.memory_space<vmem>>, vector<96x128xf32>
      tpu.vector_store %arg7[%c0_11, %c0_12], %12 {strides = array<i32>} : memref<96x128xf32, #tpu.memory_space<vmem>>, vector<96x128xf32>,
    } else {
    }
    %c0 = arith.constant 0 : index
    %c0_1 = arith.constant 0 : index
    %3 = vector.load %arg7[%c0, %c0_1] : memref<96x128xf32, #tpu.memory_space<vmem>>, vector<96x128xf32>
    %c0_2 = arith.constant 0 : index
    %c0_3 = arith.constant 0 : index
    %4 = vector.load %arg3[%c0_2, %c0_3] : memref<96x1664xbf16, #tpu.memory_space<vmem>>, vector<96x1664xbf16>
    %c0_4 = arith.constant 0 : index
    %c0_5 = arith.constant 0 : index
    %5 = vector.load %arg4[%c0_4, %c0_5] : memref<1664x128xbf16, #tpu.memory_space<vmem>>, vector<1664x128xbf16>
    %cst = arith.constant dense<0.000000e+00> : vector<96x128xf32>
    %6 = tpu.matmul %4, %5, %cst {dimension_numbers = #tpu.dot_dimension_numbers<[1], [0], [0], [1], [0, 0, 1, 1], [], []>} : vector<96x1664xbf16>, vector<1664x128xbf16>, vector<96x128xf32> -> vector<96x128xf32>
    %7 = arith.addf %3, %6 : vector<96x128xf32>
    %c0_6 = arith.constant 0 : index
    %c0_7 = arith.constant 0 : index
    %8 = vector.load %arg7[%c0_6, %c0_7] : memref<96x128xf32, #tpu.memory_space<vmem>>, vector<96x128xf32>
    tpu.vector_store %arg7[%c0_6, %c0_7], %7 {strides = array<i32>} : memref<96x128xf32, #tpu.memory_space<vmem>>, vector<96x128xf32>,
    %c0_i32_8 = arith.constant 0 : i32
    %9 = arith.cmpi eq, %arg2, %c0_i32_8 : i32
    %10 = arith.extui %9 : i1 to i32
    %c0_i32_9 = arith.constant 0 : i32
    %11 = arith.cmpi ne, %10, %c0_i32_9 : i32
    scf.if %11 {
      %c0_10 = arith.constant 0 : index
      %c0_11 = arith.constant 0 : index
      %12 = vector.load %arg7[%c0_10, %c0_11] : memref<96x128xf32, #tpu.memory_space<vmem>>, vector<96x128xf32>
      %c0_12 = arith.constant 0 : index
      %c0_13 = arith.constant 0 : index
      %13 = vector.load %arg5[%c0_12, %c0_13] : memref<1x128xf32, #tpu.memory_space<vmem>>, vector<1x128xf32>
      %14 = vector.broadcast %13 : vector<1x128xf32> to vector<96x128xf32>
      %15 = arith.addf %12, %14 : vector<96x128xf32>
      %cst_14 = arith.constant 0.000000e+00 : f32
      %16 = vector.broadcast %cst_14 : f32 to vector<96x128xf32>
      %17 = arith.maximumf %15, %16 : vector<96x128xf32>
      %18 = arith.truncf %17 : vector<96x128xf32> to vector<96x128xbf16>
      %c0_15 = arith.constant 0 : index
      %c0_16 = arith.constant 0 : index
      %19 = vector.load %arg6[%c0_15, %c0_16] : memref<96x128xbf16, #tpu.memory_space<vmem>>, vector<96x128xbf16>
      tpu.vector_store %arg6[%c0_15, %c0_16], %18 {strides = array<i32>} : memref<96x128xbf16, #tpu.memory_space<vmem>>, vector<96x128xbf16>,
    } else {
    }
    return
  }
  func.func @transform_0(%arg0: i32, %arg1: i32, %arg2: i32) -> (i32, i32) {
    %c0_i32 = arith.constant 0 : i32
    return %arg0, %arg2 : i32, i32
  }
  func.func @transform_1(%arg0: i32, %arg1: i32, %arg2: i32) -> (i32, i32) {
    %c0_i32 = arith.constant 0 : i32
    return %arg2, %arg1 : i32, i32
  }
  func.func @transform_2(%arg0: i32, %arg1: i32, %arg2: i32) -> (i32, i32) {
    %c0_i32 = arith.constant 0 : i32
    %c0_i32_0 = arith.constant 0 : i32
    return %c0_i32, %arg1 : i32, i32
  }
  func.func @transform_3(%arg0: i32, %arg1: i32, %arg2: i32) -> (i32, i32) {
    %c0_i32 = arith.constant 0 : i32
    return %arg0, %arg1 : i32, i32
  }
}

module attributes {stable_mosaic.version = 11 : i64} {
  func.func @_matmul_bias_kernel(%arg0: i32, %arg1: i32, %arg2: i32, %arg3: memref<32x3200xbf16, #tpu.memory_space<vmem>>, %arg4: memref<3200x64xbf16, #tpu.memory_space<vmem>>, %arg5: memref<1x64xf32, #tpu.memory_space<vmem>>, %arg6: memref<32x64xbf16, #tpu.memory_space<vmem>>, %arg7: memref<32x64xf32, #tpu.memory_space<vmem>>) attributes {dimension_semantics = [#tpu.dimension_semantics<parallel>, #tpu.dimension_semantics<parallel>, #tpu.dimension_semantics<arbitrary>], iteration_bounds = array<i64: 2, 1, 1>, scalar_prefetch = 0 : i64, scratch_operands = 1 : i64, tpu.core_type = #tpu.core_type<tc>, window_params = [{transform_indices = @transform_0, window_bounds = array<i64: 32, 3200>}, {transform_indices = @transform_1, window_bounds = array<i64: 3200, 64>}, {transform_indices = @transform_2, window_bounds = array<i64: 1, 64>}, {transform_indices = @transform_3, window_bounds = array<i64: 32, 64>}]} {
    %c0_i32 = arith.constant 0 : i32
    %0 = arith.cmpi eq, %arg2, %c0_i32 : i32
    %1 = arith.extui %0 : i1 to i32
    %c0_i32_0 = arith.constant 0 : i32
    %2 = arith.cmpi ne, %1, %c0_i32_0 : i32
    scf.if %2 {
      %cst_10 = arith.constant 0.000000e+00 : f32
      %12 = vector.broadcast %cst_10 : f32 to vector<32x64xf32>
      %c0_11 = arith.constant 0 : index
      %c0_12 = arith.constant 0 : index
      %13 = vector.load %arg7[%c0_11, %c0_12] : memref<32x64xf32, #tpu.memory_space<vmem>>, vector<32x64xf32>
      tpu.vector_store %arg7[%c0_11, %c0_12], %12 {strides = array<i32>} : memref<32x64xf32, #tpu.memory_space<vmem>>, vector<32x64xf32>,
    } else {
    }
    %c0 = arith.constant 0 : index
    %c0_1 = arith.constant 0 : index
    %3 = vector.load %arg7[%c0, %c0_1] : memref<32x64xf32, #tpu.memory_space<vmem>>, vector<32x64xf32>
    %c0_2 = arith.constant 0 : index
    %c0_3 = arith.constant 0 : index
    %4 = vector.load %arg3[%c0_2, %c0_3] : memref<32x3200xbf16, #tpu.memory_space<vmem>>, vector<32x3200xbf16>
    %c0_4 = arith.constant 0 : index
    %c0_5 = arith.constant 0 : index
    %5 = vector.load %arg4[%c0_4, %c0_5] : memref<3200x64xbf16, #tpu.memory_space<vmem>>, vector<3200x64xbf16>
    %cst = arith.constant dense<0.000000e+00> : vector<32x64xf32>
    %6 = tpu.matmul %4, %5, %cst {dimension_numbers = #tpu.dot_dimension_numbers<[1], [0], [0], [1], [0, 0, 1, 1], [], []>} : vector<32x3200xbf16>, vector<3200x64xbf16>, vector<32x64xf32> -> vector<32x64xf32>
    %7 = arith.addf %3, %6 : vector<32x64xf32>
    %c0_6 = arith.constant 0 : index
    %c0_7 = arith.constant 0 : index
    %8 = vector.load %arg7[%c0_6, %c0_7] : memref<32x64xf32, #tpu.memory_space<vmem>>, vector<32x64xf32>
    tpu.vector_store %arg7[%c0_6, %c0_7], %7 {strides = array<i32>} : memref<32x64xf32, #tpu.memory_space<vmem>>, vector<32x64xf32>,
    %c0_i32_8 = arith.constant 0 : i32
    %9 = arith.cmpi eq, %arg2, %c0_i32_8 : i32
    %10 = arith.extui %9 : i1 to i32
    %c0_i32_9 = arith.constant 0 : i32
    %11 = arith.cmpi ne, %10, %c0_i32_9 : i32
    scf.if %11 {
      %c0_10 = arith.constant 0 : index
      %c0_11 = arith.constant 0 : index
      %12 = vector.load %arg7[%c0_10, %c0_11] : memref<32x64xf32, #tpu.memory_space<vmem>>, vector<32x64xf32>
      %c0_12 = arith.constant 0 : index
      %c0_13 = arith.constant 0 : index
      %13 = vector.load %arg5[%c0_12, %c0_13] : memref<1x64xf32, #tpu.memory_space<vmem>>, vector<1x64xf32>
      %14 = vector.broadcast %13 : vector<1x64xf32> to vector<32x64xf32>
      %15 = arith.addf %12, %14 : vector<32x64xf32>
      %cst_14 = arith.constant 0.000000e+00 : f32
      %16 = vector.broadcast %cst_14 : f32 to vector<32x64xf32>
      %17 = arith.maximumf %15, %16 : vector<32x64xf32>
      %18 = arith.truncf %17 : vector<32x64xf32> to vector<32x64xbf16>
      %c0_15 = arith.constant 0 : index
      %c0_16 = arith.constant 0 : index
      %19 = vector.load %arg6[%c0_15, %c0_16] : memref<32x64xbf16, #tpu.memory_space<vmem>>, vector<32x64xbf16>
      tpu.vector_store %arg6[%c0_15, %c0_16], %18 {strides = array<i32>} : memref<32x64xbf16, #tpu.memory_space<vmem>>, vector<32x64xbf16>,
    } else {
    }
    return
  }
  func.func @transform_0(%arg0: i32, %arg1: i32, %arg2: i32) -> (i32, i32) {
    %c0_i32 = arith.constant 0 : i32
    return %arg0, %arg2 : i32, i32
  }
  func.func @transform_1(%arg0: i32, %arg1: i32, %arg2: i32) -> (i32, i32) {
    %c0_i32 = arith.constant 0 : i32
    return %arg2, %arg1 : i32, i32
  }
  func.func @transform_2(%arg0: i32, %arg1: i32, %arg2: i32) -> (i32, i32) {
    %c0_i32 = arith.constant 0 : i32
    %c0_i32_0 = arith.constant 0 : i32
    return %c0_i32, %arg1 : i32, i32
  }
  func.func @transform_3(%arg0: i32, %arg1: i32, %arg2: i32) -> (i32, i32) {
    %c0_i32 = arith.constant 0 : i32
    return %arg0, %arg1 : i32, i32
  }
}

module attributes {stable_mosaic.version = 11 : i64} {
  func.func @_matmul_bias_kernel(%arg0: i32, %arg1: i32, %arg2: i32, %arg3: memref<16x1664xbf16, #tpu.memory_space<vmem>>, %arg4: memref<1664x6xbf16, #tpu.memory_space<vmem>>, %arg5: memref<1x6xf32, #tpu.memory_space<vmem>>, %arg6: memref<16x6xf32, #tpu.memory_space<vmem>>, %arg7: memref<16x6xf32, #tpu.memory_space<vmem>>) attributes {dimension_semantics = [#tpu.dimension_semantics<parallel>, #tpu.dimension_semantics<parallel>, #tpu.dimension_semantics<arbitrary>], iteration_bounds = array<i64: 1, 1, 1>, scalar_prefetch = 0 : i64, scratch_operands = 1 : i64, tpu.core_type = #tpu.core_type<tc>, window_params = [{transform_indices = @transform_0, window_bounds = array<i64: 16, 1664>}, {transform_indices = @transform_1, window_bounds = array<i64: 1664, 6>}, {transform_indices = @transform_2, window_bounds = array<i64: 1, 6>}, {transform_indices = @transform_3, window_bounds = array<i64: 16, 6>}]} {
    %c0_i32 = arith.constant 0 : i32
    %0 = arith.cmpi eq, %arg2, %c0_i32 : i32
    %1 = arith.extui %0 : i1 to i32
    %c0_i32_0 = arith.constant 0 : i32
    %2 = arith.cmpi ne, %1, %c0_i32_0 : i32
    scf.if %2 {
      %cst_10 = arith.constant 0.000000e+00 : f32
      %12 = vector.broadcast %cst_10 : f32 to vector<16x6xf32>
      %c0_11 = arith.constant 0 : index
      %c0_12 = arith.constant 0 : index
      %13 = vector.load %arg7[%c0_11, %c0_12] : memref<16x6xf32, #tpu.memory_space<vmem>>, vector<16x6xf32>
      tpu.vector_store %arg7[%c0_11, %c0_12], %12 {strides = array<i32>} : memref<16x6xf32, #tpu.memory_space<vmem>>, vector<16x6xf32>,
    } else {
    }
    %c0 = arith.constant 0 : index
    %c0_1 = arith.constant 0 : index
    %3 = vector.load %arg7[%c0, %c0_1] : memref<16x6xf32, #tpu.memory_space<vmem>>, vector<16x6xf32>
    %c0_2 = arith.constant 0 : index
    %c0_3 = arith.constant 0 : index
    %4 = vector.load %arg3[%c0_2, %c0_3] : memref<16x1664xbf16, #tpu.memory_space<vmem>>, vector<16x1664xbf16>
    %c0_4 = arith.constant 0 : index
    %c0_5 = arith.constant 0 : index
    %5 = vector.load %arg4[%c0_4, %c0_5] : memref<1664x6xbf16, #tpu.memory_space<vmem>>, vector<1664x6xbf16>
    %cst = arith.constant dense<0.000000e+00> : vector<16x6xf32>
    %6 = tpu.matmul %4, %5, %cst {dimension_numbers = #tpu.dot_dimension_numbers<[1], [0], [0], [1], [0, 0, 1, 1], [], []>} : vector<16x1664xbf16>, vector<1664x6xbf16>, vector<16x6xf32> -> vector<16x6xf32>
    %7 = arith.addf %3, %6 : vector<16x6xf32>
    %c0_6 = arith.constant 0 : index
    %c0_7 = arith.constant 0 : index
    %8 = vector.load %arg7[%c0_6, %c0_7] : memref<16x6xf32, #tpu.memory_space<vmem>>, vector<16x6xf32>
    tpu.vector_store %arg7[%c0_6, %c0_7], %7 {strides = array<i32>} : memref<16x6xf32, #tpu.memory_space<vmem>>, vector<16x6xf32>,
    %c0_i32_8 = arith.constant 0 : i32
    %9 = arith.cmpi eq, %arg2, %c0_i32_8 : i32
    %10 = arith.extui %9 : i1 to i32
    %c0_i32_9 = arith.constant 0 : i32
    %11 = arith.cmpi ne, %10, %c0_i32_9 : i32
    scf.if %11 {
      %c0_10 = arith.constant 0 : index
      %c0_11 = arith.constant 0 : index
      %12 = vector.load %arg7[%c0_10, %c0_11] : memref<16x6xf32, #tpu.memory_space<vmem>>, vector<16x6xf32>
      %c0_12 = arith.constant 0 : index
      %c0_13 = arith.constant 0 : index
      %13 = vector.load %arg5[%c0_12, %c0_13] : memref<1x6xf32, #tpu.memory_space<vmem>>, vector<1x6xf32>
      %14 = vector.broadcast %13 : vector<1x6xf32> to vector<16x6xf32>
      %15 = arith.addf %12, %14 : vector<16x6xf32>
      %c0_14 = arith.constant 0 : index
      %c0_15 = arith.constant 0 : index
      %16 = vector.load %arg6[%c0_14, %c0_15] : memref<16x6xf32, #tpu.memory_space<vmem>>, vector<16x6xf32>
      tpu.vector_store %arg6[%c0_14, %c0_15], %15 {strides = array<i32>} : memref<16x6xf32, #tpu.memory_space<vmem>>, vector<16x6xf32>,
    } else {
    }
    return
  }
  func.func @transform_0(%arg0: i32, %arg1: i32, %arg2: i32) -> (i32, i32) {
    %c0_i32 = arith.constant 0 : i32
    return %arg0, %arg2 : i32, i32
  }
  func.func @transform_1(%arg0: i32, %arg1: i32, %arg2: i32) -> (i32, i32) {
    %c0_i32 = arith.constant 0 : i32
    return %arg2, %arg1 : i32, i32
  }
  func.func @transform_2(%arg0: i32, %arg1: i32, %arg2: i32) -> (i32, i32) {
    %c0_i32 = arith.constant 0 : i32
    %c0_i32_0 = arith.constant 0 : i32
    return %c0_i32, %arg1 : i32, i32
  }
  func.func @transform_3(%arg0: i32, %arg1: i32, %arg2: i32) -> (i32, i32) {
    %c0_i32 = arith.constant 0 : i32
    return %arg0, %arg1 : i32, i32
  }
}

</mosaic_0001>

<llo_original>
// kernel: feature_regression_forward.3
$region0: #{feature_regression_forward.3}
  #allocation0 [shape = 'u32[]', space=smem, size = 0x4, offset = 0x4, fixed_abs, tag = 'smem constant byte address 0x4 - core index']
  #allocation1 [shape = 'u32[72,128]{1,0:T(1,128)}', space=vmem, size = 0x9000, scoped, tag = 'internal scratch']
  #allocation2 [shape = 'f32[96,128]{1,0:T(8,128)}', space=vmem, size = 0xc000, scoped, tag = 'scratch operand']
  %s0 = inlined_call_operand.vmem [shape: bf16[192,1664], index: 0, kind: input, shape index: {}]
  %s1 = inlined_call_operand.vmem [shape: bf16[1664,128], index: 1, kind: input, shape index: {}]
  %s2 = inlined_call_operand.vmem [shape: f32[1,128], index: 2, kind: input, shape index: {}]
  %s3 = inlined_call_operand.vmem [shape: bf16[192,128], index: 3, kind: output, shape index: {}]
  %s4 = sld [smem:[#allocation0]]
  $region53: #{feature_regression_forward.3} parent=0
    _
  %s6 = ssub.s32 1, %s4
  %s7 = scalar_select 0, %s6, %s4
  loop: start=0, step=1, limit=4
  $region2: #{feature_regression_forward.3} parent=0 // loop_pre_header
    _
  $region3: #{feature_regression_forward.3} parent=0 // loop_header
    %s9 = sphi 0, %s13
    %p10 = scmp.ge.s32.totalorder %s9, 4
    %s16 = sphi 0, %s35
    %s17 = sphi 0, %s31
    %s18 = sphi 0, %s27
    %s19 = sphi 0, %s16
    %s20 = sphi 0, %s17
    %s21 = sphi 0, %s18
    %s22 = sphi 0, %s19
    %s23 = sphi 0, %s20
    %s24 = sphi 0, %s21
    %s40 = sphi 0, %s42
    %s43 = sphi 0, %s40
    %s44 = sphi 0, %s43
    %s60 = sphi 0, %s44
    %s68 = sphi 0, %s70
    %s71 = sphi 0, %s68
    %s72 = sphi 0, %s71
    %s88 = sphi 0, %s72
    %s94 = sphi 0, %s96
    %s97 = sphi 0, %s94
    %s98 = sphi 0, %s97
    %s114 = sphi 0, %s98
    %s122 = sphi 0, %s124
    %s125 = sphi 0, %s122
    %s126 = sphi 0, %s125
    %s142 = sphi 0, %s126
  $region4: #{feature_regression_forward.3} parent=0 // loop_header_branch
    %12 = sbr.rel (%p10) target = $region8
  $region5: #{feature_regression_forward.3} parent=0 // loop_body
    %s14 = ssub.s32 %s9, 1
    %s15 = ssub.s32 %s9, 2
    %s25 = sadd.s32 1, %s18
    %p26 = scmp.ge.s32.totalorder %s25, 1
    %s27 = scalar_select %p26, 0, %s25
    %s28 = sadd.s32 1, %s17
    %s29 = scalar_select %p26, %s28, %s17
    %p30 = scmp.ge.s32.totalorder %s29, 1
    %s31 = scalar_select %p30, 0, %s29
    %s32 = sadd.s32 1, %s16
    %s33 = scalar_select %p30, %s32, %s16
    %p34 = scmp.ge.s32.totalorder %s33, 2
    %s35 = scalar_select %p34, 0, %s33
    %s36 = ssub.s32 %s16, %s35
    %s37 = ssub.s32 %s18, %s27
    %s38 = sor.u32 %s36, %s37
    %p39 = scmp.eq.s32.totalorder %s38, 0
    %s41 = sadd.s32 %s40, 1
    %s42 = scalar_select %p39, %s40, %s41
    %p45 = pneg %p39
    %p46 = scmp.eq.s32.totalorder %s9, 1
    %p47 = por %p45, %p46
    %p48 = scmp.ne.s32.totalorder %s40, %s43
    %p49 = scmp.eq.s32.totalorder %s9, 0
    %p50 = por %p48, %p49
    %p51 = scmp.ne.s32.totalorder %s40, %s43
    %p52 = scmp.eq.s32.totalorder %s14, 1
    %p53 = por %p51, %p52
    %p54 = scmp.ne.s32.totalorder %s43, %s44
    %p55 = scmp.eq.s32.totalorder %s14, 0
    %p56 = por %p54, %p55
    %p57 = scmp.ne.s32.totalorder %s43, %s44
    %p58 = scmp.eq.s32.totalorder %s15, 1
    %p59 = por %p57, %p58
    %p61 = scmp.ne.s32.totalorder %s44, %s60
    %p62 = scmp.eq.s32.totalorder %s15, 0
    %p63 = por %p61, %p62
    %s64 = ssub.s32 %s18, %s27
    %s65 = ssub.s32 %s17, %s31
    %s66 = sor.u32 %s64, %s65
    %p67 = scmp.eq.s32.totalorder %s66, 0
    %s69 = sadd.s32 %s68, 1
    %s70 = scalar_select %p67, %s68, %s69
    %p73 = pneg %p67
    %p74 = scmp.eq.s32.totalorder %s9, 1
    %p75 = por %p73, %p74
    %p76 = scmp.ne.s32.totalorder %s68, %s71
    %p77 = scmp.eq.s32.totalorder %s9, 0
    %p78 = por %p76, %p77
    %p79 = scmp.ne.s32.totalorder %s68, %s71
    %p80 = scmp.eq.s32.totalorder %s14, 1
    %p81 = por %p79, %p80
    %p82 = scmp.ne.s32.totalorder %s71, %s72
    %p83 = scmp.eq.s32.totalorder %s14, 0
    %p84 = por %p82, %p83
    %p85 = scmp.ne.s32.totalorder %s71, %s72
    %p86 = scmp.eq.s32.totalorder %s15, 1
    %p87 = por %p85, %p86
    %p89 = scmp.ne.s32.totalorder %s72, %s88
    %p90 = scmp.eq.s32.totalorder %s15, 0
    %p91 = por %p89, %p90
    %s92 = ssub.s32 %s17, %s31
    %p93 = scmp.eq.s32.totalorder %s92, 0
    %s95 = sadd.s32 %s94, 1
    %s96 = scalar_select %p93, %s94, %s95
    %p99 = pneg %p93
    %p100 = scmp.eq.s32.totalorder %s9, 1
    %p101 = por %p99, %p100
    %p102 = scmp.ne.s32.totalorder %s94, %s97
    %p103 = scmp.eq.s32.totalorder %s9, 0
    %p104 = por %p102, %p103
    %p105 = scmp.ne.s32.totalorder %s94, %s97
    %p106 = scmp.eq.s32.totalorder %s14, 1
    %p107 = por %p105, %p106
    %p108 = scmp.ne.s32.totalorder %s97, %s98
    %p109 = scmp.eq.s32.totalorder %s14, 0
    %p110 = por %p108, %p109
    %p111 = scmp.ne.s32.totalorder %s97, %s98
    %p112 = scmp.eq.s32.totalorder %s15, 1
    %p113 = por %p111, %p112
    %p115 = scmp.ne.s32.totalorder %s98, %s114
    %p116 = scmp.eq.s32.totalorder %s15, 0
    %p117 = por %p115, %p116
    %s118 = ssub.s32 %s16, %s35
    %s119 = ssub.s32 %s17, %s31
    %s120 = sor.u32 %s118, %s119
    %p121 = scmp.eq.s32.totalorder %s120, 0
    %s123 = sadd.s32 %s122, 1
    %s124 = scalar_select %p121, %s122, %s123
    %p127 = pneg %p121
    %p128 = scmp.eq.s32.totalorder %s9, 1
    %p129 = por %p127, %p128
    %p130 = scmp.ne.s32.totalorder %s122, %s125
    %p131 = scmp.eq.s32.totalorder %s9, 0
    %p132 = por %p130, %p131
    %p133 = scmp.ne.s32.totalorder %s122, %s125
    %p134 = scmp.eq.s32.totalorder %s14, 1
    %p135 = por %p133, %p134
    %p136 = scmp.ne.s32.totalorder %s125, %s126
    %p137 = scmp.eq.s32.totalorder %s14, 0
    %p138 = por %p136, %p137
    %p139 = scmp.ne.s32.totalorder %s125, %s126
    %p140 = scmp.eq.s32.totalorder %s15, 1
    %p141 = por %p139, %p140
    %p143 = scmp.ne.s32.totalorder %s126, %s142
    %p144 = scmp.eq.s32.totalorder %s15, 0
    %p145 = por %p143, %p144
    %p146 = scmp.le.s32.totalorder 1, %s9
    %p147 = scmp.lt.s32.totalorder %s9, 3
    %p148 = pnand %p146, %p147
    %p149 = pneg %p148
    // Predicated region
    $region9: #{feature_regression_forward.3} parent=5 // pred_check
      _
    $region10: #{feature_regression_forward.3} parent=5 // pred_check_branch
      %151 = sbr.rel (%p148) target = $region12
    $region11: #{feature_regression_forward.3} parent=5 // pred_region
      %s152 = ssub.s32 %s9, 1
      // Predicated region
      $region13: #{feature_regression_forward.3} parent=11 // pred_check
        %p153 = pneg %p84
      $region14: #{feature_regression_forward.3} parent=11 // pred_check_branch
        %155 = sbr.rel (%p153) target = $region16
      $region15: #{feature_regression_forward.3} parent=11 // pred_region
        %s156 = smul.u32 208, %s21
        %p157 = scmp.lt.s32.totalorder %s156, 207
        %s158 = scalar_select %p157, %s156, 207
        %p159 = scmp.lt.s32.totalorder %s20, 0
        %s160 = scalar_select %p159, %s20, 0
        %s161 = sadd.s32 %s160, %s158
        %s162 = smul.addr %s161, 4
        %s163 = scalar_lea.vmem %s1, %s162
        %s164 = smul.u32 208, %s21
      $region16: #{feature_regression_forward.3} parent=11 // pred_fallthru
        _
      // Predicated region
      $region17: #{feature_regression_forward.3} parent=11 // pred_check
        %p165 = pneg %p110
      $region18: #{feature_regression_forward.3} parent=11 // pred_check_branch
        %167 = sbr.rel (%p165) target = $region20
      $region19: #{feature_regression_forward.3} parent=11 // pred_region
        %p168 = scmp.lt.s32.totalorder %s20, 0
        %s169 = scalar_select %p168, %s20, 0
        %s170 = scalar_lea.vmem %s2, %s169
      $region20: #{feature_regression_forward.3} parent=11 // pred_fallthru
        _
    $region12: #{feature_regression_forward.3} parent=5 // pred_fallthru
      _
    %p171 = scmp.lt.s32.totalorder %s9, 2
    // Predicated region
    $region21: #{feature_regression_forward.3} parent=5 // pred_check
      %p172 = pneg %p171
    $region22: #{feature_regression_forward.3} parent=5 // pred_check_branch
      %174 = sbr.rel (%p172) target = $region24
    $region23: #{feature_regression_forward.3} parent=5 // pred_region
      // Predicated region
      $region25: #{feature_regression_forward.3} parent=23 // pred_check
        %p175 = pneg %p50
      $region26: #{feature_regression_forward.3} parent=23 // pred_check_branch
        %177 = sbr.rel (%p175) target = $region28
      $region27: #{feature_regression_forward.3} parent=23 // pred_region
        %s178 = smul.u32 12, %s16
        %s179 = smul.u32 13, %s18
        %p180 = scmp.lt.s32.totalorder %s178, 23
        %s181 = scalar_select %p180, %s178, 23
        %p182 = scmp.lt.s32.totalorder %s179, 12
        %s183 = scalar_select %p182, %s179, 12
        %s184 = smul.addr %s181, 13
        %s185 = sadd.s32 %s183, %s184
        %s186 = smul.addr %s185, 4
        %s187 = scalar_lea.vmem %s0, %s186
        %s188 = smul.u32 12, %s16
        %s189 = smul.u32 13, %s18
      $region28: #{feature_regression_forward.3} parent=23 // pred_fallthru
        _
    $region24: #{feature_regression_forward.3} parent=5 // pred_fallthru
      _
    %p190 = scmp.le.s32.totalorder 1, %s9
    %p191 = scmp.lt.s32.totalorder %s9, 3
    %p192 = pnand %p190, %p191
    %p193 = pneg %p192
    // Predicated region
    $region29: #{feature_regression_forward.3} parent=5 // pred_check
      _
    $region30: #{feature_regression_forward.3} parent=5 // pred_check_branch
      %195 = sbr.rel (%p192) target = $region32
    $region31: #{feature_regression_forward.3} parent=5 // pred_region
      %s196 = ssub.s32 %s9, 1
      %s197 = smul.u32 12, %s19
      %s198 = smul.u32 13, %s21
      %p199 = scmp.lt.s32.totalorder %s197, 23
      %s200 = scalar_select %p199, %s197, 23
      %p201 = scmp.lt.s32.totalorder %s198, 12
      %s202 = scalar_select %p201, %s198, 12
      %s203 = smul.addr %s200, 13
      %s204 = sadd.s32 %s202, %s203
      %s205 = smul.addr %s204, 4
      %s206 = scalar_lea.vmem %s0, %s205
      %p207 = pneg %p56
      %p208 = pneg %p53
      %s209 = smul.u32 208, %s21
      %p210 = scmp.lt.s32.totalorder %s209, 207
      %s211 = scalar_select %p210, %s209, 207
      %p212 = scmp.lt.s32.totalorder %s20, 0
      %s213 = scalar_select %p212, %s20, 0
      %s214 = sadd.s32 %s213, %s211
      %s215 = smul.addr %s214, 4
      %s216 = scalar_lea.vmem %s1, %s215
      %p217 = pneg %p84
      %p218 = pneg %p81
      %p219 = scmp.lt.s32.totalorder %s20, 0
      %s220 = scalar_select %p219, %s20, 0
      %s221 = scalar_lea.vmem %s2, %s220
      %p222 = pneg %p110
      %p223 = pneg %p107
      %p224 = pneg %p138
      %p225 = pneg %p135
      %s226 = smul.u32 12, %s19
      %p227 = scmp.lt.s32.totalorder %s226, 23
      %s228 = scalar_select %p227, %s226, 23
      %p229 = scmp.lt.s32.totalorder %s20, 0
      %s230 = scalar_select %p229, %s20, 0
      %s231 = sadd.s32 %s230, %s228
      %s232 = smul.addr %s231, 4
      %s233 = scalar_lea.vmem %s3, %s232
      %s234 = smul.u32 12, %s19
      %s235 = smul.u32 13, %s21
      %p236 = scmp.lt.s32.totalorder %s234, 23
      %s237 = scalar_select %p236, %s234, 23
      %p238 = scmp.lt.s32.totalorder %s235, 12
      %s239 = scalar_select %p238, %s235, 12
      %s240 = smul.addr %s237, 13
      %s241 = sadd.s32 %s239, %s240
      %s242 = smul.addr %s241, 4
      %s243 = scalar_lea.vmem %s0, %s242
      %s244 = smul.u32 12, %s19
      %s245 = smul.u32 13, %s21
      %s246 = smul.u32 208, %s21
      %p247 = scmp.lt.s32.totalorder %s246, 207
      %s248 = scalar_select %p247, %s246, 207
      %p249 = scmp.lt.s32.totalorder %s20, 0
      %s250 = scalar_select %p249, %s20, 0
      %s251 = sadd.s32 %s250, %s248
      %s252 = smul.addr %s251, 4
      %s253 = scalar_lea.vmem %s1, %s252
      %s254 = smul.u32 208, %s21
      %p255 = scmp.lt.s32.totalorder %s20, 0
      %s256 = scalar_select %p255, %s20, 0
      %s257 = scalar_lea.vmem %s2, %s256
      %s258 = smul.u32 12, %s19
      %p259 = scmp.lt.s32.totalorder %s258, 23
      %s260 = scalar_select %p259, %s258, 23
      %p261 = scmp.lt.s32.totalorder %s20, 0
      %s262 = scalar_select %p261, %s20, 0
      %s263 = sadd.s32 %s262, %s260
      %s264 = smul.addr %s263, 4
      %s265 = scalar_lea.vmem %s3, %s264
      %s266 = smul.u32 12, %s19
      %p267 = scmp.eq.s32.totalorder %s21, 0
      // Predicated region
      $region33: #{feature_regression_forward.3} parent=31 // pred_check
        %p268 = pneg %p267
      $region34: #{feature_regression_forward.3} parent=31 // pred_check_branch
        %270 = sbr.rel (%p268) target = $region36
      $region35: #{feature_regression_forward.3} parent=31 // pred_region
        %271 = vst [vmem:[#allocation2] sm:$0xff] 0.0
        %272 = vst [vmem:[#allocation2 + $0x8] sm:$0xff] 0.0
        %273 = vst [vmem:[#allocation2 + $0x10] sm:$0xff] 0.0
        %274 = vst [vmem:[#allocation2 + $0x18] sm:$0xff] 0.0
        %275 = vst [vmem:[#allocation2 + $0x20] sm:$0xff] 0.0
        %276 = vst [vmem:[#allocation2 + $0x28] sm:$0xff] 0.0
        %277 = vst [vmem:[#allocation2 + $0x30] sm:$0xff] 0.0
        %278 = vst [vmem:[#allocation2 + $0x38] sm:$0xff] 0.0
        %279 = vst [vmem:[#allocation2 + $0x40] sm:$0xff] 0.0
        %280 = vst [vmem:[#allocation2 + $0x48] sm:$0xff] 0.0
        %281 = vst [vmem:[#allocation2 + $0x50] sm:$0xff] 0.0
        %282 = vst [vmem:[#allocation2 + $0x58] sm:$0xff] 0.0
      $region36: #{feature_regression_forward.3} parent=31 // pred_fallthru
        _
      %v283 = vld [vmem:[#allocation2] sm:$0xff]
      %v284 = vld [vmem:[#allocation2 + $0x8] sm:$0xff]
      %v285 = vld [vmem:[#allocation2 + $0x10] sm:$0xff]
      %v286 = vld [vmem:[#allocation2 + $0x18] sm:$0xff]
      %v287 = vld [vmem:[#allocation2 + $0x20] sm:$0xff]
      %v288 = vld [vmem:[#allocation2 + $0x28] sm:$0xff]
      %v289 = vld [vmem:[#allocation2 + $0x30] sm:$0xff]
      %v290 = vld [vmem:[#allocation2 + $0x38] sm:$0xff]
      %v291 = vld [vmem:[#allocation2 + $0x40] sm:$0xff]
      %v292 = vld [vmem:[#allocation2 + $0x48] sm:$0xff]
      %v293 = vld [vmem:[#allocation2 + $0x50] sm:$0xff]
      %v294 = vld [vmem:[#allocation2 + $0x58] sm:$0xff]
      %v295 = vld [vmem:[%s243] sm:$0xff]
      %v296 = vld [vmem:[%s243 + $0x8] sm:$0xff]
      %v297 = vld [vmem:[%s243 + $0x10] sm:$0xff]
      %v298 = vld [vmem:[%s243 + $0x18] sm:$0xff]
      %v299 = vld [vmem:[%s243 + $0x20] sm:$0xff]
      %v300 = vld [vmem:[%s243 + $0x28] sm:$0xff]
      %v301 = vld [vmem:[%s243 + $0x30] sm:$0xf]
      %v302 = vld [vmem:[%s243 + $0x34] sm:$0xff]
      %v303 = vld [vmem:[%s243 + $0x3c] sm:$0xff]
      %v304 = vld [vmem:[%s243 + $0x44] sm:$0xff]
      %v305 = vld [vmem:[%s243 + $0x4c] sm:$0xff]
      %v306 = vld [vmem:[%s243 + $0x54] sm:$0xff]
      %v307 = vld [vmem:[%s243 + $0x5c] sm:$0xff]
      %v308 = vld [vmem:[%s243 + $0x64] sm:$0xf]
      %v309 = vld [vmem:[%s243 + $0x68] sm:$0xff]
      %v310 = vld [vmem:[%s243 + $0x70] sm:$0xff]
      %v311 = vld [vmem:[%s243 + $0x78] sm:$0xff]
      %v312 = vld [vmem:[%s243 + $0x80] sm:$0xff]
      %v313 = vld [vmem:[%s243 + $0x88] sm:$0xff]
      %v314 = vld [vmem:[%s243 + $0x90] sm:$0xff]
      %v315 = vld [vmem:[%s243 + $0x98] sm:$0xf]
      %v316 = vld [vmem:[%s243 + $0x9c] sm:$0xff]
      %v317 = vld [vmem:[%s243 + $0xa4] sm:$0xff]
      %v318 = vld [vmem:[%s243 + $0xac] sm:$0xff]
      %v319 = vld [vmem:[%s243 + $0xb4] sm:$0xff]
      %v320 = vld [vmem:[%s243 + $0xbc] sm:$0xff]
      %v321 = vld [vmem:[%s243 + $0xc4] sm:$0xff]
      %v322 = vld [vmem:[%s243 + $0xcc] sm:$0xf]
      %v323 = vld [vmem:[%s243 + $0xd0] sm:$0xff]
      %v324 = vld [vmem:[%s243 + $0xd8] sm:$0xff]
      %v325 = vld [vmem:[%s243 + $0xe0] sm:$0xff]
      %v326 = vld [vmem:[%s243 + $0xe8] sm:$0xff]
      %v327 = vld [vmem:[%s243 + $0xf0] sm:$0xff]
      %v328 = vld [vmem:[%s243 + $0xf8] sm:$0xff]
      %v329 = vld [vmem:[%s243 + $0x100] sm:$0xf]
      %v330 = vld [vmem:[%s243 + $0x104] sm:$0xff]
      %v331 = vld [vmem:[%s243 + $0x10c] sm:$0xff]
      %v332 = vld [vmem:[%s243 + $0x114] sm:$0xff]
      %v333 = vld [vmem:[%s243 + $0x11c] sm:$0xff]
      %v334 = vld [vmem:[%s243 + $0x124] sm:$0xff]
      %v335 = vld [vmem:[%s243 + $0x12c] sm:$0xff]
      %v336 = vld [vmem:[%s243 + $0x134] sm:$0xf]
      %v337 = vld [vmem:[%s243 + $0x138] sm:$0xff]
      %v338 = vld [vmem:[%s243 + $0x140] sm:$0xff]
      %v339 = vld [vmem:[%s243 + $0x148] sm:$0xff]
      %v340 = vld [vmem:[%s243 + $0x150] sm:$0xff]
      %v341 = vld [vmem:[%s243 + $0x158] sm:$0xff]
      %v342 = vld [vmem:[%s243 + $0x160] sm:$0xff]
      %v343 = vld [vmem:[%s243 + $0x168] sm:$0xf]
      %v344 = vld [vmem:[%s243 + $0x16c] sm:$0xff]
      %v345 = vld [vmem:[%s243 + $0x174] sm:$0xff]
      %v346 = vld [vmem:[%s243 + $0x17c] sm:$0xff]
      %v347 = vld [vmem:[%s243 + $0x184] sm:$0xff]
      %v348 = vld [vmem:[%s243 + $0x18c] sm:$0xff]
      %v349 = vld [vmem:[%s243 + $0x194] sm:$0xff]
      %v350 = vld [vmem:[%s243 + $0x19c] sm:$0xf]
      %v351 = vld [vmem:[%s243 + $0x1a0] sm:$0xff]
      %v352 = vld [vmem:[%s243 + $0x1a8] sm:$0xff]
      %v353 = vld [vmem:[%s243 + $0x1b0] sm:$0xff]
      %v354 = vld [vmem:[%s243 + $0x1b8] sm:$0xff]
      %v355 = vld [vmem:[%s243 + $0x1c0] sm:$0xff]
      %v356 = vld [vmem:[%s243 + $0x1c8] sm:$0xff]
      %v357 = vld [vmem:[%s243 + $0x1d0] sm:$0xf]
      %v358 = vld [vmem:[%s243 + $0x1d4] sm:$0xff]
      %v359 = vld [vmem:[%s243 + $0x1dc] sm:$0xff]
      %v360 = vld [vmem:[%s243 + $0x1e4] sm:$0xff]
      %v361 = vld [vmem:[%s243 + $0x1ec] sm:$0xff]
      %v362 = vld [vmem:[%s243 + $0x1f4] sm:$0xff]
      %v363 = vld [vmem:[%s243 + $0x1fc] sm:$0xff]
      %v364 = vld [vmem:[%s243 + $0x204] sm:$0xf]
      %v365 = vld [vmem:[%s243 + $0x208] sm:$0xff]
      %v366 = vld [vmem:[%s243 + $0x210] sm:$0xff]
      %v367 = vld [vmem:[%s243 + $0x218] sm:$0xff]
      %v368 = vld [vmem:[%s243 + $0x220] sm:$0xff]
      %v369 = vld [vmem:[%s243 + $0x228] sm:$0xff]
      %v370 = vld [vmem:[%s243 + $0x230] sm:$0xff]
      %v371 = vld [vmem:[%s243 + $0x238] sm:$0xf]
      %v372 = vld [vmem:[%s243 + $0x23c] sm:$0xff]
      %v373 = vld [vmem:[%s243 + $0x244] sm:$0xff]
      %v374 = vld [vmem:[%s243 + $0x24c] sm:$0xff]
      %v375 = vld [vmem:[%s243 + $0x254] sm:$0xff]
      %v376 = vld [vmem:[%s243 + $0x25c] sm:$0xff]
      %v377 = vld [vmem:[%s243 + $0x264] sm:$0xff]
      %v378 = vld [vmem:[%s243 + $0x26c] sm:$0xf]
      %v379 = vld [vmem:[%s253] sm:$0xf]
      %v380 = vld [vmem:[%s253 + $0x4] sm:$0xf]
      %v381 = vld [vmem:[%s253 + $0x8] sm:$0xf]
      %v382 = vld [vmem:[%s253 + $0xc] sm:$0xf]
      %v383 = vld [vmem:[%s253 + $0x10] sm:$0xf]
      %v384 = vld [vmem:[%s253 + $0x14] sm:$0xf]
      %v385 = vld [vmem:[%s253 + $0x18] sm:$0xf]
      %v386 = vld [vmem:[%s253 + $0x1c] sm:$0xf]
      %v387 = vld [vmem:[%s253 + $0x20] sm:$0xf]
      %v388 = vld [vmem:[%s253 + $0x24] sm:$0xf]
      %v389 = vld [vmem:[%s253 + $0x28] sm:$0xf]
      %v390 = vld [vmem:[%s253 + $0x2c] sm:$0xf]
      %v391 = vld [vmem:[%s253 + $0x30] sm:$0xf]
      %v392 = vld [vmem:[%s253 + $0x34] sm:$0xf]
      %v393 = vld [vmem:[%s253 + $0x38] sm:$0xf]
      %v394 = vld [vmem:[%s253 + $0x3c] sm:$0xf]
      %v395 = vld [vmem:[%s253 + $0x40] sm:$0xf]
      %v396 = vld [vmem:[%s253 + $0x44] sm:$0xf]
      %v397 = vld [vmem:[%s253 + $0x48] sm:$0xf]
      %v398 = vld [vmem:[%s253 + $0x4c] sm:$0xf]
      %v399 = vld [vmem:[%s253 + $0x50] sm:$0xf]
      %v400 = vld [vmem:[%s253 + $0x54] sm:$0xf]
      %v401 = vld [vmem:[%s253 + $0x58] sm:$0xf]
      %v402 = vld [vmem:[%s253 + $0x5c] sm:$0xf]
      %v403 = vld [vmem:[%s253 + $0x60] sm:$0xf]
      %v404 = vld [vmem:[%s253 + $0x64] sm:$0xf]
      %v405 = vld [vmem:[%s253 + $0x68] sm:$0xf]
      %v406 = vld [vmem:[%s253 + $0x6c] sm:$0xf]
      %v407 = vld [vmem:[%s253 + $0x70] sm:$0xf]
      %v408 = vld [vmem:[%s253 + $0x74] sm:$0xf]
      %v409 = vld [vmem:[%s253 + $0x78] sm:$0xf]
      %v410 = vld [vmem:[%s253 + $0x7c] sm:$0xf]
      %v411 = vld [vmem:[%s253 + $0x80] sm:$0xf]
      %v412 = vld [vmem:[%s253 + $0x84] sm:$0xf]
      %v413 = vld [vmem:[%s253 + $0x88] sm:$0xf]
      %v414 = vld [vmem:[%s253 + $0x8c] sm:$0xf]
      %v415 = vld [vmem:[%s253 + $0x90] sm:$0xf]
      %v416 = vld [vmem:[%s253 + $0x94] sm:$0xf]
      %v417 = vld [vmem:[%s253 + $0x98] sm:$0xf]
      %v418 = vld [vmem:[%s253 + $0x9c] sm:$0xf]
      %v419 = vld [vmem:[%s253 + $0xa0] sm:$0xf]
      %v420 = vld [vmem:[%s253 + $0xa4] sm:$0xf]
      %v421 = vld [vmem:[%s253 + $0xa8] sm:$0xf]
      %v422 = vld [vmem:[%s253 + $0xac] sm:$0xf]
      %v423 = vld [vmem:[%s253 + $0xb0] sm:$0xf]
      %v424 = vld [vmem:[%s253 + $0xb4] sm:$0xf]
      %v425 = vld [vmem:[%s253 + $0xb8] sm:$0xf]
      %v426 = vld [vmem:[%s253 + $0xbc] sm:$0xf]
      %v427 = vld [vmem:[%s253 + $0xc0] sm:$0xf]
      %v428 = vld [vmem:[%s253 + $0xc4] sm:$0xf]
      %v429 = vld [vmem:[%s253 + $0xc8] sm:$0xf]
      %v430 = vld [vmem:[%s253 + $0xcc] sm:$0xf]
      %v431 = vld [vmem:[%s253 + $0xd0] sm:$0xf]
      %v432 = vld [vmem:[%s253 + $0xd4] sm:$0xf]
      %v433 = vld [vmem:[%s253 + $0xd8] sm:$0xf]
      %v434 = vld [vmem:[%s253 + $0xdc] sm:$0xf]
      %v435 = vld [vmem:[%s253 + $0xe0] sm:$0xf]
      %v436 = vld [vmem:[%s253 + $0xe4] sm:$0xf]
      %v437 = vld [vmem:[%s253 + $0xe8] sm:$0xf]
      %v438 = vld [vmem:[%s253 + $0xec] sm:$0xf]
      %v439 = vld [vmem:[%s253 + $0xf0] sm:$0xf]
      %v440 = vld [vmem:[%s253 + $0xf4] sm:$0xf]
      %v441 = vld [vmem:[%s253 + $0xf8] sm:$0xf]
      %v442 = vld [vmem:[%s253 + $0xfc] sm:$0xf]
      %v443 = vld [vmem:[%s253 + $0x100] sm:$0xf]
      %v444 = vld [vmem:[%s253 + $0x104] sm:$0xf]
      %v445 = vld [vmem:[%s253 + $0x108] sm:$0xf]
      %v446 = vld [vmem:[%s253 + $0x10c] sm:$0xf]
      %v447 = vld [vmem:[%s253 + $0x110] sm:$0xf]
      %v448 = vld [vmem:[%s253 + $0x114] sm:$0xf]
      %v449 = vld [vmem:[%s253 + $0x118] sm:$0xf]
      %v450 = vld [vmem:[%s253 + $0x11c] sm:$0xf]
      %v451 = vld [vmem:[%s253 + $0x120] sm:$0xf]
      %v452 = vld [vmem:[%s253 + $0x124] sm:$0xf]
      %v453 = vld [vmem:[%s253 + $0x128] sm:$0xf]
      %v454 = vld [vmem:[%s253 + $0x12c] sm:$0xf]
      %v455 = vld [vmem:[%s253 + $0x130] sm:$0xf]
      %v456 = vld [vmem:[%s253 + $0x134] sm:$0xf]
      %v457 = vld [vmem:[%s253 + $0x138] sm:$0xf]
      %v458 = vld [vmem:[%s253 + $0x13c] sm:$0xf]
      %v459 = vld [vmem:[%s253 + $0x140] sm:$0xf]
      %v460 = vld [vmem:[%s253 + $0x144] sm:$0xf]
      %v461 = vld [vmem:[%s253 + $0x148] sm:$0xf]
      %v462 = vld [vmem:[%s253 + $0x14c] sm:$0xf]
      %v463 = vld [vmem:[%s253 + $0x150] sm:$0xf]
      %v464 = vld [vmem:[%s253 + $0x154] sm:$0xf]
      %v465 = vld [vmem:[%s253 + $0x158] sm:$0xf]
      %v466 = vld [vmem:[%s253 + $0x15c] sm:$0xf]
      %v467 = vld [vmem:[%s253 + $0x160] sm:$0xf]
      %v468 = vld [vmem:[%s253 + $0x164] sm:$0xf]
      %v469 = vld [vmem:[%s253 + $0x168] sm:$0xf]
      %v470 = vld [vmem:[%s253 + $0x16c] sm:$0xf]
      %v471 = vld [vmem:[%s253 + $0x170] sm:$0xf]
      %v472 = vld [vmem:[%s253 + $0x174] sm:$0xf]
      %v473 = vld [vmem:[%s253 + $0x178] sm:$0xf]
      %v474 = vld [vmem:[%s253 + $0x17c] sm:$0xf]
      %v475 = vld [vmem:[%s253 + $0x180] sm:$0xf]
      %v476 = vld [vmem:[%s253 + $0x184] sm:$0xf]
      %v477 = vld [vmem:[%s253 + $0x188] sm:$0xf]
      %v478 = vld [vmem:[%s253 + $0x18c] sm:$0xf]
      %v479 = vld [vmem:[%s253 + $0x190] sm:$0xf]
      %v480 = vld [vmem:[%s253 + $0x194] sm:$0xf]
      %v481 = vld [vmem:[%s253 + $0x198] sm:$0xf]
      %v482 = vld [vmem:[%s253 + $0x19c] sm:$0xf]
      %v483 = vld [vmem:[%s253 + $0x1a0] sm:$0xf]
      %v484 = vld [vmem:[%s253 + $0x1a4] sm:$0xf]
      %v485 = vld [vmem:[%s253 + $0x1a8] sm:$0xf]
      %v486 = vld [vmem:[%s253 + $0x1ac] sm:$0xf]
      %v487 = vld [vmem:[%s253 + $0x1b0] sm:$0xf]
      %v488 = vld [vmem:[%s253 + $0x1b4] sm:$0xf]
      %v489 = vld [vmem:[%s253 + $0x1b8] sm:$0xf]
      %v490 = vld [vmem:[%s253 + $0x1bc] sm:$0xf]
      %v491 = vld [vmem:[%s253 + $0x1c0] sm:$0xf]
      %v492 = vld [vmem:[%s253 + $0x1c4] sm:$0xf]
      %v493 = vld [vmem:[%s253 + $0x1c8] sm:$0xf]
      %v494 = vld [vmem:[%s253 + $0x1cc] sm:$0xf]
      %v495 = vld [vmem:[%s253 + $0x1d0] sm:$0xf]
      %v496 = vld [vmem:[%s253 + $0x1d4] sm:$0xf]
      %v497 = vld [vmem:[%s253 + $0x1d8] sm:$0xf]
      %v498 = vld [vmem:[%s253 + $0x1dc] sm:$0xf]
      %v499 = vld [vmem:[%s253 + $0x1e0] sm:$0xf]
      %v500 = vld [vmem:[%s253 + $0x1e4] sm:$0xf]
      %v501 = vld [vmem:[%s253 + $0x1e8] sm:$0xf]
      %v502 = vld [vmem:[%s253 + $0x1ec] sm:$0xf]
      %v503 = vld [vmem:[%s253 + $0x1f0] sm:$0xf]
      %v504 = vld [vmem:[%s253 + $0x1f4] sm:$0xf]
      %v505 = vld [vmem:[%s253 + $0x1f8] sm:$0xf]
      %v506 = vld [vmem:[%s253 + $0x1fc] sm:$0xf]
      %v507 = vld [vmem:[%s253 + $0x200] sm:$0xf]
      %v508 = vld [vmem:[%s253 + $0x204] sm:$0xf]
      %v509 = vld [vmem:[%s253 + $0x208] sm:$0xf]
      %v510 = vld [vmem:[%s253 + $0x20c] sm:$0xf]
      %v511 = vld [vmem:[%s253 + $0x210] sm:$0xf]
      %v512 = vld [vmem:[%s253 + $0x214] sm:$0xf]
      %v513 = vld [vmem:[%s253 + $0x218] sm:$0xf]
      %v514 = vld [vmem:[%s253 + $0x21c] sm:$0xf]
      %v515 = vld [vmem:[%s253 + $0x220] sm:$0xf]
      %v516 = vld [vmem:[%s253 + $0x224] sm:$0xf]
      %v517 = vld [vmem:[%s253 + $0x228] sm:$0xf]
      %v518 = vld [vmem:[%s253 + $0x22c] sm:$0xf]
      %v519 = vld [vmem:[%s253 + $0x230] sm:$0xf]
      %v520 = vld [vmem:[%s253 + $0x234] sm:$0xf]
      %v521 = vld [vmem:[%s253 + $0x238] sm:$0xf]
      %v522 = vld [vmem:[%s253 + $0x23c] sm:$0xf]
      %v523 = vld [vmem:[%s253 + $0x240] sm:$0xf]
      %v524 = vld [vmem:[%s253 + $0x244] sm:$0xf]
      %v525 = vld [vmem:[%s253 + $0x248] sm:$0xf]
      %v526 = vld [vmem:[%s253 + $0x24c] sm:$0xf]
      %v527 = vld [vmem:[%s253 + $0x250] sm:$0xf]
      %v528 = vld [vmem:[%s253 + $0x254] sm:$0xf]
      %v529 = vld [vmem:[%s253 + $0x258] sm:$0xf]
      %v530 = vld [vmem:[%s253 + $0x25c] sm:$0xf]
      %v531 = vld [vmem:[%s253 + $0x260] sm:$0xf]
      %v532 = vld [vmem:[%s253 + $0x264] sm:$0xf]
      %v533 = vld [vmem:[%s253 + $0x268] sm:$0xf]
      %v534 = vld [vmem:[%s253 + $0x26c] sm:$0xf]
      %v535 = vld [vmem:[%s253 + $0x270] sm:$0xf]
      %v536 = vld [vmem:[%s253 + $0x274] sm:$0xf]
      %v537 = vld [vmem:[%s253 + $0x278] sm:$0xf]
      %v538 = vld [vmem:[%s253 + $0x27c] sm:$0xf]
      %v539 = vld [vmem:[%s253 + $0x280] sm:$0xf]
      %v540 = vld [vmem:[%s253 + $0x284] sm:$0xf]
      %v541 = vld [vmem:[%s253 + $0x288] sm:$0xf]
      %v542 = vld [vmem:[%s253 + $0x28c] sm:$0xf]
      %v543 = vld [vmem:[%s253 + $0x290] sm:$0xf]
      %v544 = vld [vmem:[%s253 + $0x294] sm:$0xf]
      %v545 = vld [vmem:[%s253 + $0x298] sm:$0xf]
      %v546 = vld [vmem:[%s253 + $0x29c] sm:$0xf]
      %v547 = vld [vmem:[%s253 + $0x2a0] sm:$0xf]
      %v548 = vld [vmem:[%s253 + $0x2a4] sm:$0xf]
      %v549 = vld [vmem:[%s253 + $0x2a8] sm:$0xf]
      %v550 = vld [vmem:[%s253 + $0x2ac] sm:$0xf]
      %v551 = vld [vmem:[%s253 + $0x2b0] sm:$0xf]
      %v552 = vld [vmem:[%s253 + $0x2b4] sm:$0xf]
      %v553 = vld [vmem:[%s253 + $0x2b8] sm:$0xf]
      %v554 = vld [vmem:[%s253 + $0x2bc] sm:$0xf]
      %v555 = vld [vmem:[%s253 + $0x2c0] sm:$0xf]
      %v556 = vld [vmem:[%s253 + $0x2c4] sm:$0xf]
      %v557 = vld [vmem:[%s253 + $0x2c8] sm:$0xf]
      %v558 = vld [vmem:[%s253 + $0x2cc] sm:$0xf]
      %v559 = vld [vmem:[%s253 + $0x2d0] sm:$0xf]
      %v560 = vld [vmem:[%s253 + $0x2d4] sm:$0xf]
      %v561 = vld [vmem:[%s253 + $0x2d8] sm:$0xf]
      %v562 = vld [vmem:[%s253 + $0x2dc] sm:$0xf]
      %v563 = vld [vmem:[%s253 + $0x2e0] sm:$0xf]
      %v564 = vld [vmem:[%s253 + $0x2e4] sm:$0xf]
      %v565 = vld [vmem:[%s253 + $0x2e8] sm:$0xf]
      %v566 = vld [vmem:[%s253 + $0x2ec] sm:$0xf]
      %v567 = vld [vmem:[%s253 + $0x2f0] sm:$0xf]
      %v568 = vld [vmem:[%s253 + $0x2f4] sm:$0xf]
      %v569 = vld [vmem:[%s253 + $0x2f8] sm:$0xf]
      %v570 = vld [vmem:[%s253 + $0x2fc] sm:$0xf]
      %v571 = vld [vmem:[%s253 + $0x300] sm:$0xf]
      %v572 = vld [vmem:[%s253 + $0x304] sm:$0xf]
      %v573 = vld [vmem:[%s253 + $0x308] sm:$0xf]
      %v574 = vld [vmem:[%s253 + $0x30c] sm:$0xf]
      %v575 = vld [vmem:[%s253 + $0x310] sm:$0xf]
      %v576 = vld [vmem:[%s253 + $0x314] sm:$0xf]
      %v577 = vld [vmem:[%s253 + $0x318] sm:$0xf]
      %v578 = vld [vmem:[%s253 + $0x31c] sm:$0xf]
      %v579 = vld [vmem:[%s253 + $0x320] sm:$0xf]
      %v580 = vld [vmem:[%s253 + $0x324] sm:$0xf]
      %v581 = vld [vmem:[%s253 + $0x328] sm:$0xf]
      %v582 = vld [vmem:[%s253 + $0x32c] sm:$0xf]
      %v583 = vld [vmem:[%s253 + $0x330] sm:$0xf]
      %v584 = vld [vmem:[%s253 + $0x334] sm:$0xf]
      %v585 = vld [vmem:[%s253 + $0x338] sm:$0xf]
      %v586 = vld [vmem:[%s253 + $0x33c] sm:$0xf]
      %v671 = vunpack.c.l.b16 %v295
      %v672 = vunpack.c.h.b16 %v295
      %v673 = vunpack.c.l.b16 %v296
      %v674 = vunpack.c.h.b16 %v296
      %v675 = vunpack.c.l.b16 %v297
      %v676 = vunpack.c.h.b16 %v297
      %v677 = vunpack.c.l.b16 %v298
      %v678 = vunpack.c.h.b16 %v298
      %v679 = vunpack.c.l.b16 %v299
      %v680 = vunpack.c.h.b16 %v299
      %v681 = vunpack.c.l.b16 %v300
      %v682 = vunpack.c.h.b16 %v300
      %v683 = vunpack.c.l.b16 %v301
      %v684 = vunpack.c.l.b16 %v302
      %v685 = vunpack.c.h.b16 %v302
      %v686 = vunpack.c.l.b16 %v303
      %v687 = vunpack.c.h.b16 %v303
      %v688 = vunpack.c.l.b16 %v304
      %v689 = vunpack.c.h.b16 %v304
      %v690 = vunpack.c.l.b16 %v305
      %v691 = vunpack.c.h.b16 %v305
      %v692 = vunpack.c.l.b16 %v306
      %v693 = vunpack.c.h.b16 %v306
      %v694 = vunpack.c.l.b16 %v307
      %v695 = vunpack.c.h.b16 %v307
      %v696 = vunpack.c.l.b16 %v308
      %v697 = vunpack.c.l.b16 %v309
      %v698 = vunpack.c.h.b16 %v309
      %v699 = vunpack.c.l.b16 %v310
      %v700 = vunpack.c.h.b16 %v310
      %v701 = vunpack.c.l.b16 %v311
      %v702 = vunpack.c.h.b16 %v311
      %v703 = vunpack.c.l.b16 %v312
      %v704 = vunpack.c.h.b16 %v312
      %v705 = vunpack.c.l.b16 %v313
      %v706 = vunpack.c.h.b16 %v313
      %v707 = vunpack.c.l.b16 %v314
      %v708 = vunpack.c.h.b16 %v314
      %v709 = vunpack.c.l.b16 %v315
      %v710 = vunpack.c.l.b16 %v316
      %v711 = vunpack.c.h.b16 %v316
      %v712 = vunpack.c.l.b16 %v317
      %v713 = vunpack.c.h.b16 %v317
      %v714 = vunpack.c.l.b16 %v318
      %v715 = vunpack.c.h.b16 %v318
      %v716 = vunpack.c.l.b16 %v319
      %v717 = vunpack.c.h.b16 %v319
      %v718 = vunpack.c.l.b16 %v320
      %v719 = vunpack.c.h.b16 %v320
      %v720 = vunpack.c.l.b16 %v321
      %v721 = vunpack.c.h.b16 %v321
      %v722 = vunpack.c.l.b16 %v322
      %v723 = vunpack.c.l.b16 %v323
      %v724 = vunpack.c.h.b16 %v323
      %v725 = vunpack.c.l.b16 %v324
      %v726 = vunpack.c.h.b16 %v324
      %v727 = vunpack.c.l.b16 %v325
      %v728 = vunpack.c.h.b16 %v325
      %v729 = vunpack.c.l.b16 %v326
      %v730 = vunpack.c.h.b16 %v326
      %v731 = vunpack.c.l.b16 %v327
      %v732 = vunpack.c.h.b16 %v327
      %v733 = vunpack.c.l.b16 %v328
      %v734 = vunpack.c.h.b16 %v328
      %v735 = vunpack.c.l.b16 %v329
      %v736 = vunpack.c.l.b16 %v330
      %v737 = vunpack.c.h.b16 %v330
      %v738 = vunpack.c.l.b16 %v331
      %v739 = vunpack.c.h.b16 %v331
      %v740 = vunpack.c.l.b16 %v332
      %v741 = vunpack.c.h.b16 %v332
      %v742 = vunpack.c.l.b16 %v333
      %v743 = vunpack.c.h.b16 %v333
      %v744 = vunpack.c.l.b16 %v334
      %v745 = vunpack.c.h.b16 %v334
      %v746 = vunpack.c.l.b16 %v335
      %v747 = vunpack.c.h.b16 %v335
      %v748 = vunpack.c.l.b16 %v336
      %v749 = vunpack.c.l.b16 %v337
      %v750 = vunpack.c.h.b16 %v337
      %v751 = vunpack.c.l.b16 %v338
      %v752 = vunpack.c.h.b16 %v338
      %v753 = vunpack.c.l.b16 %v339
      %v754 = vunpack.c.h.b16 %v339
      %v755 = vunpack.c.l.b16 %v340
      %v756 = vunpack.c.h.b16 %v340
      %v757 = vunpack.c.l.b16 %v341
      %v758 = vunpack.c.h.b16 %v341
      %v759 = vunpack.c.l.b16 %v342
      %v760 = vunpack.c.h.b16 %v342
      %v761 = vunpack.c.l.b16 %v343
      %v762 = vunpack.c.l.b16 %v344
      %v763 = vunpack.c.h.b16 %v344
      %v764 = vunpack.c.l.b16 %v345
      %v765 = vunpack.c.h.b16 %v345
      %v766 = vunpack.c.l.b16 %v346
      %v767 = vunpack.c.h.b16 %v346
      %v768 = vunpack.c.l.b16 %v347
      %v769 = vunpack.c.h.b16 %v347
      %v770 = vunpack.c.l.b16 %v348
      %v771 = vunpack.c.h.b16 %v348
      %v772 = vunpack.c.l.b16 %v349
      %v773 = vunpack.c.h.b16 %v349
      %v774 = vunpack.c.l.b16 %v350
      %v775 = vunpack.c.l.b16 %v351
      %v776 = vunpack.c.h.b16 %v351
      %v777 = vunpack.c.l.b16 %v352
      %v778 = vunpack.c.h.b16 %v352
      %v779 = vunpack.c.l.b16 %v353
      %v780 = vunpack.c.h.b16 %v353
      %v781 = vunpack.c.l.b16 %v354
      %v782 = vunpack.c.h.b16 %v354
      %v783 = vunpack.c.l.b16 %v355
      %v784 = vunpack.c.h.b16 %v355
      %v785 = vunpack.c.l.b16 %v356
      %v786 = vunpack.c.h.b16 %v356
      %v787 = vunpack.c.l.b16 %v357
      %v788 = vunpack.c.l.b16 %v358
      %v789 = vunpack.c.h.b16 %v358
      %v790 = vunpack.c.l.b16 %v359
      %v791 = vunpack.c.h.b16 %v359
      %v792 = vunpack.c.l.b16 %v360
      %v793 = vunpack.c.h.b16 %v360
      %v794 = vunpack.c.l.b16 %v361
      %v795 = vunpack.c.h.b16 %v361
      %v796 = vunpack.c.l.b16 %v362
      %v797 = vunpack.c.h.b16 %v362
      %v798 = vunpack.c.l.b16 %v363
      %v799 = vunpack.c.h.b16 %v363
      %v800 = vunpack.c.l.b16 %v364
      %v801 = vunpack.c.l.b16 %v365
      %v802 = vunpack.c.h.b16 %v365
      %v803 = vunpack.c.l.b16 %v366
      %v804 = vunpack.c.h.b16 %v366
      %v805 = vunpack.c.l.b16 %v367
      %v806 = vunpack.c.h.b16 %v367
      %v807 = vunpack.c.l.b16 %v368
      %v808 = vunpack.c.h.b16 %v368
      %v809 = vunpack.c.l.b16 %v369
      %v810 = vunpack.c.h.b16 %v369
      %v811 = vunpack.c.l.b16 %v370
      %v812 = vunpack.c.h.b16 %v370
      %v813 = vunpack.c.l.b16 %v371
      %v814 = vunpack.c.l.b16 %v372
      %v815 = vunpack.c.h.b16 %v372
      %v816 = vunpack.c.l.b16 %v373
      %v817 = vunpack.c.h.b16 %v373
      %v818 = vunpack.c.l.b16 %v374
      %v819 = vunpack.c.h.b16 %v374
      %v820 = vunpack.c.l.b16 %v375
      %v821 = vunpack.c.h.b16 %v375
      %v822 = vunpack.c.l.b16 %v376
      %v823 = vunpack.c.h.b16 %v376
      %v824 = vunpack.c.l.b16 %v377
      %v825 = vunpack.c.h.b16 %v377
      %v826 = vunpack.c.l.b16 %v378
      %v827 = vpack.c.b16 %v684, %v671
      %v828 = vpack.c.b16 %v685, %v672
      %v829 = vpack.c.b16 %v686, %v673
      %v830 = vpack.c.b16 %v687, %v674
      %v831 = vpack.c.b16 %v688, %v675
      %v832 = vpack.c.b16 %v689, %v676
      %v833 = vpack.c.b16 %v690, %v677
      %v834 = vpack.c.b16 %v691, %v678
      %v835 = vpack.c.b16 %v692, %v679
      %v836 = vpack.c.b16 %v693, %v680
      %v837 = vpack.c.b16 %v694, %v681
      %v838 = vpack.c.b16 %v695, %v682
      %v839 = vpack.c.b16 %v696, %v683
      %v840 = vpack.c.b16 %v710, %v697
      %v841 = vpack.c.b16 %v711, %v698
      %v842 = vpack.c.b16 %v712, %v699
      %v843 = vpack.c.b16 %v713, %v700
      %v844 = vpack.c.b16 %v714, %v701
      %v845 = vpack.c.b16 %v715, %v702
      %v846 = vpack.c.b16 %v716, %v703
      %v847 = vpack.c.b16 %v717, %v704
      %v848 = vpack.c.b16 %v718, %v705
      %v849 = vpack.c.b16 %v719, %v706
      %v850 = vpack.c.b16 %v720, %v707
      %v851 = vpack.c.b16 %v721, %v708
      %v852 = vpack.c.b16 %v722, %v709
      %v853 = vpack.c.b16 %v736, %v723
      %v854 = vpack.c.b16 %v737, %v724
      %v855 = vpack.c.b16 %v738, %v725
      %v856 = vpack.c.b16 %v739, %v726
      %v857 = vpack.c.b16 %v740, %v727
      %v858 = vpack.c.b16 %v741, %v728
      %v859 = vpack.c.b16 %v742, %v729
      %v860 = vpack.c.b16 %v743, %v730
      %v861 = vpack.c.b16 %v744, %v731
      %v862 = vpack.c.b16 %v745, %v732
      %v863 = vpack.c.b16 %v746, %v733
      %v864 = vpack.c.b16 %v747, %v734
      %v865 = vpack.c.b16 %v748, %v735
      %v866 = vpack.c.b16 %v762, %v749
      %v867 = vpack.c.b16 %v763, %v750
      %v868 = vpack.c.b16 %v764, %v751
      %v869 = vpack.c.b16 %v765, %v752
      %v870 = vpack.c.b16 %v766, %v753
      %v871 = vpack.c.b16 %v767, %v754
      %v872 = vpack.c.b16 %v768, %v755
      %v873 = vpack.c.b16 %v769, %v756
      %v874 = vpack.c.b16 %v770, %v757
      %v875 = vpack.c.b16 %v771, %v758
      %v876 = vpack.c.b16 %v772, %v759
      %v877 = vpack.c.b16 %v773, %v760
      %v878 = vpack.c.b16 %v774, %v761
      %v879 = vpack.c.b16 %v788, %v775
      %v880 = vpack.c.b16 %v789, %v776
      %v881 = vpack.c.b16 %v790, %v777
      %v882 = vpack.c.b16 %v791, %v778
      %v883 = vpack.c.b16 %v792, %v779
      %v884 = vpack.c.b16 %v793, %v780
      %v885 = vpack.c.b16 %v794, %v781
      %v886 = vpack.c.b16 %v795, %v782
      %v887 = vpack.c.b16 %v796, %v783
      %v888 = vpack.c.b16 %v797, %v784
      %v889 = vpack.c.b16 %v798, %v785
      %v890 = vpack.c.b16 %v799, %v786
      %v891 = vpack.c.b16 %v800, %v787
      %v892 = vpack.c.b16 %v814, %v801
      %v893 = vpack.c.b16 %v815, %v802
      %v894 = vpack.c.b16 %v816, %v803
      %v895 = vpack.c.b16 %v817, %v804
      %v896 = vpack.c.b16 %v818, %v805
      %v897 = vpack.c.b16 %v819, %v806
      %v898 = vpack.c.b16 %v820, %v807
      %v899 = vpack.c.b16 %v821, %v808
      %v900 = vpack.c.b16 %v822, %v809
      %v901 = vpack.c.b16 %v823, %v810
      %v902 = vpack.c.b16 %v824, %v811
      %v903 = vpack.c.b16 %v825, %v812
      %v904 = vpack.c.b16 %v826, %v813
      %v1191 = vunpack.c.l.b16 %v379
      %v1192 = vunpack.c.l.b16 %v380
      %v1193 = vunpack.c.l.b16 %v381
      %v1194 = vunpack.c.l.b16 %v382
      %v1195 = vunpack.c.l.b16 %v383
      %v1196 = vunpack.c.l.b16 %v384
      %v1197 = vunpack.c.l.b16 %v385
      %v1198 = vunpack.c.l.b16 %v386
      %v1199 = vunpack.c.l.b16 %v387
      %v1200 = vunpack.c.l.b16 %v388
      %v1201 = vunpack.c.l.b16 %v389
      %v1202 = vunpack.c.l.b16 %v390
      %v1203 = vunpack.c.l.b16 %v391
      %v1204 = vunpack.c.l.b16 %v392
      %v1205 = vunpack.c.l.b16 %v393
      %v1206 = vunpack.c.l.b16 %v394
      %v1207 = vunpack.c.l.b16 %v395
      %v1208 = vunpack.c.l.b16 %v396
      %v1209 = vunpack.c.l.b16 %v397
      %v1210 = vunpack.c.l.b16 %v398
      %v1211 = vunpack.c.l.b16 %v399
      %v1212 = vunpack.c.l.b16 %v400
      %v1213 = vunpack.c.l.b16 %v401
      %v1214 = vunpack.c.l.b16 %v402
      %v1215 = vunpack.c.l.b16 %v403
      %v1216 = vunpack.c.l.b16 %v404
      %v1217 = vunpack.c.l.b16 %v405
      %v1218 = vunpack.c.l.b16 %v406
      %v1219 = vunpack.c.l.b16 %v407
      %v1220 = vunpack.c.l.b16 %v408
      %v1221 = vunpack.c.l.b16 %v409
      %v1222 = vunpack.c.l.b16 %v410
      %v1223 = vunpack.c.l.b16 %v411
      %v1224 = vunpack.c.l.b16 %v412
      %v1225 = vunpack.c.l.b16 %v413
      %v1226 = vunpack.c.l.b16 %v414
      %v1227 = vunpack.c.l.b16 %v415
      %v1228 = vunpack.c.l.b16 %v416
      %v1229 = vunpack.c.l.b16 %v417
      %v1230 = vunpack.c.l.b16 %v418
      %v1231 = vunpack.c.l.b16 %v419
      %v1232 = vunpack.c.l.b16 %v420
      %v1233 = vunpack.c.l.b16 %v421
      %v1234 = vunpack.c.l.b16 %v422
      %v1235 = vunpack.c.l.b16 %v423
      %v1236 = vunpack.c.l.b16 %v424
      %v1237 = vunpack.c.l.b16 %v425
      %v1238 = vunpack.c.l.b16 %v426
      %v1239 = vunpack.c.l.b16 %v427
      %v1240 = vunpack.c.l.b16 %v428
      %v1241 = vunpack.c.l.b16 %v429
      %v1242 = vunpack.c.l.b16 %v430
      %v1243 = vunpack.c.l.b16 %v431
      %v1244 = vunpack.c.l.b16 %v432
      %v1245 = vunpack.c.l.b16 %v433
      %v1246 = vunpack.c.l.b16 %v434
      %v1247 = vunpack.c.l.b16 %v435
      %v1248 = vunpack.c.l.b16 %v436
      %v1249 = vunpack.c.l.b16 %v437
      %v1250 = vunpack.c.l.b16 %v438
      %v1251 = vunpack.c.l.b16 %v439
      %v1252 = vunpack.c.l.b16 %v440
      %v1253 = vunpack.c.l.b16 %v441
      %v1254 = vunpack.c.l.b16 %v442
      %v1255 = vunpack.c.l.b16 %v443
      %v1256 = vunpack.c.l.b16 %v444
      %v1257 = vunpack.c.l.b16 %v445
      %v1258 = vunpack.c.l.b16 %v446
      %v1259 = vunpack.c.l.b16 %v447
      %v1260 = vunpack.c.l.b16 %v448
      %v1261 = vunpack.c.l.b16 %v449
      %v1262 = vunpack.c.l.b16 %v450
      %v1263 = vunpack.c.l.b16 %v451
      %v1264 = vunpack.c.l.b16 %v452
      %v1265 = vunpack.c.l.b16 %v453
      %v1266 = vunpack.c.l.b16 %v454
      %v1267 = vunpack.c.l.b16 %v455
      %v1268 = vunpack.c.l.b16 %v456
      %v1269 = vunpack.c.l.b16 %v457
      %v1270 = vunpack.c.l.b16 %v458
      %v1271 = vunpack.c.l.b16 %v459
      %v1272 = vunpack.c.l.b16 %v460
      %v1273 = vunpack.c.l.b16 %v461
      %v1274 = vunpack.c.l.b16 %v462
      %v1275 = vunpack.c.l.b16 %v463
      %v1276 = vunpack.c.l.b16 %v464
      %v1277 = vunpack.c.l.b16 %v465
      %v1278 = vunpack.c.l.b16 %v466
      %v1279 = vunpack.c.l.b16 %v467
      %v1280 = vunpack.c.l.b16 %v468
      %v1281 = vunpack.c.l.b16 %v469
      %v1282 = vunpack.c.l.b16 %v470
      %v1283 = vunpack.c.l.b16 %v471
      %v1284 = vunpack.c.l.b16 %v472
      %v1285 = vunpack.c.l.b16 %v473
      %v1286 = vunpack.c.l.b16 %v474
      %v1287 = vunpack.c.l.b16 %v475
      %v1288 = vunpack.c.l.b16 %v476
      %v1289 = vunpack.c.l.b16 %v477
      %v1290 = vunpack.c.l.b16 %v478
      %v1291 = vunpack.c.l.b16 %v479
      %v1292 = vunpack.c.l.b16 %v480
      %v1293 = vunpack.c.l.b16 %v481
      %v1294 = vunpack.c.l.b16 %v482
      %v1295 = vunpack.c.l.b16 %v483
      %v1296 = vunpack.c.l.b16 %v484
      %v1297 = vunpack.c.l.b16 %v485
      %v1298 = vunpack.c.l.b16 %v486
      %v1299 = vunpack.c.l.b16 %v487
      %v1300 = vunpack.c.l.b16 %v488
      %v1301 = vunpack.c.l.b16 %v489
      %v1302 = vunpack.c.l.b16 %v490
      %v1303 = vunpack.c.l.b16 %v491
      %v1304 = vunpack.c.l.b16 %v492
      %v1305 = vunpack.c.l.b16 %v493
      %v1306 = vunpack.c.l.b16 %v494
      %v1307 = vunpack.c.l.b16 %v495
      %v1308 = vunpack.c.l.b16 %v496
      %v1309 = vunpack.c.l.b16 %v497
      %v1310 = vunpack.c.l.b16 %v498
      %v1311 = vunpack.c.l.b16 %v499
      %v1312 = vunpack.c.l.b16 %v500
      %v1313 = vunpack.c.l.b16 %v501
      %v1314 = vunpack.c.l.b16 %v502
      %v1315 = vunpack.c.l.b16 %v503
      %v1316 = vunpack.c.l.b16 %v504
      %v1317 = vunpack.c.l.b16 %v505
      %v1318 = vunpack.c.l.b16 %v506
      %v1319 = vunpack.c.l.b16 %v507
      %v1320 = vunpack.c.l.b16 %v508
      %v1321 = vunpack.c.l.b16 %v509
      %v1322 = vunpack.c.l.b16 %v510
      %v1323 = vunpack.c.l.b16 %v511
      %v1324 = vunpack.c.l.b16 %v512
      %v1325 = vunpack.c.l.b16 %v513
      %v1326 = vunpack.c.l.b16 %v514
      %v1327 = vunpack.c.l.b16 %v515
      %v1328 = vunpack.c.l.b16 %v516
      %v1329 = vunpack.c.l.b16 %v517
      %v1330 = vunpack.c.l.b16 %v518
      %v1331 = vunpack.c.l.b16 %v519
      %v1332 = vunpack.c.l.b16 %v520
      %v1333 = vunpack.c.l.b16 %v521
      %v1334 = vunpack.c.l.b16 %v522
      %v1335 = vunpack.c.l.b16 %v523
      %v1336 = vunpack.c.l.b16 %v524
      %v1337 = vunpack.c.l.b16 %v525
      %v1338 = vunpack.c.l.b16 %v526
      %v1339 = vunpack.c.l.b16 %v527
      %v1340 = vunpack.c.l.b16 %v528
      %v1341 = vunpack.c.l.b16 %v529
      %v1342 = vunpack.c.l.b16 %v530
      %v1343 = vunpack.c.l.b16 %v531
      %v1344 = vunpack.c.l.b16 %v532
      %v1345 = vunpack.c.l.b16 %v533
      %v1346 = vunpack.c.l.b16 %v534
      %v1347 = vunpack.c.l.b16 %v535
      %v1348 = vunpack.c.l.b16 %v536
      %v1349 = vunpack.c.l.b16 %v537
      %v1350 = vunpack.c.l.b16 %v538
      %v1351 = vunpack.c.l.b16 %v539
      %v1352 = vunpack.c.l.b16 %v540
      %v1353 = vunpack.c.l.b16 %v541
      %v1354 = vunpack.c.l.b16 %v542
      %v1355 = vunpack.c.l.b16 %v543
      %v1356 = vunpack.c.l.b16 %v544
      %v1357 = vunpack.c.l.b16 %v545
      %v1358 = vunpack.c.l.b16 %v546
      %v1359 = vunpack.c.l.b16 %v547
      %v1360 = vunpack.c.l.b16 %v548
      %v1361 = vunpack.c.l.b16 %v549
      %v1362 = vunpack.c.l.b16 %v550
      %v1363 = vunpack.c.l.b16 %v551
      %v1364 = vunpack.c.l.b16 %v552
      %v1365 = vunpack.c.l.b16 %v553
      %v1366 = vunpack.c.l.b16 %v554
      %v1367 = vunpack.c.l.b16 %v555
      %v1368 = vunpack.c.l.b16 %v556
      %v1369 = vunpack.c.l.b16 %v557
      %v1370 = vunpack.c.l.b16 %v558
      %v1371 = vunpack.c.l.b16 %v559
      %v1372 = vunpack.c.l.b16 %v560
      %v1373 = vunpack.c.l.b16 %v561
      %v1374 = vunpack.c.l.b16 %v562
      %v1375 = vunpack.c.l.b16 %v563
      %v1376 = vunpack.c.l.b16 %v564
      %v1377 = vunpack.c.l.b16 %v565
      %v1378 = vunpack.c.l.b16 %v566
      %v1379 = vunpack.c.l.b16 %v567
      %v1380 = vunpack.c.l.b16 %v568
      %v1381 = vunpack.c.l.b16 %v569
      %v1382 = vunpack.c.l.b16 %v570
      %v1383 = vunpack.c.l.b16 %v571
      %v1384 = vunpack.c.l.b16 %v572
      %v1385 = vunpack.c.l.b16 %v573
      %v1386 = vunpack.c.l.b16 %v574
      %v1387 = vunpack.c.l.b16 %v575
      %v1388 = vunpack.c.l.b16 %v576
      %v1389 = vunpack.c.l.b16 %v577
      %v1390 = vunpack.c.l.b16 %v578
      %v1391 = vunpack.c.l.b16 %v579
      %v1392 = vunpack.c.l.b16 %v580
      %v1393 = vunpack.c.l.b16 %v581
      %v1394 = vunpack.c.l.b16 %v582
      %v1395 = vunpack.c.l.b16 %v583
      %v1396 = vunpack.c.l.b16 %v584
      %v1397 = vunpack.c.l.b16 %v585
      %v1398 = vunpack.c.l.b16 %v586
      %v1399 = vpack.c.b16 %v1192, %v1191
      %v1400 = vpack.c.b16 %v1194, %v1193
      %v1401 = vpack.c.b16 %v1196, %v1195
      %v1402 = vpack.c.b16 %v1198, %v1197
      %v1403 = vpack.c.b16 %v1200, %v1199
      %v1404 = vpack.c.b16 %v1202, %v1201
      %v1405 = vpack.c.b16 %v1204, %v1203
      %v1406 = vpack.c.b16 %v1206, %v1205
      %v1407 = vpack.c.b16 %v1208, %v1207
      %v1408 = vpack.c.b16 %v1210, %v1209
      %v1409 = vpack.c.b16 %v1212, %v1211
      %v1410 = vpack.c.b16 %v1214, %v1213
      %v1411 = vpack.c.b16 %v1216, %v1215
      %v1412 = vpack.c.b16 %v1218, %v1217
      %v1413 = vpack.c.b16 %v1220, %v1219
      %v1414 = vpack.c.b16 %v1222, %v1221
      %v1415 = vpack.c.b16 %v1224, %v1223
      %v1416 = vpack.c.b16 %v1226, %v1225
      %v1417 = vpack.c.b16 %v1228, %v1227
      %v1418 = vpack.c.b16 %v1230, %v1229
      %v1419 = vpack.c.b16 %v1232, %v1231
      %v1420 = vpack.c.b16 %v1234, %v1233
      %v1421 = vpack.c.b16 %v1236, %v1235
      %v1422 = vpack.c.b16 %v1238, %v1237
      %v1423 = vpack.c.b16 %v1240, %v1239
      %v1424 = vpack.c.b16 %v1242, %v1241
      %v1425 = vpack.c.b16 %v1244, %v1243
      %v1426 = vpack.c.b16 %v1246, %v1245
      %v1427 = vpack.c.b16 %v1248, %v1247
      %v1428 = vpack.c.b16 %v1250, %v1249
      %v1429 = vpack.c.b16 %v1252, %v1251
      %v1430 = vpack.c.b16 %v1254, %v1253
      %v1431 = vpack.c.b16 %v1256, %v1255
      %v1432 = vpack.c.b16 %v1258, %v1257
      %v1433 = vpack.c.b16 %v1260, %v1259
      %v1434 = vpack.c.b16 %v1262, %v1261
      %v1435 = vpack.c.b16 %v1264, %v1263
      %v1436 = vpack.c.b16 %v1266, %v1265
      %v1437 = vpack.c.b16 %v1268, %v1267
      %v1438 = vpack.c.b16 %v1270, %v1269
      %v1439 = vpack.c.b16 %v1272, %v1271
      %v1440 = vpack.c.b16 %v1274, %v1273
      %v1441 = vpack.c.b16 %v1276, %v1275
      %v1442 = vpack.c.b16 %v1278, %v1277
      %v1443 = vpack.c.b16 %v1280, %v1279
      %v1444 = vpack.c.b16 %v1282, %v1281
      %v1445 = vpack.c.b16 %v1284, %v1283
      %v1446 = vpack.c.b16 %v1286, %v1285
      %v1447 = vpack.c.b16 %v1288, %v1287
      %v1448 = vpack.c.b16 %v1290, %v1289
      %v1449 = vpack.c.b16 %v1292, %v1291
      %v1450 = vpack.c.b16 %v1294, %v1293
      %v1451 = vpack.c.b16 %v1296, %v1295
      %v1452 = vpack.c.b16 %v1298, %v1297
      %v1453 = vpack.c.b16 %v1300, %v1299
      %v1454 = vpack.c.b16 %v1302, %v1301
      %v1455 = vpack.c.b16 %v1304, %v1303
      %v1456 = vpack.c.b16 %v1306, %v1305
      %v1457 = vpack.c.b16 %v1308, %v1307
      %v1458 = vpack.c.b16 %v1310, %v1309
      %v1459 = vpack.c.b16 %v1312, %v1311
      %v1460 = vpack.c.b16 %v1314, %v1313
      %v1461 = vpack.c.b16 %v1316, %v1315
      %v1462 = vpack.c.b16 %v1318, %v1317
      %v1463 = vpack.c.b16 %v1320, %v1319
      %v1464 = vpack.c.b16 %v1322, %v1321
      %v1465 = vpack.c.b16 %v1324, %v1323
      %v1466 = vpack.c.b16 %v1326, %v1325
      %v1467 = vpack.c.b16 %v1328, %v1327
      %v1468 = vpack.c.b16 %v1330, %v1329
      %v1469 = vpack.c.b16 %v1332, %v1331
      %v1470 = vpack.c.b16 %v1334, %v1333
      %v1471 = vpack.c.b16 %v1336, %v1335
      %v1472 = vpack.c.b16 %v1338, %v1337
      %v1473 = vpack.c.b16 %v1340, %v1339
      %v1474 = vpack.c.b16 %v1342, %v1341
      %v1475 = vpack.c.b16 %v1344, %v1343
      %v1476 = vpack.c.b16 %v1346, %v1345
      %v1477 = vpack.c.b16 %v1348, %v1347
      %v1478 = vpack.c.b16 %v1350, %v1349
      %v1479 = vpack.c.b16 %v1352, %v1351
      %v1480 = vpack.c.b16 %v1354, %v1353
      %v1481 = vpack.c.b16 %v1356, %v1355
      %v1482 = vpack.c.b16 %v1358, %v1357
      %v1483 = vpack.c.b16 %v1360, %v1359
      %v1484 = vpack.c.b16 %v1362, %v1361
      %v1485 = vpack.c.b16 %v1364, %v1363
      %v1486 = vpack.c.b16 %v1366, %v1365
      %v1487 = vpack.c.b16 %v1368, %v1367
      %v1488 = vpack.c.b16 %v1370, %v1369
      %v1489 = vpack.c.b16 %v1372, %v1371
      %v1490 = vpack.c.b16 %v1374, %v1373
      %v1491 = vpack.c.b16 %v1376, %v1375
      %v1492 = vpack.c.b16 %v1378, %v1377
      %v1493 = vpack.c.b16 %v1380, %v1379
      %v1494 = vpack.c.b16 %v1382, %v1381
      %v1495 = vpack.c.b16 %v1384, %v1383
      %v1496 = vpack.c.b16 %v1386, %v1385
      %v1497 = vpack.c.b16 %v1388, %v1387
      %v1498 = vpack.c.b16 %v1390, %v1389
      %v1499 = vpack.c.b16 %v1392, %v1391
      %v1500 = vpack.c.b16 %v1394, %v1393
      %v1501 = vpack.c.b16 %v1396, %v1395
      %v1502 = vpack.c.b16 %v1398, %v1397
      %1607 = vmatpush.bf16.msra.mxu0 %v1406
      %1608 = vmatpush.bf16.msra.mxu0 %v1405
      %1609 = vmatpush.bf16.msra.mxu0 %v1404
      %1610 = vmatpush.bf16.msra.mxu0 %v1403
      %1611 = vmatpush.bf16.msra.mxu0 %v1402
      %1612 = vmatpush.bf16.msra.mxu0 %v1401
      %1613 = vmatpush.bf16.msra.mxu0 %v1400
      %1614 = vmatpush.bf16.msra.mxu0 %v1399
      %1615 = vmatmul.bf16.gmra.mxu0 %v827
      %v1616 = vpop.f32.mrf.mxu0
      %v1617 = vadd.f32 0.0, %v1616
      %v1618 = vpop.f32.mrf.mxu0
      %v1619 = vadd.f32 0.0, %v1618
      %1620 = vmatmul.bf16.gmra.mxu0 %v840
      %v1621 = vpop.f32.mrf.mxu0
      %v1622 = vadd.f32 0.0, %v1621
      %v1623 = vpop.f32.mrf.mxu0
      %v1624 = vadd.f32 0.0, %v1623
      %1625 = vmatmul.bf16.gmra.mxu0 %v853
      %v1626 = vpop.f32.mrf.mxu0
      %v1627 = vadd.f32 0.0, %v1626
      %v1628 = vpop.f32.mrf.mxu0
      %v1629 = vadd.f32 0.0, %v1628
      %1630 = vmatmul.bf16.gmra.mxu0 %v866
      %v1631 = vpop.f32.mrf.mxu0
      %v1632 = vadd.f32 0.0, %v1631
      %v1633 = vpop.f32.mrf.mxu0
      %v1634 = vadd.f32 0.0, %v1633
      %1635 = vmatmul.bf16.gmra.mxu0 %v879
      %v1636 = vpop.f32.mrf.mxu0
      %v1637 = vadd.f32 0.0, %v1636
      %v1638 = vpop.f32.mrf.mxu0
      %v1639 = vadd.f32 0.0, %v1638
      %1640 = vmatmul.bf16.gmra.mxu0 %v892
      %v1641 = vpop.f32.mrf.mxu0
      %v1642 = vadd.f32 0.0, %v1641
      %v1643 = vpop.f32.mrf.mxu0
      %v1644 = vadd.f32 0.0, %v1643
      %1645 = vdwg.mxu0
      %1646 = vmatpush.bf16.msra.mxu0 %v1414
      %1647 = vmatpush.bf16.msra.mxu0 %v1413
      %1648 = vmatpush.bf16.msra.mxu0 %v1412
      %1649 = vmatpush.bf16.msra.mxu0 %v1411
      %1650 = vmatpush.bf16.msra.mxu0 %v1410
      %1651 = vmatpush.bf16.msra.mxu0 %v1409
      %1652 = vmatpush.bf16.msra.mxu0 %v1408
      %1653 = vmatpush.bf16.msra.mxu0 %v1407
      %1654 = vmatmul.bf16.gmra.mxu0 %v828
      %v1655 = vpop.f32.mrf.mxu0
      %v1656 = vadd.f32 %v1617, %v1655
      %v1657 = vpop.f32.mrf.mxu0
      %v1658 = vadd.f32 %v1619, %v1657
      %1659 = vmatmul.bf16.gmra.mxu0 %v841
      %v1660 = vpop.f32.mrf.mxu0
      %v1661 = vadd.f32 %v1622, %v1660
      %v1662 = vpop.f32.mrf.mxu0
      %v1663 = vadd.f32 %v1624, %v1662
      %1664 = vmatmul.bf16.gmra.mxu0 %v854
      %v1665 = vpop.f32.mrf.mxu0
      %v1666 = vadd.f32 %v1627, %v1665
      %v1667 = vpop.f32.mrf.mxu0
      %v1668 = vadd.f32 %v1629, %v1667
      %1669 = vmatmul.bf16.gmra.mxu0 %v867
      %v1670 = vpop.f32.mrf.mxu0
      %v1671 = vadd.f32 %v1632, %v1670
      %v1672 = vpop.f32.mrf.mxu0
      %v1673 = vadd.f32 %v1634, %v1672
      %1674 = vmatmul.bf16.gmra.mxu0 %v880
      %v1675 = vpop.f32.mrf.mxu0
      %v1676 = vadd.f32 %v1637, %v1675
      %v1677 = vpop.f32.mrf.mxu0
      %v1678 = vadd.f32 %v1639, %v1677
      %1679 = vmatmul.bf16.gmra.mxu0 %v893
      %v1680 = vpop.f32.mrf.mxu0
      %v1681 = vadd.f32 %v1642, %v1680
      %v1682 = vpop.f32.mrf.mxu0
      %v1683 = vadd.f32 %v1644, %v1682
      %1684 = vdwg.mxu0
      %1685 = vmatpush.bf16.msra.mxu0 %v1422
      %1686 = vmatpush.bf16.msra.mxu0 %v1421
      %1687 = vmatpush.bf16.msra.mxu0 %v1420
      %1688 = vmatpush.bf16.msra.mxu0 %v1419
      %1689 = vmatpush.bf16.msra.mxu0 %v1418
      %1690 = vmatpush.bf16.msra.mxu0 %v1417
      %1691 = vmatpush.bf16.msra.mxu0 %v1416
      %1692 = vmatpush.bf16.msra.mxu0 %v1415
      %1693 = vmatmul.bf16.gmra.mxu0 %v829
      %v1694 = vpop.f32.mrf.mxu0
      %v1695 = vadd.f32 %v1656, %v1694
      %v1696 = vpop.f32.mrf.mxu0
      %v1697 = vadd.f32 %v1658, %v1696
      %1698 = vmatmul.bf16.gmra.mxu0 %v842
      %v1699 = vpop.f32.mrf.mxu0
      %v1700 = vadd.f32 %v1661, %v1699
      %v1701 = vpop.f32.mrf.mxu0
      %v1702 = vadd.f32 %v1663, %v1701
      %1703 = vmatmul.bf16.gmra.mxu0 %v855
      %v1704 = vpop.f32.mrf.mxu0
      %v1705 = vadd.f32 %v1666, %v1704
      %v1706 = vpop.f32.mrf.mxu0
      %v1707 = vadd.f32 %v1668, %v1706
      %1708 = vmatmul.bf16.gmra.mxu0 %v868
      %v1709 = vpop.f32.mrf.mxu0
      %v1710 = vadd.f32 %v1671, %v1709
      %v1711 = vpop.f32.mrf.mxu0
      %v1712 = vadd.f32 %v1673, %v1711
      %1713 = vmatmul.bf16.gmra.mxu0 %v881
      %v1714 = vpop.f32.mrf.mxu0
      %v1715 = vadd.f32 %v1676, %v1714
      %v1716 = vpop.f32.mrf.mxu0
      %v1717 = vadd.f32 %v1678, %v1716
      %1718 = vmatmul.bf16.gmra.mxu0 %v894
      %v1719 = vpop.f32.mrf.mxu0
      %v1720 = vadd.f32 %v1681, %v1719
      %v1721 = vpop.f32.mrf.mxu0
      %v1722 = vadd.f32 %v1683, %v1721
      %1723 = vdwg.mxu0
      %1724 = vmatpush.bf16.msra.mxu0 %v1430
      %1725 = vmatpush.bf16.msra.mxu0 %v1429
      %1726 = vmatpush.bf16.msra.mxu0 %v1428
      %1727 = vmatpush.bf16.msra.mxu0 %v1427
      %1728 = vmatpush.bf16.msra.mxu0 %v1426
      %1729 = vmatpush.bf16.msra.mxu0 %v1425
      %1730 = vmatpush.bf16.msra.mxu0 %v1424
      %1731 = vmatpush.bf16.msra.mxu0 %v1423
      %1732 = vmatmul.bf16.gmra.mxu0 %v830
      %v1733 = vpop.f32.mrf.mxu0
      %v1734 = vadd.f32 %v1695, %v1733
      %v1735 = vpop.f32.mrf.mxu0
      %v1736 = vadd.f32 %v1697, %v1735
      %1737 = vmatmul.bf16.gmra.mxu0 %v843
      %v1738 = vpop.f32.mrf.mxu0
      %v1739 = vadd.f32 %v1700, %v1738
      %v1740 = vpop.f32.mrf.mxu0
      %v1741 = vadd.f32 %v1702, %v1740
      %1742 = vmatmul.bf16.gmra.mxu0 %v856
      %v1743 = vpop.f32.mrf.mxu0
      %v1744 = vadd.f32 %v1705, %v1743
      %v1745 = vpop.f32.mrf.mxu0
      %v1746 = vadd.f32 %v1707, %v1745
      %1747 = vmatmul.bf16.gmra.mxu0 %v869
      %v1748 = vpop.f32.mrf.mxu0
      %v1749 = vadd.f32 %v1710, %v1748
      %v1750 = vpop.f32.mrf.mxu0
      %v1751 = vadd.f32 %v1712, %v1750
      %1752 = vmatmul.bf16.gmra.mxu0 %v882
      %v1753 = vpop.f32.mrf.mxu0
      %v1754 = vadd.f32 %v1715, %v1753
      %v1755 = vpop.f32.mrf.mxu0
      %v1756 = vadd.f32 %v1717, %v1755
      %1757 = vmatmul.bf16.gmra.mxu0 %v895
      %v1758 = vpop.f32.mrf.mxu0
      %v1759 = vadd.f32 %v1720, %v1758
      %v1760 = vpop.f32.mrf.mxu0
      %v1761 = vadd.f32 %v1722, %v1760
      %1762 = vdwg.mxu0
      %1763 = vmatpush.bf16.msra.mxu0 %v1438
      %1764 = vmatpush.bf16.msra.mxu0 %v1437
      %1765 = vmatpush.bf16.msra.mxu0 %v1436
      %1766 = vmatpush.bf16.msra.mxu0 %v1435
      %1767 = vmatpush.bf16.msra.mxu0 %v1434
      %1768 = vmatpush.bf16.msra.mxu0 %v1433
      %1769 = vmatpush.bf16.msra.mxu0 %v1432
      %1770 = vmatpush.bf16.msra.mxu0 %v1431
      %1771 = vmatmul.bf16.gmra.mxu0 %v831
      %v1772 = vpop.f32.mrf.mxu0
      %v1773 = vadd.f32 %v1734, %v1772
      %v1774 = vpop.f32.mrf.mxu0
      %v1775 = vadd.f32 %v1736, %v1774
      %1776 = vmatmul.bf16.gmra.mxu0 %v844
      %v1777 = vpop.f32.mrf.mxu0
      %v1778 = vadd.f32 %v1739, %v1777
      %v1779 = vpop.f32.mrf.mxu0
      %v1780 = vadd.f32 %v1741, %v1779
      %1781 = vmatmul.bf16.gmra.mxu0 %v857
      %v1782 = vpop.f32.mrf.mxu0
      %v1783 = vadd.f32 %v1744, %v1782
      %v1784 = vpop.f32.mrf.mxu0
      %v1785 = vadd.f32 %v1746, %v1784
      %1786 = vmatmul.bf16.gmra.mxu0 %v870
      %v1787 = vpop.f32.mrf.mxu0
      %v1788 = vadd.f32 %v1749, %v1787
      %v1789 = vpop.f32.mrf.mxu0
      %v1790 = vadd.f32 %v1751, %v1789
      %1791 = vmatmul.bf16.gmra.mxu0 %v883
      %v1792 = vpop.f32.mrf.mxu0
      %v1793 = vadd.f32 %v1754, %v1792
      %v1794 = vpop.f32.mrf.mxu0
      %v1795 = vadd.f32 %v1756, %v1794
      %1796 = vmatmul.bf16.gmra.mxu0 %v896
      %v1797 = vpop.f32.mrf.mxu0
      %v1798 = vadd.f32 %v1759, %v1797
      %v1799 = vpop.f32.mrf.mxu0
      %v1800 = vadd.f32 %v1761, %v1799
      %1801 = vdwg.mxu0
      %1802 = vmatpush.bf16.msra.mxu0 %v1446
      %1803 = vmatpush.bf16.msra.mxu0 %v1445
      %1804 = vmatpush.bf16.msra.mxu0 %v1444
      %1805 = vmatpush.bf16.msra.mxu0 %v1443
      %1806 = vmatpush.bf16.msra.mxu0 %v1442
      %1807 = vmatpush.bf16.msra.mxu0 %v1441
      %1808 = vmatpush.bf16.msra.mxu0 %v1440
      %1809 = vmatpush.bf16.msra.mxu0 %v1439
      %1810 = vmatmul.bf16.gmra.mxu0 %v832
      %v1811 = vpop.f32.mrf.mxu0
      %v1812 = vadd.f32 %v1773, %v1811
      %v1813 = vpop.f32.mrf.mxu0
      %v1814 = vadd.f32 %v1775, %v1813
      %1815 = vmatmul.bf16.gmra.mxu0 %v845
      %v1816 = vpop.f32.mrf.mxu0
      %v1817 = vadd.f32 %v1778, %v1816
      %v1818 = vpop.f32.mrf.mxu0
      %v1819 = vadd.f32 %v1780, %v1818
      %1820 = vmatmul.bf16.gmra.mxu0 %v858
      %v1821 = vpop.f32.mrf.mxu0
      %v1822 = vadd.f32 %v1783, %v1821
      %v1823 = vpop.f32.mrf.mxu0
      %v1824 = vadd.f32 %v1785, %v1823
      %1825 = vmatmul.bf16.gmra.mxu0 %v871
      %v1826 = vpop.f32.mrf.mxu0
      %v1827 = vadd.f32 %v1788, %v1826
      %v1828 = vpop.f32.mrf.mxu0
      %v1829 = vadd.f32 %v1790, %v1828
      %1830 = vmatmul.bf16.gmra.mxu0 %v884
      %v1831 = vpop.f32.mrf.mxu0
      %v1832 = vadd.f32 %v1793, %v1831
      %v1833 = vpop.f32.mrf.mxu0
      %v1834 = vadd.f32 %v1795, %v1833
      %1835 = vmatmul.bf16.gmra.mxu0 %v897
      %v1836 = vpop.f32.mrf.mxu0
      %v1837 = vadd.f32 %v1798, %v1836
      %v1838 = vpop.f32.mrf.mxu0
      %v1839 = vadd.f32 %v1800, %v1838
      %1840 = vdwg.mxu0
      %1841 = vmatpush.bf16.msra.mxu0 %v1454
      %1842 = vmatpush.bf16.msra.mxu0 %v1453
      %1843 = vmatpush.bf16.msra.mxu0 %v1452
      %1844 = vmatpush.bf16.msra.mxu0 %v1451
      %1845 = vmatpush.bf16.msra.mxu0 %v1450
      %1846 = vmatpush.bf16.msra.mxu0 %v1449
      %1847 = vmatpush.bf16.msra.mxu0 %v1448
      %1848 = vmatpush.bf16.msra.mxu0 %v1447
      %1849 = vmatmul.bf16.gmra.mxu0 %v833
      %v1850 = vpop.f32.mrf.mxu0
      %v1851 = vadd.f32 %v1812, %v1850
      %v1852 = vpop.f32.mrf.mxu0
      %v1853 = vadd.f32 %v1814, %v1852
      %1854 = vmatmul.bf16.gmra.mxu0 %v846
      %v1855 = vpop.f32.mrf.mxu0
      %v1856 = vadd.f32 %v1817, %v1855
      %v1857 = vpop.f32.mrf.mxu0
      %v1858 = vadd.f32 %v1819, %v1857
      %1859 = vmatmul.bf16.gmra.mxu0 %v859
      %v1860 = vpop.f32.mrf.mxu0
      %v1861 = vadd.f32 %v1822, %v1860
      %v1862 = vpop.f32.mrf.mxu0
      %v1863 = vadd.f32 %v1824, %v1862
      %1864 = vmatmul.bf16.gmra.mxu0 %v872
      %v1865 = vpop.f32.mrf.mxu0
      %v1866 = vadd.f32 %v1827, %v1865
      %v1867 = vpop.f32.mrf.mxu0
      %v1868 = vadd.f32 %v1829, %v1867
      %1869 = vmatmul.bf16.gmra.mxu0 %v885
      %v1870 = vpop.f32.mrf.mxu0
      %v1871 = vadd.f32 %v1832, %v1870
      %v1872 = vpop.f32.mrf.mxu0
      %v1873 = vadd.f32 %v1834, %v1872
      %1874 = vmatmul.bf16.gmra.mxu0 %v898
      %v1875 = vpop.f32.mrf.mxu0
      %v1876 = vadd.f32 %v1837, %v1875
      %v1877 = vpop.f32.mrf.mxu0
      %v1878 = vadd.f32 %v1839, %v1877
      %1879 = vdwg.mxu0
      %1880 = vmatpush.bf16.msra.mxu0 %v1462
      %1881 = vmatpush.bf16.msra.mxu0 %v1461
      %1882 = vmatpush.bf16.msra.mxu0 %v1460
      %1883 = vmatpush.bf16.msra.mxu0 %v1459
      %1884 = vmatpush.bf16.msra.mxu0 %v1458
      %1885 = vmatpush.bf16.msra.mxu0 %v1457
      %1886 = vmatpush.bf16.msra.mxu0 %v1456
      %1887 = vmatpush.bf16.msra.mxu0 %v1455
      %1888 = vmatmul.bf16.gmra.mxu0 %v834
      %v1889 = vpop.f32.mrf.mxu0
      %v1890 = vadd.f32 %v1851, %v1889
      %v1891 = vpop.f32.mrf.mxu0
      %v1892 = vadd.f32 %v1853, %v1891
      %1893 = vmatmul.bf16.gmra.mxu0 %v847
      %v1894 = vpop.f32.mrf.mxu0
      %v1895 = vadd.f32 %v1856, %v1894
      %v1896 = vpop.f32.mrf.mxu0
      %v1897 = vadd.f32 %v1858, %v1896
      %1898 = vmatmul.bf16.gmra.mxu0 %v860
      %v1899 = vpop.f32.mrf.mxu0
      %v1900 = vadd.f32 %v1861, %v1899
      %v1901 = vpop.f32.mrf.mxu0
      %v1902 = vadd.f32 %v1863, %v1901
      %1903 = vmatmul.bf16.gmra.mxu0 %v873
      %v1904 = vpop.f32.mrf.mxu0
      %v1905 = vadd.f32 %v1866, %v1904
      %v1906 = vpop.f32.mrf.mxu0
      %v1907 = vadd.f32 %v1868, %v1906
      %1908 = vmatmul.bf16.gmra.mxu0 %v886
      %v1909 = vpop.f32.mrf.mxu0
      %v1910 = vadd.f32 %v1871, %v1909
      %v1911 = vpop.f32.mrf.mxu0
      %v1912 = vadd.f32 %v1873, %v1911
      %1913 = vmatmul.bf16.gmra.mxu0 %v899
      %v1914 = vpop.f32.mrf.mxu0
      %v1915 = vadd.f32 %v1876, %v1914
      %v1916 = vpop.f32.mrf.mxu0
      %v1917 = vadd.f32 %v1878, %v1916
      %1918 = vdwg.mxu0
      %1919 = vmatpush.bf16.msra.mxu0 %v1470
      %1920 = vmatpush.bf16.msra.mxu0 %v1469
      %1921 = vmatpush.bf16.msra.mxu0 %v1468
      %1922 = vmatpush.bf16.msra.mxu0 %v1467
      %1923 = vmatpush.bf16.msra.mxu0 %v1466
      %1924 = vmatpush.bf16.msra.mxu0 %v1465
      %1925 = vmatpush.bf16.msra.mxu0 %v1464
      %1926 = vmatpush.bf16.msra.mxu0 %v1463
      %1927 = vmatmul.bf16.gmra.mxu0 %v835
      %v1928 = vpop.f32.mrf.mxu0
      %v1929 = vadd.f32 %v1890, %v1928
      %v1930 = vpop.f32.mrf.mxu0
      %v1931 = vadd.f32 %v1892, %v1930
      %1932 = vmatmul.bf16.gmra.mxu0 %v848
      %v1933 = vpop.f32.mrf.mxu0
      %v1934 = vadd.f32 %v1895, %v1933
      %v1935 = vpop.f32.mrf.mxu0
      %v1936 = vadd.f32 %v1897, %v1935
      %1937 = vmatmul.bf16.gmra.mxu0 %v861
      %v1938 = vpop.f32.mrf.mxu0
      %v1939 = vadd.f32 %v1900, %v1938
      %v1940 = vpop.f32.mrf.mxu0
      %v1941 = vadd.f32 %v1902, %v1940
      %1942 = vmatmul.bf16.gmra.mxu0 %v874
      %v1943 = vpop.f32.mrf.mxu0
      %v1944 = vadd.f32 %v1905, %v1943
      %v1945 = vpop.f32.mrf.mxu0
      %v1946 = vadd.f32 %v1907, %v1945
      %1947 = vmatmul.bf16.gmra.mxu0 %v887
      %v1948 = vpop.f32.mrf.mxu0
      %v1949 = vadd.f32 %v1910, %v1948
      %v1950 = vpop.f32.mrf.mxu0
      %v1951 = vadd.f32 %v1912, %v1950
      %1952 = vmatmul.bf16.gmra.mxu0 %v900
      %v1953 = vpop.f32.mrf.mxu0
      %v1954 = vadd.f32 %v1915, %v1953
      %v1955 = vpop.f32.mrf.mxu0
      %v1956 = vadd.f32 %v1917, %v1955
      %1957 = vdwg.mxu0
      %1958 = vmatpush.bf16.msra.mxu0 %v1478
      %1959 = vmatpush.bf16.msra.mxu0 %v1477
      %1960 = vmatpush.bf16.msra.mxu0 %v1476
      %1961 = vmatpush.bf16.msra.mxu0 %v1475
      %1962 = vmatpush.bf16.msra.mxu0 %v1474
      %1963 = vmatpush.bf16.msra.mxu0 %v1473
      %1964 = vmatpush.bf16.msra.mxu0 %v1472
      %1965 = vmatpush.bf16.msra.mxu0 %v1471
      %1966 = vmatmul.bf16.gmra.mxu0 %v836
      %v1967 = vpop.f32.mrf.mxu0
      %v1968 = vadd.f32 %v1929, %v1967
      %v1969 = vpop.f32.mrf.mxu0
      %v1970 = vadd.f32 %v1931, %v1969
      %1971 = vmatmul.bf16.gmra.mxu0 %v849
      %v1972 = vpop.f32.mrf.mxu0
      %v1973 = vadd.f32 %v1934, %v1972
      %v1974 = vpop.f32.mrf.mxu0
      %v1975 = vadd.f32 %v1936, %v1974
      %1976 = vmatmul.bf16.gmra.mxu0 %v862
      %v1977 = vpop.f32.mrf.mxu0
      %v1978 = vadd.f32 %v1939, %v1977
      %v1979 = vpop.f32.mrf.mxu0
      %v1980 = vadd.f32 %v1941, %v1979
      %1981 = vmatmul.bf16.gmra.mxu0 %v875
      %v1982 = vpop.f32.mrf.mxu0
      %v1983 = vadd.f32 %v1944, %v1982
      %v1984 = vpop.f32.mrf.mxu0
      %v1985 = vadd.f32 %v1946, %v1984
      %1986 = vmatmul.bf16.gmra.mxu0 %v888
      %v1987 = vpop.f32.mrf.mxu0
      %v1988 = vadd.f32 %v1949, %v1987
      %v1989 = vpop.f32.mrf.mxu0
      %v1990 = vadd.f32 %v1951, %v1989
      %1991 = vmatmul.bf16.gmra.mxu0 %v901
      %v1992 = vpop.f32.mrf.mxu0
      %v1993 = vadd.f32 %v1954, %v1992
      %v1994 = vpop.f32.mrf.mxu0
      %v1995 = vadd.f32 %v1956, %v1994
      %1996 = vdwg.mxu0
      %1997 = vmatpush.bf16.msra.mxu0 %v1486
      %1998 = vmatpush.bf16.msra.mxu0 %v1485
      %1999 = vmatpush.bf16.msra.mxu0 %v1484
      %2000 = vmatpush.bf16.msra.mxu0 %v1483
      %2001 = vmatpush.bf16.msra.mxu0 %v1482
      %2002 = vmatpush.bf16.msra.mxu0 %v1481
      %2003 = vmatpush.bf16.msra.mxu0 %v1480
      %2004 = vmatpush.bf16.msra.mxu0 %v1479
      %2005 = vmatmul.bf16.gmra.mxu0 %v837
      %v2006 = vpop.f32.mrf.mxu0
      %v2007 = vadd.f32 %v1968, %v2006
      %v2008 = vpop.f32.mrf.mxu0
      %v2009 = vadd.f32 %v1970, %v2008
      %2010 = vmatmul.bf16.gmra.mxu0 %v850
      %v2011 = vpop.f32.mrf.mxu0
      %v2012 = vadd.f32 %v1973, %v2011
      %v2013 = vpop.f32.mrf.mxu0
      %v2014 = vadd.f32 %v1975, %v2013
      %2015 = vmatmul.bf16.gmra.mxu0 %v863
      %v2016 = vpop.f32.mrf.mxu0
      %v2017 = vadd.f32 %v1978, %v2016
      %v2018 = vpop.f32.mrf.mxu0
      %v2019 = vadd.f32 %v1980, %v2018
      %2020 = vmatmul.bf16.gmra.mxu0 %v876
      %v2021 = vpop.f32.mrf.mxu0
      %v2022 = vadd.f32 %v1983, %v2021
      %v2023 = vpop.f32.mrf.mxu0
      %v2024 = vadd.f32 %v1985, %v2023
      %2025 = vmatmul.bf16.gmra.mxu0 %v889
      %v2026 = vpop.f32.mrf.mxu0
      %v2027 = vadd.f32 %v1988, %v2026
      %v2028 = vpop.f32.mrf.mxu0
      %v2029 = vadd.f32 %v1990, %v2028
      %2030 = vmatmul.bf16.gmra.mxu0 %v902
      %v2031 = vpop.f32.mrf.mxu0
      %v2032 = vadd.f32 %v1993, %v2031
      %v2033 = vpop.f32.mrf.mxu0
      %v2034 = vadd.f32 %v1995, %v2033
      %2035 = vdwg.mxu0
      %2036 = vmatpush.bf16.msra.mxu0 %v1494
      %2037 = vmatpush.bf16.msra.mxu0 %v1493
      %2038 = vmatpush.bf16.msra.mxu0 %v1492
      %2039 = vmatpush.bf16.msra.mxu0 %v1491
      %2040 = vmatpush.bf16.msra.mxu0 %v1490
      %2041 = vmatpush.bf16.msra.mxu0 %v1489
      %2042 = vmatpush.bf16.msra.mxu0 %v1488
      %2043 = vmatpush.bf16.msra.mxu0 %v1487
      %2044 = vmatmul.bf16.gmra.mxu0 %v838
      %v2045 = vpop.f32.mrf.mxu0
      %v2046 = vadd.f32 %v2007, %v2045
      %v2047 = vpop.f32.mrf.mxu0
      %v2048 = vadd.f32 %v2009, %v2047
      %2049 = vmatmul.bf16.gmra.mxu0 %v851
      %v2050 = vpop.f32.mrf.mxu0
      %v2051 = vadd.f32 %v2012, %v2050
      %v2052 = vpop.f32.mrf.mxu0
      %v2053 = vadd.f32 %v2014, %v2052
      %2054 = vmatmul.bf16.gmra.mxu0 %v864
      %v2055 = vpop.f32.mrf.mxu0
      %v2056 = vadd.f32 %v2017, %v2055
      %v2057 = vpop.f32.mrf.mxu0
      %v2058 = vadd.f32 %v2019, %v2057
      %2059 = vmatmul.bf16.gmra.mxu0 %v877
      %v2060 = vpop.f32.mrf.mxu0
      %v2061 = vadd.f32 %v2022, %v2060
      %v2062 = vpop.f32.mrf.mxu0
      %v2063 = vadd.f32 %v2024, %v2062
      %2064 = vmatmul.bf16.gmra.mxu0 %v890
      %v2065 = vpop.f32.mrf.mxu0
      %v2066 = vadd.f32 %v2027, %v2065
      %v2067 = vpop.f32.mrf.mxu0
      %v2068 = vadd.f32 %v2029, %v2067
      %2069 = vmatmul.bf16.gmra.mxu0 %v903
      %v2070 = vpop.f32.mrf.mxu0
      %v2071 = vadd.f32 %v2032, %v2070
      %v2072 = vpop.f32.mrf.mxu0
      %v2073 = vadd.f32 %v2034, %v2072
      %2074 = vdwg.mxu0
      %2075 = vmatpush.bf16.msra.mxu0 %v1502
      %2076 = vmatpush.bf16.msra.mxu0 %v1501
      %2077 = vmatpush.bf16.msra.mxu0 %v1500
      %2078 = vmatpush.bf16.msra.mxu0 %v1499
      %2079 = vmatpush.bf16.msra.mxu0 %v1498
      %2080 = vmatpush.bf16.msra.mxu0 %v1497
      %2081 = vmatpush.bf16.msra.mxu0 %v1496
      %2082 = vmatpush.bf16.msra.mxu0 %v1495
      %2083 = vmatmul.bf16.gmra.mxu0 %v839
      %v2084 = vpop.f32.mrf.mxu0
      %v2085 = vadd.f32 %v2046, %v2084
      %v2086 = vpop.f32.mrf.mxu0
      %v2087 = vadd.f32 %v2048, %v2086
      %2088 = vmatmul.bf16.gmra.mxu0 %v852
      %v2089 = vpop.f32.mrf.mxu0
      %v2090 = vadd.f32 %v2051, %v2089
      %v2091 = vpop.f32.mrf.mxu0
      %v2092 = vadd.f32 %v2053, %v2091
      %2093 = vmatmul.bf16.gmra.mxu0 %v865
      %v2094 = vpop.f32.mrf.mxu0
      %v2095 = vadd.f32 %v2056, %v2094
      %v2096 = vpop.f32.mrf.mxu0
      %v2097 = vadd.f32 %v2058, %v2096
      %2098 = vmatmul.bf16.gmra.mxu0 %v878
      %v2099 = vpop.f32.mrf.mxu0
      %v2100 = vadd.f32 %v2061, %v2099
      %v2101 = vpop.f32.mrf.mxu0
      %v2102 = vadd.f32 %v2063, %v2101
      %2103 = vmatmul.bf16.gmra.mxu0 %v891
      %v2104 = vpop.f32.mrf.mxu0
      %v2105 = vadd.f32 %v2066, %v2104
      %v2106 = vpop.f32.mrf.mxu0
      %v2107 = vadd.f32 %v2068, %v2106
      %2108 = vmatmul.bf16.gmra.mxu0 %v904
      %v2109 = vpop.f32.mrf.mxu0
      %v2110 = vadd.f32 %v2071, %v2109
      %v2111 = vpop.f32.mrf.mxu0
      %v2112 = vadd.f32 %v2073, %v2111
      %2113 = vdwg.mxu0
      %v2114 = vadd.f32 %v283, %v2085
      %v2115 = vadd.f32 %v284, %v2087
      %v2116 = vadd.f32 %v285, %v2090
      %v2117 = vadd.f32 %v286, %v2092
      %v2118 = vadd.f32 %v287, %v2095
      %v2119 = vadd.f32 %v288, %v2097
      %v2120 = vadd.f32 %v289, %v2100
      %v2121 = vadd.f32 %v290, %v2102
      %v2122 = vadd.f32 %v291, %v2105
      %v2123 = vadd.f32 %v292, %v2107
      %v2124 = vadd.f32 %v293, %v2110
      %v2125 = vadd.f32 %v294, %v2112
      %2126 = vst [vmem:[#allocation2] sm:$0xff] %v2114
      %2127 = vst [vmem:[#allocation2 + $0x8] sm:$0xff] %v2115
      %2128 = vst [vmem:[#allocation2 + $0x10] sm:$0xff] %v2116
      %2129 = vst [vmem:[#allocation2 + $0x18] sm:$0xff] %v2117
      %2130 = vst [vmem:[#allocation2 + $0x20] sm:$0xff] %v2118
      %2131 = vst [vmem:[#allocation2 + $0x28] sm:$0xff] %v2119
      %2132 = vst [vmem:[#allocation2 + $0x30] sm:$0xff] %v2120
      %2133 = vst [vmem:[#allocation2 + $0x38] sm:$0xff] %v2121
      %2134 = vst [vmem:[#allocation2 + $0x40] sm:$0xff] %v2122
      %2135 = vst [vmem:[#allocation2 + $0x48] sm:$0xff] %v2123
      %2136 = vst [vmem:[#allocation2 + $0x50] sm:$0xff] %v2124
      %2137 = vst [vmem:[#allocation2 + $0x58] sm:$0xff] %v2125
      // Predicated region
      $region37: #{feature_regression_forward.3} parent=31 // pred_check
        %p2138 = pneg %p267
      $region38: #{feature_regression_forward.3} parent=31 // pred_check_branch
        %2140 = sbr.rel (%p2138) target = $region40
      $region39: #{feature_regression_forward.3} parent=31 // pred_region
        %v2141 = vld [vmem:[#allocation2] sm:$0xff]
        %v2142 = vld [vmem:[#allocation2 + $0x8] sm:$0xff]
        %v2143 = vld [vmem:[#allocation2 + $0x10] sm:$0xff]
        %v2144 = vld [vmem:[#allocation2 + $0x18] sm:$0xff]
        %v2145 = vld [vmem:[#allocation2 + $0x20] sm:$0xff]
        %v2146 = vld [vmem:[#allocation2 + $0x28] sm:$0xff]
        %v2147 = vld [vmem:[#allocation2 + $0x30] sm:$0xff]
        %v2148 = vld [vmem:[#allocation2 + $0x38] sm:$0xff]
        %v2149 = vld [vmem:[#allocation2 + $0x40] sm:$0xff]
        %v2150 = vld [vmem:[#allocation2 + $0x48] sm:$0xff]
        %v2151 = vld [vmem:[#allocation2 + $0x50] sm:$0xff]
        %v2152 = vld [vmem:[#allocation2 + $0x58] sm:$0xff]
        %v2153 = vld [vmem:[%s257] sm:$0x1]
        %v2155 = vperm.slane %v2153, 0
        %v2157 = vadd.f32 %v2141, %v2155
        %v2158 = vadd.f32 %v2142, %v2155
        %v2159 = vadd.f32 %v2143, %v2155
        %v2160 = vadd.f32 %v2144, %v2155
        %v2161 = vadd.f32 %v2145, %v2155
        %v2162 = vadd.f32 %v2146, %v2155
        %v2163 = vadd.f32 %v2147, %v2155
        %v2164 = vadd.f32 %v2148, %v2155
        %v2165 = vadd.f32 %v2149, %v2155
        %v2166 = vadd.f32 %v2150, %v2155
        %v2167 = vadd.f32 %v2151, %v2155
        %v2168 = vadd.f32 %v2152, %v2155
        %v2169 = vmax.f32 %v2157, 0.0
        %v2170 = vmax.f32 %v2158, 0.0
        %v2171 = vmax.f32 %v2159, 0.0
        %v2172 = vmax.f32 %v2160, 0.0
        %v2173 = vmax.f32 %v2161, 0.0
        %v2174 = vmax.f32 %v2162, 0.0
        %v2175 = vmax.f32 %v2163, 0.0
        %v2176 = vmax.f32 %v2164, 0.0
        %v2177 = vmax.f32 %v2165, 0.0
        %v2178 = vmax.f32 %v2166, 0.0
        %v2179 = vmax.f32 %v2167, 0.0
        %v2180 = vmax.f32 %v2168, 0.0
        %v2181 = vpack.c.bf16 %v2169, %v2169
        %v2182 = vpack.c.bf16 %v2170, %v2170
        %v2183 = vpack.c.bf16 %v2171, %v2171
        %v2184 = vpack.c.bf16 %v2172, %v2172
        %v2185 = vpack.c.bf16 %v2173, %v2173
        %v2186 = vpack.c.bf16 %v2174, %v2174
        %v2187 = vpack.c.bf16 %v2175, %v2175
        %v2188 = vpack.c.bf16 %v2176, %v2176
        %v2189 = vpack.c.bf16 %v2177, %v2177
        %v2190 = vpack.c.bf16 %v2178, %v2178
        %v2191 = vpack.c.bf16 %v2179, %v2179
        %v2192 = vpack.c.bf16 %v2180, %v2180
        %2193 = vst [vmem:[%s265] sm:$0xf] %v2181
        %2194 = vst [vmem:[%s265 + $0x4] sm:$0xf] %v2182
        %2195 = vst [vmem:[%s265 + $0x8] sm:$0xf] %v2183
        %2196 = vst [vmem:[%s265 + $0xc] sm:$0xf] %v2184
        %2197 = vst [vmem:[%s265 + $0x10] sm:$0xf] %v2185
        %2198 = vst [vmem:[%s265 + $0x14] sm:$0xf] %v2186
        %2199 = vst [vmem:[%s265 + $0x18] sm:$0xf] %v2187
        %2200 = vst [vmem:[%s265 + $0x1c] sm:$0xf] %v2188
        %2201 = vst [vmem:[%s265 + $0x20] sm:$0xf] %v2189
        %2202 = vst [vmem:[%s265 + $0x24] sm:$0xf] %v2190
        %2203 = vst [vmem:[%s265 + $0x28] sm:$0xf] %v2191
        %2204 = vst [vmem:[%s265 + $0x2c] sm:$0xf] %v2192
      $region40: #{feature_regression_forward.3} parent=31 // pred_fallthru
        _
      %s2205 = smul.u32 12, %s19
      %p2206 = scmp.lt.s32.totalorder %s2205, 23
      %s2207 = scalar_select %p2206, %s2205, 23
      %p2208 = scmp.lt.s32.totalorder %s20, 0
      %s2209 = scalar_select %p2208, %s20, 0
      %s2210 = sadd.s32 %s2209, %s2207
      %s2211 = smul.addr %s2210, 4
      %s2212 = scalar_lea.vmem %s3, %s2211
      // Predicated region
      $region41: #{feature_regression_forward.3} parent=31 // pred_check
        %p2213 = pneg %p135
      $region42: #{feature_regression_forward.3} parent=31 // pred_check_branch
        %2215 = sbr.rel (%p2213) target = $region44
      $region43: #{feature_regression_forward.3} parent=31 // pred_region
        %s2216 = smul.u32 12, %s19
      $region44: #{feature_regression_forward.3} parent=31 // pred_fallthru
        _
    $region32: #{feature_regression_forward.3} parent=5 // pred_fallthru
      _
    %p2217 = scmp.le.s32.totalorder 2, %s9
    // Predicated region
    $region45: #{feature_regression_forward.3} parent=5 // pred_check
      %p2218 = pneg %p2217
    $region46: #{feature_regression_forward.3} parent=5 // pred_check_branch
      %2220 = sbr.rel (%p2218) target = $region48
    $region47: #{feature_regression_forward.3} parent=5 // pred_region
      %s2221 = ssub.s32 %s9, 2
      // Predicated region
      $region49: #{feature_regression_forward.3} parent=47 // pred_check
        %p2222 = pneg %p141
      $region50: #{feature_regression_forward.3} parent=47 // pred_check_branch
        %2224 = sbr.rel (%p2222) target = $region52
      $region51: #{feature_regression_forward.3} parent=47 // pred_region
        %s2225 = smul.u32 12, %s22
        %p2226 = scmp.lt.s32.totalorder %s2225, 23
        %s2227 = scalar_select %p2226, %s2225, 23
        %p2228 = scmp.lt.s32.totalorder %s23, 0
        %s2229 = scalar_select %p2228, %s23, 0
        %s2230 = sadd.s32 %s2229, %s2227
        %s2231 = smul.addr %s2230, 4
        %s2232 = scalar_lea.vmem %s3, %s2231
      $region52: #{feature_regression_forward.3} parent=47 // pred_fallthru
        _
    $region48: #{feature_regression_forward.3} parent=5 // pred_fallthru
      _
  $region6: #{feature_regression_forward.3} parent=0 // loop_footer
    %s13 = sadd.s32 1, %s9
  $region7: #{feature_regression_forward.3} parent=0 // loop_footer_branch
    %8 = sbr.rel target = $region3
  $region8: #{feature_regression_forward.3} parent=0 // loop_exit
    _

// kernel: feature_regression_forward.4
$region0: #{feature_regression_forward.4}
  #allocation0 [shape = 'u32[]', space=smem, size = 0x4, offset = 0x4, fixed_abs, tag = 'smem constant byte address 0x4 - core index']
  #allocation1 [shape = 'u32[72,128]{1,0:T(1,128)}', space=vmem, size = 0x9000, scoped, tag = 'internal scratch']
  #allocation2 [shape = 'f32[32,64]{1,0:T(8,128)}', space=vmem, size = 0x4000, scoped, tag = 'scratch operand']
  %s0 = inlined_call_operand.vmem [shape: bf16[64,3200], index: 0, kind: input, shape index: {}]
  %s1 = inlined_call_operand.vmem [shape: bf16[3200,64], index: 1, kind: input, shape index: {}]
  %s2 = inlined_call_operand.vmem [shape: f32[1,64], index: 2, kind: input, shape index: {}]
  %s3 = inlined_call_operand.vmem [shape: bf16[64,64], index: 3, kind: output, shape index: {}]
  %s4 = sld [smem:[#allocation0]]
  $region53: #{feature_regression_forward.4} parent=0
    _
  %s6 = ssub.s32 1, %s4
  %s7 = scalar_select 0, %s6, %s4
  loop: start=0, step=1, limit=4
  $region2: #{feature_regression_forward.4} parent=0 // loop_pre_header
    _
  $region3: #{feature_regression_forward.4} parent=0 // loop_header
    %s9 = sphi 0, %s13
    %p10 = scmp.ge.s32.totalorder %s9, 4
    %s16 = sphi 0, %s35
    %s17 = sphi 0, %s31
    %s18 = sphi 0, %s27
    %s19 = sphi 0, %s16
    %s20 = sphi 0, %s17
    %s21 = sphi 0, %s18
    %s22 = sphi 0, %s19
    %s23 = sphi 0, %s20
    %s24 = sphi 0, %s21
    %s40 = sphi 0, %s42
    %s43 = sphi 0, %s40
    %s44 = sphi 0, %s43
    %s60 = sphi 0, %s44
    %s68 = sphi 0, %s70
    %s71 = sphi 0, %s68
    %s72 = sphi 0, %s71
    %s88 = sphi 0, %s72
    %s94 = sphi 0, %s96
    %s97 = sphi 0, %s94
    %s98 = sphi 0, %s97
    %s114 = sphi 0, %s98
    %s122 = sphi 0, %s124
    %s125 = sphi 0, %s122
    %s126 = sphi 0, %s125
    %s142 = sphi 0, %s126
  $region4: #{feature_regression_forward.4} parent=0 // loop_header_branch
    %12 = sbr.rel (%p10) target = $region8
  $region5: #{feature_regression_forward.4} parent=0 // loop_body
    %s14 = ssub.s32 %s9, 1
    %s15 = ssub.s32 %s9, 2
    %s25 = sadd.s32 1, %s18
    %p26 = scmp.ge.s32.totalorder %s25, 1
    %s27 = scalar_select %p26, 0, %s25
    %s28 = sadd.s32 1, %s17
    %s29 = scalar_select %p26, %s28, %s17
    %p30 = scmp.ge.s32.totalorder %s29, 1
    %s31 = scalar_select %p30, 0, %s29
    %s32 = sadd.s32 1, %s16
    %s33 = scalar_select %p30, %s32, %s16
    %p34 = scmp.ge.s32.totalorder %s33, 2
    %s35 = scalar_select %p34, 0, %s33
    %s36 = ssub.s32 %s16, %s35
    %s37 = ssub.s32 %s18, %s27
    %s38 = sor.u32 %s36, %s37
    %p39 = scmp.eq.s32.totalorder %s38, 0
    %s41 = sadd.s32 %s40, 1
    %s42 = scalar_select %p39, %s40, %s41
    %p45 = pneg %p39
    %p46 = scmp.eq.s32.totalorder %s9, 1
    %p47 = por %p45, %p46
    %p48 = scmp.ne.s32.totalorder %s40, %s43
    %p49 = scmp.eq.s32.totalorder %s9, 0
    %p50 = por %p48, %p49
    %p51 = scmp.ne.s32.totalorder %s40, %s43
    %p52 = scmp.eq.s32.totalorder %s14, 1
    %p53 = por %p51, %p52
    %p54 = scmp.ne.s32.totalorder %s43, %s44
    %p55 = scmp.eq.s32.totalorder %s14, 0
    %p56 = por %p54, %p55
    %p57 = scmp.ne.s32.totalorder %s43, %s44
    %p58 = scmp.eq.s32.totalorder %s15, 1
    %p59 = por %p57, %p58
    %p61 = scmp.ne.s32.totalorder %s44, %s60
    %p62 = scmp.eq.s32.totalorder %s15, 0
    %p63 = por %p61, %p62
    %s64 = ssub.s32 %s18, %s27
    %s65 = ssub.s32 %s17, %s31
    %s66 = sor.u32 %s64, %s65
    %p67 = scmp.eq.s32.totalorder %s66, 0
    %s69 = sadd.s32 %s68, 1
    %s70 = scalar_select %p67, %s68, %s69
    %p73 = pneg %p67
    %p74 = scmp.eq.s32.totalorder %s9, 1
    %p75 = por %p73, %p74
    %p76 = scmp.ne.s32.totalorder %s68, %s71
    %p77 = scmp.eq.s32.totalorder %s9, 0
    %p78 = por %p76, %p77
    %p79 = scmp.ne.s32.totalorder %s68, %s71
    %p80 = scmp.eq.s32.totalorder %s14, 1
    %p81 = por %p79, %p80
    %p82 = scmp.ne.s32.totalorder %s71, %s72
    %p83 = scmp.eq.s32.totalorder %s14, 0
    %p84 = por %p82, %p83
    %p85 = scmp.ne.s32.totalorder %s71, %s72
    %p86 = scmp.eq.s32.totalorder %s15, 1
    %p87 = por %p85, %p86
    %p89 = scmp.ne.s32.totalorder %s72, %s88
    %p90 = scmp.eq.s32.totalorder %s15, 0
    %p91 = por %p89, %p90
    %s92 = ssub.s32 %s17, %s31
    %p93 = scmp.eq.s32.totalorder %s92, 0
    %s95 = sadd.s32 %s94, 1
    %s96 = scalar_select %p93, %s94, %s95
    %p99 = pneg %p93
    %p100 = scmp.eq.s32.totalorder %s9, 1
    %p101 = por %p99, %p100
    %p102 = scmp.ne.s32.totalorder %s94, %s97
    %p103 = scmp.eq.s32.totalorder %s9, 0
    %p104 = por %p102, %p103
    %p105 = scmp.ne.s32.totalorder %s94, %s97
    %p106 = scmp.eq.s32.totalorder %s14, 1
    %p107 = por %p105, %p106
    %p108 = scmp.ne.s32.totalorder %s97, %s98
    %p109 = scmp.eq.s32.totalorder %s14, 0
    %p110 = por %p108, %p109
    %p111 = scmp.ne.s32.totalorder %s97, %s98
    %p112 = scmp.eq.s32.totalorder %s15, 1
    %p113 = por %p111, %p112
    %p115 = scmp.ne.s32.totalorder %s98, %s114
    %p116 = scmp.eq.s32.totalorder %s15, 0
    %p117 = por %p115, %p116
    %s118 = ssub.s32 %s16, %s35
    %s119 = ssub.s32 %s17, %s31
    %s120 = sor.u32 %s118, %s119
    %p121 = scmp.eq.s32.totalorder %s120, 0
    %s123 = sadd.s32 %s122, 1
    %s124 = scalar_select %p121, %s122, %s123
    %p127 = pneg %p121
    %p128 = scmp.eq.s32.totalorder %s9, 1
    %p129 = por %p127, %p128
    %p130 = scmp.ne.s32.totalorder %s122, %s125
    %p131 = scmp.eq.s32.totalorder %s9, 0
    %p132 = por %p130, %p131
    %p133 = scmp.ne.s32.totalorder %s122, %s125
    %p134 = scmp.eq.s32.totalorder %s14, 1
    %p135 = por %p133, %p134
    %p136 = scmp.ne.s32.totalorder %s125, %s126
    %p137 = scmp.eq.s32.totalorder %s14, 0
    %p138 = por %p136, %p137
    %p139 = scmp.ne.s32.totalorder %s125, %s126
    %p140 = scmp.eq.s32.totalorder %s15, 1
    %p141 = por %p139, %p140
    %p143 = scmp.ne.s32.totalorder %s126, %s142
    %p144 = scmp.eq.s32.totalorder %s15, 0
    %p145 = por %p143, %p144
    %p146 = scmp.le.s32.totalorder 1, %s9
    %p147 = scmp.lt.s32.totalorder %s9, 3
    %p148 = pnand %p146, %p147
    %p149 = pneg %p148
    // Predicated region
    $region9: #{feature_regression_forward.4} parent=5 // pred_check
      _
    $region10: #{feature_regression_forward.4} parent=5 // pred_check_branch
      %151 = sbr.rel (%p148) target = $region12
    $region11: #{feature_regression_forward.4} parent=5 // pred_region
      %s152 = ssub.s32 %s9, 1
      // Predicated region
      $region13: #{feature_regression_forward.4} parent=11 // pred_check
        %p153 = pneg %p84
      $region14: #{feature_regression_forward.4} parent=11 // pred_check_branch
        %155 = sbr.rel (%p153) target = $region16
      $region15: #{feature_regression_forward.4} parent=11 // pred_region
        %s156 = smul.u32 400, %s21
        %p157 = scmp.lt.s32.totalorder %s156, 399
        %s158 = scalar_select %p157, %s156, 399
        %p159 = scmp.lt.s32.totalorder %s20, 0
        %s160 = scalar_select %p159, %s20, 0
        %s161 = sadd.s32 %s160, %s158
        %s162 = smul.addr %s161, 4
        %s163 = scalar_lea.vmem %s1, %s162
        %s164 = smul.u32 400, %s21
      $region16: #{feature_regression_forward.4} parent=11 // pred_fallthru
        _
      // Predicated region
      $region17: #{feature_regression_forward.4} parent=11 // pred_check
        %p165 = pneg %p110
      $region18: #{feature_regression_forward.4} parent=11 // pred_check_branch
        %167 = sbr.rel (%p165) target = $region20
      $region19: #{feature_regression_forward.4} parent=11 // pred_region
        %p168 = scmp.lt.s32.totalorder %s20, 0
        %s169 = scalar_select %p168, %s20, 0
        %s170 = scalar_lea.vmem %s2, %s169
      $region20: #{feature_regression_forward.4} parent=11 // pred_fallthru
        _
    $region12: #{feature_regression_forward.4} parent=5 // pred_fallthru
      _
    %p171 = scmp.lt.s32.totalorder %s9, 2
    // Predicated region
    $region21: #{feature_regression_forward.4} parent=5 // pred_check
      %p172 = pneg %p171
    $region22: #{feature_regression_forward.4} parent=5 // pred_check_branch
      %174 = sbr.rel (%p172) target = $region24
    $region23: #{feature_regression_forward.4} parent=5 // pred_region
      // Predicated region
      $region25: #{feature_regression_forward.4} parent=23 // pred_check
        %p175 = pneg %p50
      $region26: #{feature_regression_forward.4} parent=23 // pred_check_branch
        %177 = sbr.rel (%p175) target = $region28
      $region27: #{feature_regression_forward.4} parent=23 // pred_region
        %s178 = smul.u32 4, %s16
        %s179 = smul.u32 25, %s18
        %p180 = scmp.lt.s32.totalorder %s178, 7
        %s181 = scalar_select %p180, %s178, 7
        %p182 = scmp.lt.s32.totalorder %s179, 24
        %s183 = scalar_select %p182, %s179, 24
        %s184 = smul.addr %s181, 25
        %s185 = sadd.s32 %s183, %s184
        %s186 = smul.addr %s185, 4
        %s187 = scalar_lea.vmem %s0, %s186
        %s188 = smul.u32 4, %s16
        %s189 = smul.u32 25, %s18
      $region28: #{feature_regression_forward.4} parent=23 // pred_fallthru
        _
    $region24: #{feature_regression_forward.4} parent=5 // pred_fallthru
      _
    %p190 = scmp.le.s32.totalorder 1, %s9
    %p191 = scmp.lt.s32.totalorder %s9, 3
    %p192 = pnand %p190, %p191
    %p193 = pneg %p192
    // Predicated region
    $region29: #{feature_regression_forward.4} parent=5 // pred_check
      _
    $region30: #{feature_regression_forward.4} parent=5 // pred_check_branch
      %195 = sbr.rel (%p192) target = $region32
    $region31: #{feature_regression_forward.4} parent=5 // pred_region
      %s196 = ssub.s32 %s9, 1
      %s197 = smul.u32 4, %s19
      %s198 = smul.u32 25, %s21
      %p199 = scmp.lt.s32.totalorder %s197, 7
      %s200 = scalar_select %p199, %s197, 7
      %p201 = scmp.lt.s32.totalorder %s198, 24
      %s202 = scalar_select %p201, %s198, 24
      %s203 = smul.addr %s200, 25
      %s204 = sadd.s32 %s202, %s203
      %s205 = smul.addr %s204, 4
      %s206 = scalar_lea.vmem %s0, %s205
      %p207 = pneg %p56
      %p208 = pneg %p53
      %s209 = smul.u32 400, %s21
      %p210 = scmp.lt.s32.totalorder %s209, 399
      %s211 = scalar_select %p210, %s209, 399
      %p212 = scmp.lt.s32.totalorder %s20, 0
      %s213 = scalar_select %p212, %s20, 0
      %s214 = sadd.s32 %s213, %s211
      %s215 = smul.addr %s214, 4
      %s216 = scalar_lea.vmem %s1, %s215
      %p217 = pneg %p84
      %p218 = pneg %p81
      %p219 = scmp.lt.s32.totalorder %s20, 0
      %s220 = scalar_select %p219, %s20, 0
      %s221 = scalar_lea.vmem %s2, %s220
      %p222 = pneg %p110
      %p223 = pneg %p107
      %p224 = pneg %p138
      %p225 = pneg %p135
      %s226 = smul.u32 4, %s19
      %p227 = scmp.lt.s32.totalorder %s226, 7
      %s228 = scalar_select %p227, %s226, 7
      %p229 = scmp.lt.s32.totalorder %s20, 0
      %s230 = scalar_select %p229, %s20, 0
      %s231 = sadd.s32 %s230, %s228
      %s232 = smul.addr %s231, 4
      %s233 = scalar_lea.vmem %s3, %s232
      %s234 = smul.u32 4, %s19
      %s235 = smul.u32 25, %s21
      %p236 = scmp.lt.s32.totalorder %s234, 7
      %s237 = scalar_select %p236, %s234, 7
      %p238 = scmp.lt.s32.totalorder %s235, 24
      %s239 = scalar_select %p238, %s235, 24
      %s240 = smul.addr %s237, 25
      %s241 = sadd.s32 %s239, %s240
      %s242 = smul.addr %s241, 4
      %s243 = scalar_lea.vmem %s0, %s242
      %s244 = smul.u32 4, %s19
      %s245 = smul.u32 25, %s21
      %s246 = smul.u32 400, %s21
      %p247 = scmp.lt.s32.totalorder %s246, 399
      %s248 = scalar_select %p247, %s246, 399
      %p249 = scmp.lt.s32.totalorder %s20, 0
      %s250 = scalar_select %p249, %s20, 0
      %s251 = sadd.s32 %s250, %s248
      %s252 = smul.addr %s251, 4
      %s253 = scalar_lea.vmem %s1, %s252
      %s254 = smul.u32 400, %s21
      %p255 = scmp.lt.s32.totalorder %s20, 0
      %s256 = scalar_select %p255, %s20, 0
      %s257 = scalar_lea.vmem %s2, %s256
      %s258 = smul.u32 4, %s19
      %p259 = scmp.lt.s32.totalorder %s258, 7
      %s260 = scalar_select %p259, %s258, 7
      %p261 = scmp.lt.s32.totalorder %s20, 0
      %s262 = scalar_select %p261, %s20, 0
      %s263 = sadd.s32 %s262, %s260
      %s264 = smul.addr %s263, 4
      %s265 = scalar_lea.vmem %s3, %s264
      %s266 = smul.u32 4, %s19
      %p267 = scmp.eq.s32.totalorder %s21, 0
      // Predicated region
      $region33: #{feature_regression_forward.4} parent=31 // pred_check
        %p268 = pneg %p267
      $region34: #{feature_regression_forward.4} parent=31 // pred_check_branch
        %270 = sbr.rel (%p268) target = $region36
      $region35: #{feature_regression_forward.4} parent=31 // pred_region
        %vm271 = vcmask 523264
        %272 = vst.msk [vmem:[#allocation2] sm:$0xff] %vm271, 0.0
        %273 = vst.msk [vmem:[#allocation2 + $0x8] sm:$0xff] %vm271, 0.0
        %274 = vst.msk [vmem:[#allocation2 + $0x10] sm:$0xff] %vm271, 0.0
        %275 = vst.msk [vmem:[#allocation2 + $0x18] sm:$0xff] %vm271, 0.0
      $region36: #{feature_regression_forward.4} parent=31 // pred_fallthru
        _
      %v276 = vld [vmem:[#allocation2] sm:$0xff]
      %v277 = vld [vmem:[#allocation2 + $0x8] sm:$0xff]
      %v278 = vld [vmem:[#allocation2 + $0x10] sm:$0xff]
      %v279 = vld [vmem:[#allocation2 + $0x18] sm:$0xff]
      %v280 = vld [vmem:[%s243] sm:$0xff]
      %v281 = vld [vmem:[%s243 + $0x8] sm:$0xff]
      %v282 = vld [vmem:[%s243 + $0x10] sm:$0xff]
      %v283 = vld [vmem:[%s243 + $0x18] sm:$0xff]
      %v284 = vld [vmem:[%s243 + $0x20] sm:$0xff]
      %v285 = vld [vmem:[%s243 + $0x28] sm:$0xff]
      %v286 = vld [vmem:[%s243 + $0x30] sm:$0xff]
      %v287 = vld [vmem:[%s243 + $0x38] sm:$0xff]
      %v288 = vld [vmem:[%s243 + $0x40] sm:$0xff]
      %v289 = vld [vmem:[%s243 + $0x48] sm:$0xff]
      %v290 = vld [vmem:[%s243 + $0x50] sm:$0xff]
      %v291 = vld [vmem:[%s243 + $0x58] sm:$0xff]
      %v292 = vld [vmem:[%s243 + $0x60] sm:$0xf]
      %v293 = vld [vmem:[%s243 + $0x64] sm:$0xff]
      %v294 = vld [vmem:[%s243 + $0x6c] sm:$0xff]
      %v295 = vld [vmem:[%s243 + $0x74] sm:$0xff]
      %v296 = vld [vmem:[%s243 + $0x7c] sm:$0xff]
      %v297 = vld [vmem:[%s243 + $0x84] sm:$0xff]
      %v298 = vld [vmem:[%s243 + $0x8c] sm:$0xff]
      %v299 = vld [vmem:[%s243 + $0x94] sm:$0xff]
      %v300 = vld [vmem:[%s243 + $0x9c] sm:$0xff]
      %v301 = vld [vmem:[%s243 + $0xa4] sm:$0xff]
      %v302 = vld [vmem:[%s243 + $0xac] sm:$0xff]
      %v303 = vld [vmem:[%s243 + $0xb4] sm:$0xff]
      %v304 = vld [vmem:[%s243 + $0xbc] sm:$0xff]
      %v305 = vld [vmem:[%s243 + $0xc4] sm:$0xf]
      %v306 = vld [vmem:[%s243 + $0xc8] sm:$0xff]
      %v307 = vld [vmem:[%s243 + $0xd0] sm:$0xff]
      %v308 = vld [vmem:[%s243 + $0xd8] sm:$0xff]
      %v309 = vld [vmem:[%s243 + $0xe0] sm:$0xff]
      %v310 = vld [vmem:[%s243 + $0xe8] sm:$0xff]
      %v311 = vld [vmem:[%s243 + $0xf0] sm:$0xff]
      %v312 = vld [vmem:[%s243 + $0xf8] sm:$0xff]
      %v313 = vld [vmem:[%s243 + $0x100] sm:$0xff]
      %v314 = vld [vmem:[%s243 + $0x108] sm:$0xff]
      %v315 = vld [vmem:[%s243 + $0x110] sm:$0xff]
      %v316 = vld [vmem:[%s243 + $0x118] sm:$0xff]
      %v317 = vld [vmem:[%s243 + $0x120] sm:$0xff]
      %v318 = vld [vmem:[%s243 + $0x128] sm:$0xf]
      %v319 = vld [vmem:[%s243 + $0x12c] sm:$0xff]
      %v320 = vld [vmem:[%s243 + $0x134] sm:$0xff]
      %v321 = vld [vmem:[%s243 + $0x13c] sm:$0xff]
      %v322 = vld [vmem:[%s243 + $0x144] sm:$0xff]
      %v323 = vld [vmem:[%s243 + $0x14c] sm:$0xff]
      %v324 = vld [vmem:[%s243 + $0x154] sm:$0xff]
      %v325 = vld [vmem:[%s243 + $0x15c] sm:$0xff]
      %v326 = vld [vmem:[%s243 + $0x164] sm:$0xff]
      %v327 = vld [vmem:[%s243 + $0x16c] sm:$0xff]
      %v328 = vld [vmem:[%s243 + $0x174] sm:$0xff]
      %v329 = vld [vmem:[%s243 + $0x17c] sm:$0xff]
      %v330 = vld [vmem:[%s243 + $0x184] sm:$0xff]
      %v331 = vld [vmem:[%s243 + $0x18c] sm:$0xf]
      %v332 = vld [vmem:[%s253] sm:$0xf]
      %v333 = vld [vmem:[%s253 + $0x4] sm:$0xf]
      %v334 = vld [vmem:[%s253 + $0x8] sm:$0xf]
      %v335 = vld [vmem:[%s253 + $0xc] sm:$0xf]
      %v336 = vld [vmem:[%s253 + $0x10] sm:$0xf]
      %v337 = vld [vmem:[%s253 + $0x14] sm:$0xf]
      %v338 = vld [vmem:[%s253 + $0x18] sm:$0xf]
      %v339 = vld [vmem:[%s253 + $0x1c] sm:$0xf]
      %v340 = vld [vmem:[%s253 + $0x20] sm:$0xf]
      %v341 = vld [vmem:[%s253 + $0x24] sm:$0xf]
      %v342 = vld [vmem:[%s253 + $0x28] sm:$0xf]
      %v343 = vld [vmem:[%s253 + $0x2c] sm:$0xf]
      %v344 = vld [vmem:[%s253 + $0x30] sm:$0xf]
      %v345 = vld [vmem:[%s253 + $0x34] sm:$0xf]
      %v346 = vld [vmem:[%s253 + $0x38] sm:$0xf]
      %v347 = vld [vmem:[%s253 + $0x3c] sm:$0xf]
      %v348 = vld [vmem:[%s253 + $0x40] sm:$0xf]
      %v349 = vld [vmem:[%s253 + $0x44] sm:$0xf]
      %v350 = vld [vmem:[%s253 + $0x48] sm:$0xf]
      %v351 = vld [vmem:[%s253 + $0x4c] sm:$0xf]
      %v352 = vld [vmem:[%s253 + $0x50] sm:$0xf]
      %v353 = vld [vmem:[%s253 + $0x54] sm:$0xf]
      %v354 = vld [vmem:[%s253 + $0x58] sm:$0xf]
      %v355 = vld [vmem:[%s253 + $0x5c] sm:$0xf]
      %v356 = vld [vmem:[%s253 + $0x60] sm:$0xf]
      %v357 = vld [vmem:[%s253 + $0x64] sm:$0xf]
      %v358 = vld [vmem:[%s253 + $0x68] sm:$0xf]
      %v359 = vld [vmem:[%s253 + $0x6c] sm:$0xf]
      %v360 = vld [vmem:[%s253 + $0x70] sm:$0xf]
      %v361 = vld [vmem:[%s253 + $0x74] sm:$0xf]
      %v362 = vld [vmem:[%s253 + $0x78] sm:$0xf]
      %v363 = vld [vmem:[%s253 + $0x7c] sm:$0xf]
      %v364 = vld [vmem:[%s253 + $0x80] sm:$0xf]
      %v365 = vld [vmem:[%s253 + $0x84] sm:$0xf]
      %v366 = vld [vmem:[%s253 + $0x88] sm:$0xf]
      %v367 = vld [vmem:[%s253 + $0x8c] sm:$0xf]
      %v368 = vld [vmem:[%s253 + $0x90] sm:$0xf]
      %v369 = vld [vmem:[%s253 + $0x94] sm:$0xf]
      %v370 = vld [vmem:[%s253 + $0x98] sm:$0xf]
      %v371 = vld [vmem:[%s253 + $0x9c] sm:$0xf]
      %v372 = vld [vmem:[%s253 + $0xa0] sm:$0xf]
      %v373 = vld [vmem:[%s253 + $0xa4] sm:$0xf]
      %v374 = vld [vmem:[%s253 + $0xa8] sm:$0xf]
      %v375 = vld [vmem:[%s253 + $0xac] sm:$0xf]
      %v376 = vld [vmem:[%s253 + $0xb0] sm:$0xf]
      %v377 = vld [vmem:[%s253 + $0xb4] sm:$0xf]
      %v378 = vld [vmem:[%s253 + $0xb8] sm:$0xf]
      %v379 = vld [vmem:[%s253 + $0xbc] sm:$0xf]
      %v380 = vld [vmem:[%s253 + $0xc0] sm:$0xf]
      %v381 = vld [vmem:[%s253 + $0xc4] sm:$0xf]
      %v382 = vld [vmem:[%s253 + $0xc8] sm:$0xf]
      %v383 = vld [vmem:[%s253 + $0xcc] sm:$0xf]
      %v384 = vld [vmem:[%s253 + $0xd0] sm:$0xf]
      %v385 = vld [vmem:[%s253 + $0xd4] sm:$0xf]
      %v386 = vld [vmem:[%s253 + $0xd8] sm:$0xf]
      %v387 = vld [vmem:[%s253 + $0xdc] sm:$0xf]
      %v388 = vld [vmem:[%s253 + $0xe0] sm:$0xf]
      %v389 = vld [vmem:[%s253 + $0xe4] sm:$0xf]
      %v390 = vld [vmem:[%s253 + $0xe8] sm:$0xf]
      %v391 = vld [vmem:[%s253 + $0xec] sm:$0xf]
      %v392 = vld [vmem:[%s253 + $0xf0] sm:$0xf]
      %v393 = vld [vmem:[%s253 + $0xf4] sm:$0xf]
      %v394 = vld [vmem:[%s253 + $0xf8] sm:$0xf]
      %v395 = vld [vmem:[%s253 + $0xfc] sm:$0xf]
      %v396 = vld [vmem:[%s253 + $0x100] sm:$0xf]
      %v397 = vld [vmem:[%s253 + $0x104] sm:$0xf]
      %v398 = vld [vmem:[%s253 + $0x108] sm:$0xf]
      %v399 = vld [vmem:[%s253 + $0x10c] sm:$0xf]
      %v400 = vld [vmem:[%s253 + $0x110] sm:$0xf]
      %v401 = vld [vmem:[%s253 + $0x114] sm:$0xf]
      %v402 = vld [vmem:[%s253 + $0x118] sm:$0xf]
      %v403 = vld [vmem:[%s253 + $0x11c] sm:$0xf]
      %v404 = vld [vmem:[%s253 + $0x120] sm:$0xf]
      %v405 = vld [vmem:[%s253 + $0x124] sm:$0xf]
      %v406 = vld [vmem:[%s253 + $0x128] sm:$0xf]
      %v407 = vld [vmem:[%s253 + $0x12c] sm:$0xf]
      %v408 = vld [vmem:[%s253 + $0x130] sm:$0xf]
      %v409 = vld [vmem:[%s253 + $0x134] sm:$0xf]
      %v410 = vld [vmem:[%s253 + $0x138] sm:$0xf]
      %v411 = vld [vmem:[%s253 + $0x13c] sm:$0xf]
      %v412 = vld [vmem:[%s253 + $0x140] sm:$0xf]
      %v413 = vld [vmem:[%s253 + $0x144] sm:$0xf]
      %v414 = vld [vmem:[%s253 + $0x148] sm:$0xf]
      %v415 = vld [vmem:[%s253 + $0x14c] sm:$0xf]
      %v416 = vld [vmem:[%s253 + $0x150] sm:$0xf]
      %v417 = vld [vmem:[%s253 + $0x154] sm:$0xf]
      %v418 = vld [vmem:[%s253 + $0x158] sm:$0xf]
      %v419 = vld [vmem:[%s253 + $0x15c] sm:$0xf]
      %v420 = vld [vmem:[%s253 + $0x160] sm:$0xf]
      %v421 = vld [vmem:[%s253 + $0x164] sm:$0xf]
      %v422 = vld [vmem:[%s253 + $0x168] sm:$0xf]
      %v423 = vld [vmem:[%s253 + $0x16c] sm:$0xf]
      %v424 = vld [vmem:[%s253 + $0x170] sm:$0xf]
      %v425 = vld [vmem:[%s253 + $0x174] sm:$0xf]
      %v426 = vld [vmem:[%s253 + $0x178] sm:$0xf]
      %v427 = vld [vmem:[%s253 + $0x17c] sm:$0xf]
      %v428 = vld [vmem:[%s253 + $0x180] sm:$0xf]
      %v429 = vld [vmem:[%s253 + $0x184] sm:$0xf]
      %v430 = vld [vmem:[%s253 + $0x188] sm:$0xf]
      %v431 = vld [vmem:[%s253 + $0x18c] sm:$0xf]
      %v432 = vld [vmem:[%s253 + $0x190] sm:$0xf]
      %v433 = vld [vmem:[%s253 + $0x194] sm:$0xf]
      %v434 = vld [vmem:[%s253 + $0x198] sm:$0xf]
      %v435 = vld [vmem:[%s253 + $0x19c] sm:$0xf]
      %v436 = vld [vmem:[%s253 + $0x1a0] sm:$0xf]
      %v437 = vld [vmem:[%s253 + $0x1a4] sm:$0xf]
      %v438 = vld [vmem:[%s253 + $0x1a8] sm:$0xf]
      %v439 = vld [vmem:[%s253 + $0x1ac] sm:$0xf]
      %v440 = vld [vmem:[%s253 + $0x1b0] sm:$0xf]
      %v441 = vld [vmem:[%s253 + $0x1b4] sm:$0xf]
      %v442 = vld [vmem:[%s253 + $0x1b8] sm:$0xf]
      %v443 = vld [vmem:[%s253 + $0x1bc] sm:$0xf]
      %v444 = vld [vmem:[%s253 + $0x1c0] sm:$0xf]
      %v445 = vld [vmem:[%s253 + $0x1c4] sm:$0xf]
      %v446 = vld [vmem:[%s253 + $0x1c8] sm:$0xf]
      %v447 = vld [vmem:[%s253 + $0x1cc] sm:$0xf]
      %v448 = vld [vmem:[%s253 + $0x1d0] sm:$0xf]
      %v449 = vld [vmem:[%s253 + $0x1d4] sm:$0xf]
      %v450 = vld [vmem:[%s253 + $0x1d8] sm:$0xf]
      %v451 = vld [vmem:[%s253 + $0x1dc] sm:$0xf]
      %v452 = vld [vmem:[%s253 + $0x1e0] sm:$0xf]
      %v453 = vld [vmem:[%s253 + $0x1e4] sm:$0xf]
      %v454 = vld [vmem:[%s253 + $0x1e8] sm:$0xf]
      %v455 = vld [vmem:[%s253 + $0x1ec] sm:$0xf]
      %v456 = vld [vmem:[%s253 + $0x1f0] sm:$0xf]
      %v457 = vld [vmem:[%s253 + $0x1f4] sm:$0xf]
      %v458 = vld [vmem:[%s253 + $0x1f8] sm:$0xf]
      %v459 = vld [vmem:[%s253 + $0x1fc] sm:$0xf]
      %v460 = vld [vmem:[%s253 + $0x200] sm:$0xf]
      %v461 = vld [vmem:[%s253 + $0x204] sm:$0xf]
      %v462 = vld [vmem:[%s253 + $0x208] sm:$0xf]
      %v463 = vld [vmem:[%s253 + $0x20c] sm:$0xf]
      %v464 = vld [vmem:[%s253 + $0x210] sm:$0xf]
      %v465 = vld [vmem:[%s253 + $0x214] sm:$0xf]
      %v466 = vld [vmem:[%s253 + $0x218] sm:$0xf]
      %v467 = vld [vmem:[%s253 + $0x21c] sm:$0xf]
      %v468 = vld [vmem:[%s253 + $0x220] sm:$0xf]
      %v469 = vld [vmem:[%s253 + $0x224] sm:$0xf]
      %v470 = vld [vmem:[%s253 + $0x228] sm:$0xf]
      %v471 = vld [vmem:[%s253 + $0x22c] sm:$0xf]
      %v472 = vld [vmem:[%s253 + $0x230] sm:$0xf]
      %v473 = vld [vmem:[%s253 + $0x234] sm:$0xf]
      %v474 = vld [vmem:[%s253 + $0x238] sm:$0xf]
      %v475 = vld [vmem:[%s253 + $0x23c] sm:$0xf]
      %v476 = vld [vmem:[%s253 + $0x240] sm:$0xf]
      %v477 = vld [vmem:[%s253 + $0x244] sm:$0xf]
      %v478 = vld [vmem:[%s253 + $0x248] sm:$0xf]
      %v479 = vld [vmem:[%s253 + $0x24c] sm:$0xf]
      %v480 = vld [vmem:[%s253 + $0x250] sm:$0xf]
      %v481 = vld [vmem:[%s253 + $0x254] sm:$0xf]
      %v482 = vld [vmem:[%s253 + $0x258] sm:$0xf]
      %v483 = vld [vmem:[%s253 + $0x25c] sm:$0xf]
      %v484 = vld [vmem:[%s253 + $0x260] sm:$0xf]
      %v485 = vld [vmem:[%s253 + $0x264] sm:$0xf]
      %v486 = vld [vmem:[%s253 + $0x268] sm:$0xf]
      %v487 = vld [vmem:[%s253 + $0x26c] sm:$0xf]
      %v488 = vld [vmem:[%s253 + $0x270] sm:$0xf]
      %v489 = vld [vmem:[%s253 + $0x274] sm:$0xf]
      %v490 = vld [vmem:[%s253 + $0x278] sm:$0xf]
      %v491 = vld [vmem:[%s253 + $0x27c] sm:$0xf]
      %v492 = vld [vmem:[%s253 + $0x280] sm:$0xf]
      %v493 = vld [vmem:[%s253 + $0x284] sm:$0xf]
      %v494 = vld [vmem:[%s253 + $0x288] sm:$0xf]
      %v495 = vld [vmem:[%s253 + $0x28c] sm:$0xf]
      %v496 = vld [vmem:[%s253 + $0x290] sm:$0xf]
      %v497 = vld [vmem:[%s253 + $0x294] sm:$0xf]
      %v498 = vld [vmem:[%s253 + $0x298] sm:$0xf]
      %v499 = vld [vmem:[%s253 + $0x29c] sm:$0xf]
      %v500 = vld [vmem:[%s253 + $0x2a0] sm:$0xf]
      %v501 = vld [vmem:[%s253 + $0x2a4] sm:$0xf]
      %v502 = vld [vmem:[%s253 + $0x2a8] sm:$0xf]
      %v503 = vld [vmem:[%s253 + $0x2ac] sm:$0xf]
      %v504 = vld [vmem:[%s253 + $0x2b0] sm:$0xf]
      %v505 = vld [vmem:[%s253 + $0x2b4] sm:$0xf]
      %v506 = vld [vmem:[%s253 + $0x2b8] sm:$0xf]
      %v507 = vld [vmem:[%s253 + $0x2bc] sm:$0xf]
      %v508 = vld [vmem:[%s253 + $0x2c0] sm:$0xf]
      %v509 = vld [vmem:[%s253 + $0x2c4] sm:$0xf]
      %v510 = vld [vmem:[%s253 + $0x2c8] sm:$0xf]
      %v511 = vld [vmem:[%s253 + $0x2cc] sm:$0xf]
      %v512 = vld [vmem:[%s253 + $0x2d0] sm:$0xf]
      %v513 = vld [vmem:[%s253 + $0x2d4] sm:$0xf]
      %v514 = vld [vmem:[%s253 + $0x2d8] sm:$0xf]
      %v515 = vld [vmem:[%s253 + $0x2dc] sm:$0xf]
      %v516 = vld [vmem:[%s253 + $0x2e0] sm:$0xf]
      %v517 = vld [vmem:[%s253 + $0x2e4] sm:$0xf]
      %v518 = vld [vmem:[%s253 + $0x2e8] sm:$0xf]
      %v519 = vld [vmem:[%s253 + $0x2ec] sm:$0xf]
      %v520 = vld [vmem:[%s253 + $0x2f0] sm:$0xf]
      %v521 = vld [vmem:[%s253 + $0x2f4] sm:$0xf]
      %v522 = vld [vmem:[%s253 + $0x2f8] sm:$0xf]
      %v523 = vld [vmem:[%s253 + $0x2fc] sm:$0xf]
      %v524 = vld [vmem:[%s253 + $0x300] sm:$0xf]
      %v525 = vld [vmem:[%s253 + $0x304] sm:$0xf]
      %v526 = vld [vmem:[%s253 + $0x308] sm:$0xf]
      %v527 = vld [vmem:[%s253 + $0x30c] sm:$0xf]
      %v528 = vld [vmem:[%s253 + $0x310] sm:$0xf]
      %v529 = vld [vmem:[%s253 + $0x314] sm:$0xf]
      %v530 = vld [vmem:[%s253 + $0x318] sm:$0xf]
      %v531 = vld [vmem:[%s253 + $0x31c] sm:$0xf]
      %v532 = vld [vmem:[%s253 + $0x320] sm:$0xf]
      %v533 = vld [vmem:[%s253 + $0x324] sm:$0xf]
      %v534 = vld [vmem:[%s253 + $0x328] sm:$0xf]
      %v535 = vld [vmem:[%s253 + $0x32c] sm:$0xf]
      %v536 = vld [vmem:[%s253 + $0x330] sm:$0xf]
      %v537 = vld [vmem:[%s253 + $0x334] sm:$0xf]
      %v538 = vld [vmem:[%s253 + $0x338] sm:$0xf]
      %v539 = vld [vmem:[%s253 + $0x33c] sm:$0xf]
      %v540 = vld [vmem:[%s253 + $0x340] sm:$0xf]
      %v541 = vld [vmem:[%s253 + $0x344] sm:$0xf]
      %v542 = vld [vmem:[%s253 + $0x348] sm:$0xf]
      %v543 = vld [vmem:[%s253 + $0x34c] sm:$0xf]
      %v544 = vld [vmem:[%s253 + $0x350] sm:$0xf]
      %v545 = vld [vmem:[%s253 + $0x354] sm:$0xf]
      %v546 = vld [vmem:[%s253 + $0x358] sm:$0xf]
      %v547 = vld [vmem:[%s253 + $0x35c] sm:$0xf]
      %v548 = vld [vmem:[%s253 + $0x360] sm:$0xf]
      %v549 = vld [vmem:[%s253 + $0x364] sm:$0xf]
      %v550 = vld [vmem:[%s253 + $0x368] sm:$0xf]
      %v551 = vld [vmem:[%s253 + $0x36c] sm:$0xf]
      %v552 = vld [vmem:[%s253 + $0x370] sm:$0xf]
      %v553 = vld [vmem:[%s253 + $0x374] sm:$0xf]
      %v554 = vld [vmem:[%s253 + $0x378] sm:$0xf]
      %v555 = vld [vmem:[%s253 + $0x37c] sm:$0xf]
      %v556 = vld [vmem:[%s253 + $0x380] sm:$0xf]
      %v557 = vld [vmem:[%s253 + $0x384] sm:$0xf]
      %v558 = vld [vmem:[%s253 + $0x388] sm:$0xf]
      %v559 = vld [vmem:[%s253 + $0x38c] sm:$0xf]
      %v560 = vld [vmem:[%s253 + $0x390] sm:$0xf]
      %v561 = vld [vmem:[%s253 + $0x394] sm:$0xf]
      %v562 = vld [vmem:[%s253 + $0x398] sm:$0xf]
      %v563 = vld [vmem:[%s253 + $0x39c] sm:$0xf]
      %v564 = vld [vmem:[%s253 + $0x3a0] sm:$0xf]
      %v565 = vld [vmem:[%s253 + $0x3a4] sm:$0xf]
      %v566 = vld [vmem:[%s253 + $0x3a8] sm:$0xf]
      %v567 = vld [vmem:[%s253 + $0x3ac] sm:$0xf]
      %v568 = vld [vmem:[%s253 + $0x3b0] sm:$0xf]
      %v569 = vld [vmem:[%s253 + $0x3b4] sm:$0xf]
      %v570 = vld [vmem:[%s253 + $0x3b8] sm:$0xf]
      %v571 = vld [vmem:[%s253 + $0x3bc] sm:$0xf]
      %v572 = vld [vmem:[%s253 + $0x3c0] sm:$0xf]
      %v573 = vld [vmem:[%s253 + $0x3c4] sm:$0xf]
      %v574 = vld [vmem:[%s253 + $0x3c8] sm:$0xf]
      %v575 = vld [vmem:[%s253 + $0x3cc] sm:$0xf]
      %v576 = vld [vmem:[%s253 + $0x3d0] sm:$0xf]
      %v577 = vld [vmem:[%s253 + $0x3d4] sm:$0xf]
      %v578 = vld [vmem:[%s253 + $0x3d8] sm:$0xf]
      %v579 = vld [vmem:[%s253 + $0x3dc] sm:$0xf]
      %v580 = vld [vmem:[%s253 + $0x3e0] sm:$0xf]
      %v581 = vld [vmem:[%s253 + $0x3e4] sm:$0xf]
      %v582 = vld [vmem:[%s253 + $0x3e8] sm:$0xf]
      %v583 = vld [vmem:[%s253 + $0x3ec] sm:$0xf]
      %v584 = vld [vmem:[%s253 + $0x3f0] sm:$0xf]
      %v585 = vld [vmem:[%s253 + $0x3f4] sm:$0xf]
      %v586 = vld [vmem:[%s253 + $0x3f8] sm:$0xf]
      %v587 = vld [vmem:[%s253 + $0x3fc] sm:$0xf]
      %v588 = vld [vmem:[%s253 + $0x400] sm:$0xf]
      %v589 = vld [vmem:[%s253 + $0x404] sm:$0xf]
      %v590 = vld [vmem:[%s253 + $0x408] sm:$0xf]
      %v591 = vld [vmem:[%s253 + $0x40c] sm:$0xf]
      %v592 = vld [vmem:[%s253 + $0x410] sm:$0xf]
      %v593 = vld [vmem:[%s253 + $0x414] sm:$0xf]
      %v594 = vld [vmem:[%s253 + $0x418] sm:$0xf]
      %v595 = vld [vmem:[%s253 + $0x41c] sm:$0xf]
      %v596 = vld [vmem:[%s253 + $0x420] sm:$0xf]
      %v597 = vld [vmem:[%s253 + $0x424] sm:$0xf]
      %v598 = vld [vmem:[%s253 + $0x428] sm:$0xf]
      %v599 = vld [vmem:[%s253 + $0x42c] sm:$0xf]
      %v600 = vld [vmem:[%s253 + $0x430] sm:$0xf]
      %v601 = vld [vmem:[%s253 + $0x434] sm:$0xf]
      %v602 = vld [vmem:[%s253 + $0x438] sm:$0xf]
      %v603 = vld [vmem:[%s253 + $0x43c] sm:$0xf]
      %v604 = vld [vmem:[%s253 + $0x440] sm:$0xf]
      %v605 = vld [vmem:[%s253 + $0x444] sm:$0xf]
      %v606 = vld [vmem:[%s253 + $0x448] sm:$0xf]
      %v607 = vld [vmem:[%s253 + $0x44c] sm:$0xf]
      %v608 = vld [vmem:[%s253 + $0x450] sm:$0xf]
      %v609 = vld [vmem:[%s253 + $0x454] sm:$0xf]
      %v610 = vld [vmem:[%s253 + $0x458] sm:$0xf]
      %v611 = vld [vmem:[%s253 + $0x45c] sm:$0xf]
      %v612 = vld [vmem:[%s253 + $0x460] sm:$0xf]
      %v613 = vld [vmem:[%s253 + $0x464] sm:$0xf]
      %v614 = vld [vmem:[%s253 + $0x468] sm:$0xf]
      %v615 = vld [vmem:[%s253 + $0x46c] sm:$0xf]
      %v616 = vld [vmem:[%s253 + $0x470] sm:$0xf]
      %v617 = vld [vmem:[%s253 + $0x474] sm:$0xf]
      %v618 = vld [vmem:[%s253 + $0x478] sm:$0xf]
      %v619 = vld [vmem:[%s253 + $0x47c] sm:$0xf]
      %v620 = vld [vmem:[%s253 + $0x480] sm:$0xf]
      %v621 = vld [vmem:[%s253 + $0x484] sm:$0xf]
      %v622 = vld [vmem:[%s253 + $0x488] sm:$0xf]
      %v623 = vld [vmem:[%s253 + $0x48c] sm:$0xf]
      %v624 = vld [vmem:[%s253 + $0x490] sm:$0xf]
      %v625 = vld [vmem:[%s253 + $0x494] sm:$0xf]
      %v626 = vld [vmem:[%s253 + $0x498] sm:$0xf]
      %v627 = vld [vmem:[%s253 + $0x49c] sm:$0xf]
      %v628 = vld [vmem:[%s253 + $0x4a0] sm:$0xf]
      %v629 = vld [vmem:[%s253 + $0x4a4] sm:$0xf]
      %v630 = vld [vmem:[%s253 + $0x4a8] sm:$0xf]
      %v631 = vld [vmem:[%s253 + $0x4ac] sm:$0xf]
      %v632 = vld [vmem:[%s253 + $0x4b0] sm:$0xf]
      %v633 = vld [vmem:[%s253 + $0x4b4] sm:$0xf]
      %v634 = vld [vmem:[%s253 + $0x4b8] sm:$0xf]
      %v635 = vld [vmem:[%s253 + $0x4bc] sm:$0xf]
      %v636 = vld [vmem:[%s253 + $0x4c0] sm:$0xf]
      %v637 = vld [vmem:[%s253 + $0x4c4] sm:$0xf]
      %v638 = vld [vmem:[%s253 + $0x4c8] sm:$0xf]
      %v639 = vld [vmem:[%s253 + $0x4cc] sm:$0xf]
      %v640 = vld [vmem:[%s253 + $0x4d0] sm:$0xf]
      %v641 = vld [vmem:[%s253 + $0x4d4] sm:$0xf]
      %v642 = vld [vmem:[%s253 + $0x4d8] sm:$0xf]
      %v643 = vld [vmem:[%s253 + $0x4dc] sm:$0xf]
      %v644 = vld [vmem:[%s253 + $0x4e0] sm:$0xf]
      %v645 = vld [vmem:[%s253 + $0x4e4] sm:$0xf]
      %v646 = vld [vmem:[%s253 + $0x4e8] sm:$0xf]
      %v647 = vld [vmem:[%s253 + $0x4ec] sm:$0xf]
      %v648 = vld [vmem:[%s253 + $0x4f0] sm:$0xf]
      %v649 = vld [vmem:[%s253 + $0x4f4] sm:$0xf]
      %v650 = vld [vmem:[%s253 + $0x4f8] sm:$0xf]
      %v651 = vld [vmem:[%s253 + $0x4fc] sm:$0xf]
      %v652 = vld [vmem:[%s253 + $0x500] sm:$0xf]
      %v653 = vld [vmem:[%s253 + $0x504] sm:$0xf]
      %v654 = vld [vmem:[%s253 + $0x508] sm:$0xf]
      %v655 = vld [vmem:[%s253 + $0x50c] sm:$0xf]
      %v656 = vld [vmem:[%s253 + $0x510] sm:$0xf]
      %v657 = vld [vmem:[%s253 + $0x514] sm:$0xf]
      %v658 = vld [vmem:[%s253 + $0x518] sm:$0xf]
      %v659 = vld [vmem:[%s253 + $0x51c] sm:$0xf]
      %v660 = vld [vmem:[%s253 + $0x520] sm:$0xf]
      %v661 = vld [vmem:[%s253 + $0x524] sm:$0xf]
      %v662 = vld [vmem:[%s253 + $0x528] sm:$0xf]
      %v663 = vld [vmem:[%s253 + $0x52c] sm:$0xf]
      %v664 = vld [vmem:[%s253 + $0x530] sm:$0xf]
      %v665 = vld [vmem:[%s253 + $0x534] sm:$0xf]
      %v666 = vld [vmem:[%s253 + $0x538] sm:$0xf]
      %v667 = vld [vmem:[%s253 + $0x53c] sm:$0xf]
      %v668 = vld [vmem:[%s253 + $0x540] sm:$0xf]
      %v669 = vld [vmem:[%s253 + $0x544] sm:$0xf]
      %v670 = vld [vmem:[%s253 + $0x548] sm:$0xf]
      %v671 = vld [vmem:[%s253 + $0x54c] sm:$0xf]
      %v672 = vld [vmem:[%s253 + $0x550] sm:$0xf]
      %v673 = vld [vmem:[%s253 + $0x554] sm:$0xf]
      %v674 = vld [vmem:[%s253 + $0x558] sm:$0xf]
      %v675 = vld [vmem:[%s253 + $0x55c] sm:$0xf]
      %v676 = vld [vmem:[%s253 + $0x560] sm:$0xf]
      %v677 = vld [vmem:[%s253 + $0x564] sm:$0xf]
      %v678 = vld [vmem:[%s253 + $0x568] sm:$0xf]
      %v679 = vld [vmem:[%s253 + $0x56c] sm:$0xf]
      %v680 = vld [vmem:[%s253 + $0x570] sm:$0xf]
      %v681 = vld [vmem:[%s253 + $0x574] sm:$0xf]
      %v682 = vld [vmem:[%s253 + $0x578] sm:$0xf]
      %v683 = vld [vmem:[%s253 + $0x57c] sm:$0xf]
      %v684 = vld [vmem:[%s253 + $0x580] sm:$0xf]
      %v685 = vld [vmem:[%s253 + $0x584] sm:$0xf]
      %v686 = vld [vmem:[%s253 + $0x588] sm:$0xf]
      %v687 = vld [vmem:[%s253 + $0x58c] sm:$0xf]
      %v688 = vld [vmem:[%s253 + $0x590] sm:$0xf]
      %v689 = vld [vmem:[%s253 + $0x594] sm:$0xf]
      %v690 = vld [vmem:[%s253 + $0x598] sm:$0xf]
      %v691 = vld [vmem:[%s253 + $0x59c] sm:$0xf]
      %v692 = vld [vmem:[%s253 + $0x5a0] sm:$0xf]
      %v693 = vld [vmem:[%s253 + $0x5a4] sm:$0xf]
      %v694 = vld [vmem:[%s253 + $0x5a8] sm:$0xf]
      %v695 = vld [vmem:[%s253 + $0x5ac] sm:$0xf]
      %v696 = vld [vmem:[%s253 + $0x5b0] sm:$0xf]
      %v697 = vld [vmem:[%s253 + $0x5b4] sm:$0xf]
      %v698 = vld [vmem:[%s253 + $0x5b8] sm:$0xf]
      %v699 = vld [vmem:[%s253 + $0x5bc] sm:$0xf]
      %v700 = vld [vmem:[%s253 + $0x5c0] sm:$0xf]
      %v701 = vld [vmem:[%s253 + $0x5c4] sm:$0xf]
      %v702 = vld [vmem:[%s253 + $0x5c8] sm:$0xf]
      %v703 = vld [vmem:[%s253 + $0x5cc] sm:$0xf]
      %v704 = vld [vmem:[%s253 + $0x5d0] sm:$0xf]
      %v705 = vld [vmem:[%s253 + $0x5d4] sm:$0xf]
      %v706 = vld [vmem:[%s253 + $0x5d8] sm:$0xf]
      %v707 = vld [vmem:[%s253 + $0x5dc] sm:$0xf]
      %v708 = vld [vmem:[%s253 + $0x5e0] sm:$0xf]
      %v709 = vld [vmem:[%s253 + $0x5e4] sm:$0xf]
      %v710 = vld [vmem:[%s253 + $0x5e8] sm:$0xf]
      %v711 = vld [vmem:[%s253 + $0x5ec] sm:$0xf]
      %v712 = vld [vmem:[%s253 + $0x5f0] sm:$0xf]
      %v713 = vld [vmem:[%s253 + $0x5f4] sm:$0xf]
      %v714 = vld [vmem:[%s253 + $0x5f8] sm:$0xf]
      %v715 = vld [vmem:[%s253 + $0x5fc] sm:$0xf]
      %v716 = vld [vmem:[%s253 + $0x600] sm:$0xf]
      %v717 = vld [vmem:[%s253 + $0x604] sm:$0xf]
      %v718 = vld [vmem:[%s253 + $0x608] sm:$0xf]
      %v719 = vld [vmem:[%s253 + $0x60c] sm:$0xf]
      %v720 = vld [vmem:[%s253 + $0x610] sm:$0xf]
      %v721 = vld [vmem:[%s253 + $0x614] sm:$0xf]
      %v722 = vld [vmem:[%s253 + $0x618] sm:$0xf]
      %v723 = vld [vmem:[%s253 + $0x61c] sm:$0xf]
      %v724 = vld [vmem:[%s253 + $0x620] sm:$0xf]
      %v725 = vld [vmem:[%s253 + $0x624] sm:$0xf]
      %v726 = vld [vmem:[%s253 + $0x628] sm:$0xf]
      %v727 = vld [vmem:[%s253 + $0x62c] sm:$0xf]
      %v728 = vld [vmem:[%s253 + $0x630] sm:$0xf]
      %v729 = vld [vmem:[%s253 + $0x634] sm:$0xf]
      %v730 = vld [vmem:[%s253 + $0x638] sm:$0xf]
      %v731 = vld [vmem:[%s253 + $0x63c] sm:$0xf]
      %v784 = vunpack.c.l.b16 %v280
      %v785 = vunpack.c.h.b16 %v280
      %v786 = vunpack.c.l.b16 %v281
      %v787 = vunpack.c.h.b16 %v281
      %v788 = vunpack.c.l.b16 %v282
      %v789 = vunpack.c.h.b16 %v282
      %v790 = vunpack.c.l.b16 %v283
      %v791 = vunpack.c.h.b16 %v283
      %v792 = vunpack.c.l.b16 %v284
      %v793 = vunpack.c.h.b16 %v284
      %v794 = vunpack.c.l.b16 %v285
      %v795 = vunpack.c.h.b16 %v285
      %v796 = vunpack.c.l.b16 %v286
      %v797 = vunpack.c.h.b16 %v286
      %v798 = vunpack.c.l.b16 %v287
      %v799 = vunpack.c.h.b16 %v287
      %v800 = vunpack.c.l.b16 %v288
      %v801 = vunpack.c.h.b16 %v288
      %v802 = vunpack.c.l.b16 %v289
      %v803 = vunpack.c.h.b16 %v289
      %v804 = vunpack.c.l.b16 %v290
      %v805 = vunpack.c.h.b16 %v290
      %v806 = vunpack.c.l.b16 %v291
      %v807 = vunpack.c.h.b16 %v291
      %v808 = vunpack.c.l.b16 %v292
      %v809 = vunpack.c.l.b16 %v293
      %v810 = vunpack.c.h.b16 %v293
      %v811 = vunpack.c.l.b16 %v294
      %v812 = vunpack.c.h.b16 %v294
      %v813 = vunpack.c.l.b16 %v295
      %v814 = vunpack.c.h.b16 %v295
      %v815 = vunpack.c.l.b16 %v296
      %v816 = vunpack.c.h.b16 %v296
      %v817 = vunpack.c.l.b16 %v297
      %v818 = vunpack.c.h.b16 %v297
      %v819 = vunpack.c.l.b16 %v298
      %v820 = vunpack.c.h.b16 %v298
      %v821 = vunpack.c.l.b16 %v299
      %v822 = vunpack.c.h.b16 %v299
      %v823 = vunpack.c.l.b16 %v300
      %v824 = vunpack.c.h.b16 %v300
      %v825 = vunpack.c.l.b16 %v301
      %v826 = vunpack.c.h.b16 %v301
      %v827 = vunpack.c.l.b16 %v302
      %v828 = vunpack.c.h.b16 %v302
      %v829 = vunpack.c.l.b16 %v303
      %v830 = vunpack.c.h.b16 %v303
      %v831 = vunpack.c.l.b16 %v304
      %v832 = vunpack.c.h.b16 %v304
      %v833 = vunpack.c.l.b16 %v305
      %v834 = vunpack.c.l.b16 %v306
      %v835 = vunpack.c.h.b16 %v306
      %v836 = vunpack.c.l.b16 %v307
      %v837 = vunpack.c.h.b16 %v307
      %v838 = vunpack.c.l.b16 %v308
      %v839 = vunpack.c.h.b16 %v308
      %v840 = vunpack.c.l.b16 %v309
      %v841 = vunpack.c.h.b16 %v309
      %v842 = vunpack.c.l.b16 %v310
      %v843 = vunpack.c.h.b16 %v310
      %v844 = vunpack.c.l.b16 %v311
      %v845 = vunpack.c.h.b16 %v311
      %v846 = vunpack.c.l.b16 %v312
      %v847 = vunpack.c.h.b16 %v312
      %v848 = vunpack.c.l.b16 %v313
      %v849 = vunpack.c.h.b16 %v313
      %v850 = vunpack.c.l.b16 %v314
      %v851 = vunpack.c.h.b16 %v314
      %v852 = vunpack.c.l.b16 %v315
      %v853 = vunpack.c.h.b16 %v315
      %v854 = vunpack.c.l.b16 %v316
      %v855 = vunpack.c.h.b16 %v316
      %v856 = vunpack.c.l.b16 %v317
      %v857 = vunpack.c.h.b16 %v317
      %v858 = vunpack.c.l.b16 %v318
      %v859 = vunpack.c.l.b16 %v319
      %v860 = vunpack.c.h.b16 %v319
      %v861 = vunpack.c.l.b16 %v320
      %v862 = vunpack.c.h.b16 %v320
      %v863 = vunpack.c.l.b16 %v321
      %v864 = vunpack.c.h.b16 %v321
      %v865 = vunpack.c.l.b16 %v322
      %v866 = vunpack.c.h.b16 %v322
      %v867 = vunpack.c.l.b16 %v323
      %v868 = vunpack.c.h.b16 %v323
      %v869 = vunpack.c.l.b16 %v324
      %v870 = vunpack.c.h.b16 %v324
      %v871 = vunpack.c.l.b16 %v325
      %v872 = vunpack.c.h.b16 %v325
      %v873 = vunpack.c.l.b16 %v326
      %v874 = vunpack.c.h.b16 %v326
      %v875 = vunpack.c.l.b16 %v327
      %v876 = vunpack.c.h.b16 %v327
      %v877 = vunpack.c.l.b16 %v328
      %v878 = vunpack.c.h.b16 %v328
      %v879 = vunpack.c.l.b16 %v329
      %v880 = vunpack.c.h.b16 %v329
      %v881 = vunpack.c.l.b16 %v330
      %v882 = vunpack.c.h.b16 %v330
      %v883 = vunpack.c.l.b16 %v331
      %v884 = vpack.c.b16 %v809, %v784
      %v885 = vpack.c.b16 %v810, %v785
      %v886 = vpack.c.b16 %v811, %v786
      %v887 = vpack.c.b16 %v812, %v787
      %v888 = vpack.c.b16 %v813, %v788
      %v889 = vpack.c.b16 %v814, %v789
      %v890 = vpack.c.b16 %v815, %v790
      %v891 = vpack.c.b16 %v816, %v791
      %v892 = vpack.c.b16 %v817, %v792
      %v893 = vpack.c.b16 %v818, %v793
      %v894 = vpack.c.b16 %v819, %v794
      %v895 = vpack.c.b16 %v820, %v795
      %v896 = vpack.c.b16 %v821, %v796
      %v897 = vpack.c.b16 %v822, %v797
      %v898 = vpack.c.b16 %v823, %v798
      %v899 = vpack.c.b16 %v824, %v799
      %v900 = vpack.c.b16 %v825, %v800
      %v901 = vpack.c.b16 %v826, %v801
      %v902 = vpack.c.b16 %v827, %v802
      %v903 = vpack.c.b16 %v828, %v803
      %v904 = vpack.c.b16 %v829, %v804
      %v905 = vpack.c.b16 %v830, %v805
      %v906 = vpack.c.b16 %v831, %v806
      %v907 = vpack.c.b16 %v832, %v807
      %v908 = vpack.c.b16 %v833, %v808
      %v909 = vpack.c.b16 %v859, %v834
      %v910 = vpack.c.b16 %v860, %v835
      %v911 = vpack.c.b16 %v861, %v836
      %v912 = vpack.c.b16 %v862, %v837
      %v913 = vpack.c.b16 %v863, %v838
      %v914 = vpack.c.b16 %v864, %v839
      %v915 = vpack.c.b16 %v865, %v840
      %v916 = vpack.c.b16 %v866, %v841
      %v917 = vpack.c.b16 %v867, %v842
      %v918 = vpack.c.b16 %v868, %v843
      %v919 = vpack.c.b16 %v869, %v844
      %v920 = vpack.c.b16 %v870, %v845
      %v921 = vpack.c.b16 %v871, %v846
      %v922 = vpack.c.b16 %v872, %v847
      %v923 = vpack.c.b16 %v873, %v848
      %v924 = vpack.c.b16 %v874, %v849
      %v925 = vpack.c.b16 %v875, %v850
      %v926 = vpack.c.b16 %v876, %v851
      %v927 = vpack.c.b16 %v877, %v852
      %v928 = vpack.c.b16 %v878, %v853
      %v929 = vpack.c.b16 %v879, %v854
      %v930 = vpack.c.b16 %v880, %v855
      %v931 = vpack.c.b16 %v881, %v856
      %v932 = vpack.c.b16 %v882, %v857
      %v933 = vpack.c.b16 %v883, %v858
      %v1384 = vunpack.c.l.b16 %v332
      %v1385 = vunpack.c.l.b16 %v333
      %v1386 = vunpack.c.l.b16 %v334
      %v1387 = vunpack.c.l.b16 %v335
      %v1388 = vunpack.c.l.b16 %v336
      %v1389 = vunpack.c.l.b16 %v337
      %v1390 = vunpack.c.l.b16 %v338
      %v1391 = vunpack.c.l.b16 %v339
      %v1392 = vunpack.c.l.b16 %v340
      %v1393 = vunpack.c.l.b16 %v341
      %v1394 = vunpack.c.l.b16 %v342
      %v1395 = vunpack.c.l.b16 %v343
      %v1396 = vunpack.c.l.b16 %v344
      %v1397 = vunpack.c.l.b16 %v345
      %v1398 = vunpack.c.l.b16 %v346
      %v1399 = vunpack.c.l.b16 %v347
      %v1400 = vunpack.c.l.b16 %v348
      %v1401 = vunpack.c.l.b16 %v349
      %v1402 = vunpack.c.l.b16 %v350
      %v1403 = vunpack.c.l.b16 %v351
      %v1404 = vunpack.c.l.b16 %v352
      %v1405 = vunpack.c.l.b16 %v353
      %v1406 = vunpack.c.l.b16 %v354
      %v1407 = vunpack.c.l.b16 %v355
      %v1408 = vunpack.c.l.b16 %v356
      %v1409 = vunpack.c.l.b16 %v357
      %v1410 = vunpack.c.l.b16 %v358
      %v1411 = vunpack.c.l.b16 %v359
      %v1412 = vunpack.c.l.b16 %v360
      %v1413 = vunpack.c.l.b16 %v361
      %v1414 = vunpack.c.l.b16 %v362
      %v1415 = vunpack.c.l.b16 %v363
      %v1416 = vunpack.c.l.b16 %v364
      %v1417 = vunpack.c.l.b16 %v365
      %v1418 = vunpack.c.l.b16 %v366
      %v1419 = vunpack.c.l.b16 %v367
      %v1420 = vunpack.c.l.b16 %v368
      %v1421 = vunpack.c.l.b16 %v369
      %v1422 = vunpack.c.l.b16 %v370
      %v1423 = vunpack.c.l.b16 %v371
      %v1424 = vunpack.c.l.b16 %v372
      %v1425 = vunpack.c.l.b16 %v373
      %v1426 = vunpack.c.l.b16 %v374
      %v1427 = vunpack.c.l.b16 %v375
      %v1428 = vunpack.c.l.b16 %v376
      %v1429 = vunpack.c.l.b16 %v377
      %v1430 = vunpack.c.l.b16 %v378
      %v1431 = vunpack.c.l.b16 %v379
      %v1432 = vunpack.c.l.b16 %v380
      %v1433 = vunpack.c.l.b16 %v381
      %v1434 = vunpack.c.l.b16 %v382
      %v1435 = vunpack.c.l.b16 %v383
      %v1436 = vunpack.c.l.b16 %v384
      %v1437 = vunpack.c.l.b16 %v385
      %v1438 = vunpack.c.l.b16 %v386
      %v1439 = vunpack.c.l.b16 %v387
      %v1440 = vunpack.c.l.b16 %v388
      %v1441 = vunpack.c.l.b16 %v389
      %v1442 = vunpack.c.l.b16 %v390
      %v1443 = vunpack.c.l.b16 %v391
      %v1444 = vunpack.c.l.b16 %v392
      %v1445 = vunpack.c.l.b16 %v393
      %v1446 = vunpack.c.l.b16 %v394
      %v1447 = vunpack.c.l.b16 %v395
      %v1448 = vunpack.c.l.b16 %v396
      %v1449 = vunpack.c.l.b16 %v397
      %v1450 = vunpack.c.l.b16 %v398
      %v1451 = vunpack.c.l.b16 %v399
      %v1452 = vunpack.c.l.b16 %v400
      %v1453 = vunpack.c.l.b16 %v401
      %v1454 = vunpack.c.l.b16 %v402
      %v1455 = vunpack.c.l.b16 %v403
      %v1456 = vunpack.c.l.b16 %v404
      %v1457 = vunpack.c.l.b16 %v405
      %v1458 = vunpack.c.l.b16 %v406
      %v1459 = vunpack.c.l.b16 %v407
      %v1460 = vunpack.c.l.b16 %v408
      %v1461 = vunpack.c.l.b16 %v409
      %v1462 = vunpack.c.l.b16 %v410
      %v1463 = vunpack.c.l.b16 %v411
      %v1464 = vunpack.c.l.b16 %v412
      %v1465 = vunpack.c.l.b16 %v413
      %v1466 = vunpack.c.l.b16 %v414
      %v1467 = vunpack.c.l.b16 %v415
      %v1468 = vunpack.c.l.b16 %v416
      %v1469 = vunpack.c.l.b16 %v417
      %v1470 = vunpack.c.l.b16 %v418
      %v1471 = vunpack.c.l.b16 %v419
      %v1472 = vunpack.c.l.b16 %v420
      %v1473 = vunpack.c.l.b16 %v421
      %v1474 = vunpack.c.l.b16 %v422
      %v1475 = vunpack.c.l.b16 %v423
      %v1476 = vunpack.c.l.b16 %v424
      %v1477 = vunpack.c.l.b16 %v425
      %v1478 = vunpack.c.l.b16 %v426
      %v1479 = vunpack.c.l.b16 %v427
      %v1480 = vunpack.c.l.b16 %v428
      %v1481 = vunpack.c.l.b16 %v429
      %v1482 = vunpack.c.l.b16 %v430
      %v1483 = vunpack.c.l.b16 %v431
      %v1484 = vunpack.c.l.b16 %v432
      %v1485 = vunpack.c.l.b16 %v433
      %v1486 = vunpack.c.l.b16 %v434
      %v1487 = vunpack.c.l.b16 %v435
      %v1488 = vunpack.c.l.b16 %v436
      %v1489 = vunpack.c.l.b16 %v437
      %v1490 = vunpack.c.l.b16 %v438
      %v1491 = vunpack.c.l.b16 %v439
      %v1492 = vunpack.c.l.b16 %v440
      %v1493 = vunpack.c.l.b16 %v441
      %v1494 = vunpack.c.l.b16 %v442
      %v1495 = vunpack.c.l.b16 %v443
      %v1496 = vunpack.c.l.b16 %v444
      %v1497 = vunpack.c.l.b16 %v445
      %v1498 = vunpack.c.l.b16 %v446
      %v1499 = vunpack.c.l.b16 %v447
      %v1500 = vunpack.c.l.b16 %v448
      %v1501 = vunpack.c.l.b16 %v449
      %v1502 = vunpack.c.l.b16 %v450
      %v1503 = vunpack.c.l.b16 %v451
      %v1504 = vunpack.c.l.b16 %v452
      %v1505 = vunpack.c.l.b16 %v453
      %v1506 = vunpack.c.l.b16 %v454
      %v1507 = vunpack.c.l.b16 %v455
      %v1508 = vunpack.c.l.b16 %v456
      %v1509 = vunpack.c.l.b16 %v457
      %v1510 = vunpack.c.l.b16 %v458
      %v1511 = vunpack.c.l.b16 %v459
      %v1512 = vunpack.c.l.b16 %v460
      %v1513 = vunpack.c.l.b16 %v461
      %v1514 = vunpack.c.l.b16 %v462
      %v1515 = vunpack.c.l.b16 %v463
      %v1516 = vunpack.c.l.b16 %v464
      %v1517 = vunpack.c.l.b16 %v465
      %v1518 = vunpack.c.l.b16 %v466
      %v1519 = vunpack.c.l.b16 %v467
      %v1520 = vunpack.c.l.b16 %v468
      %v1521 = vunpack.c.l.b16 %v469
      %v1522 = vunpack.c.l.b16 %v470
      %v1523 = vunpack.c.l.b16 %v471
      %v1524 = vunpack.c.l.b16 %v472
      %v1525 = vunpack.c.l.b16 %v473
      %v1526 = vunpack.c.l.b16 %v474
      %v1527 = vunpack.c.l.b16 %v475
      %v1528 = vunpack.c.l.b16 %v476
      %v1529 = vunpack.c.l.b16 %v477
      %v1530 = vunpack.c.l.b16 %v478
      %v1531 = vunpack.c.l.b16 %v479
      %v1532 = vunpack.c.l.b16 %v480
      %v1533 = vunpack.c.l.b16 %v481
      %v1534 = vunpack.c.l.b16 %v482
      %v1535 = vunpack.c.l.b16 %v483
      %v1536 = vunpack.c.l.b16 %v484
      %v1537 = vunpack.c.l.b16 %v485
      %v1538 = vunpack.c.l.b16 %v486
      %v1539 = vunpack.c.l.b16 %v487
      %v1540 = vunpack.c.l.b16 %v488
      %v1541 = vunpack.c.l.b16 %v489
      %v1542 = vunpack.c.l.b16 %v490
      %v1543 = vunpack.c.l.b16 %v491
      %v1544 = vunpack.c.l.b16 %v492
      %v1545 = vunpack.c.l.b16 %v493
      %v1546 = vunpack.c.l.b16 %v494
      %v1547 = vunpack.c.l.b16 %v495
      %v1548 = vunpack.c.l.b16 %v496
      %v1549 = vunpack.c.l.b16 %v497
      %v1550 = vunpack.c.l.b16 %v498
      %v1551 = vunpack.c.l.b16 %v499
      %v1552 = vunpack.c.l.b16 %v500
      %v1553 = vunpack.c.l.b16 %v501
      %v1554 = vunpack.c.l.b16 %v502
      %v1555 = vunpack.c.l.b16 %v503
      %v1556 = vunpack.c.l.b16 %v504
      %v1557 = vunpack.c.l.b16 %v505
      %v1558 = vunpack.c.l.b16 %v506
      %v1559 = vunpack.c.l.b16 %v507
      %v1560 = vunpack.c.l.b16 %v508
      %v1561 = vunpack.c.l.b16 %v509
      %v1562 = vunpack.c.l.b16 %v510
      %v1563 = vunpack.c.l.b16 %v511
      %v1564 = vunpack.c.l.b16 %v512
      %v1565 = vunpack.c.l.b16 %v513
      %v1566 = vunpack.c.l.b16 %v514
      %v1567 = vunpack.c.l.b16 %v515
      %v1568 = vunpack.c.l.b16 %v516
      %v1569 = vunpack.c.l.b16 %v517
      %v1570 = vunpack.c.l.b16 %v518
      %v1571 = vunpack.c.l.b16 %v519
      %v1572 = vunpack.c.l.b16 %v520
      %v1573 = vunpack.c.l.b16 %v521
      %v1574 = vunpack.c.l.b16 %v522
      %v1575 = vunpack.c.l.b16 %v523
      %v1576 = vunpack.c.l.b16 %v524
      %v1577 = vunpack.c.l.b16 %v525
      %v1578 = vunpack.c.l.b16 %v526
      %v1579 = vunpack.c.l.b16 %v527
      %v1580 = vunpack.c.l.b16 %v528
      %v1581 = vunpack.c.l.b16 %v529
      %v1582 = vunpack.c.l.b16 %v530
      %v1583 = vunpack.c.l.b16 %v531
      %v1584 = vunpack.c.l.b16 %v532
      %v1585 = vunpack.c.l.b16 %v533
      %v1586 = vunpack.c.l.b16 %v534
      %v1587 = vunpack.c.l.b16 %v535
      %v1588 = vunpack.c.l.b16 %v536
      %v1589 = vunpack.c.l.b16 %v537
      %v1590 = vunpack.c.l.b16 %v538
      %v1591 = vunpack.c.l.b16 %v539
      %v1592 = vunpack.c.l.b16 %v540
      %v1593 = vunpack.c.l.b16 %v541
      %v1594 = vunpack.c.l.b16 %v542
      %v1595 = vunpack.c.l.b16 %v543
      %v1596 = vunpack.c.l.b16 %v544
      %v1597 = vunpack.c.l.b16 %v545
      %v1598 = vunpack.c.l.b16 %v546
      %v1599 = vunpack.c.l.b16 %v547
      %v1600 = vunpack.c.l.b16 %v548
      %v1601 = vunpack.c.l.b16 %v549
      %v1602 = vunpack.c.l.b16 %v550
      %v1603 = vunpack.c.l.b16 %v551
      %v1604 = vunpack.c.l.b16 %v552
      %v1605 = vunpack.c.l.b16 %v553
      %v1606 = vunpack.c.l.b16 %v554
      %v1607 = vunpack.c.l.b16 %v555
      %v1608 = vunpack.c.l.b16 %v556
      %v1609 = vunpack.c.l.b16 %v557
      %v1610 = vunpack.c.l.b16 %v558
      %v1611 = vunpack.c.l.b16 %v559
      %v1612 = vunpack.c.l.b16 %v560
      %v1613 = vunpack.c.l.b16 %v561
      %v1614 = vunpack.c.l.b16 %v562
      %v1615 = vunpack.c.l.b16 %v563
      %v1616 = vunpack.c.l.b16 %v564
      %v1617 = vunpack.c.l.b16 %v565
      %v1618 = vunpack.c.l.b16 %v566
      %v1619 = vunpack.c.l.b16 %v567
      %v1620 = vunpack.c.l.b16 %v568
      %v1621 = vunpack.c.l.b16 %v569
      %v1622 = vunpack.c.l.b16 %v570
      %v1623 = vunpack.c.l.b16 %v571
      %v1624 = vunpack.c.l.b16 %v572
      %v1625 = vunpack.c.l.b16 %v573
      %v1626 = vunpack.c.l.b16 %v574
      %v1627 = vunpack.c.l.b16 %v575
      %v1628 = vunpack.c.l.b16 %v576
      %v1629 = vunpack.c.l.b16 %v577
      %v1630 = vunpack.c.l.b16 %v578
      %v1631 = vunpack.c.l.b16 %v579
      %v1632 = vunpack.c.l.b16 %v580
      %v1633 = vunpack.c.l.b16 %v581
      %v1634 = vunpack.c.l.b16 %v582
      %v1635 = vunpack.c.l.b16 %v583
      %v1636 = vunpack.c.l.b16 %v584
      %v1637 = vunpack.c.l.b16 %v585
      %v1638 = vunpack.c.l.b16 %v586
      %v1639 = vunpack.c.l.b16 %v587
      %v1640 = vunpack.c.l.b16 %v588
      %v1641 = vunpack.c.l.b16 %v589
      %v1642 = vunpack.c.l.b16 %v590
      %v1643 = vunpack.c.l.b16 %v591
      %v1644 = vunpack.c.l.b16 %v592
      %v1645 = vunpack.c.l.b16 %v593
      %v1646 = vunpack.c.l.b16 %v594
      %v1647 = vunpack.c.l.b16 %v595
      %v1648 = vunpack.c.l.b16 %v596
      %v1649 = vunpack.c.l.b16 %v597
      %v1650 = vunpack.c.l.b16 %v598
      %v1651 = vunpack.c.l.b16 %v599
      %v1652 = vunpack.c.l.b16 %v600
      %v1653 = vunpack.c.l.b16 %v601
      %v1654 = vunpack.c.l.b16 %v602
      %v1655 = vunpack.c.l.b16 %v603
      %v1656 = vunpack.c.l.b16 %v604
      %v1657 = vunpack.c.l.b16 %v605
      %v1658 = vunpack.c.l.b16 %v606
      %v1659 = vunpack.c.l.b16 %v607
      %v1660 = vunpack.c.l.b16 %v608
      %v1661 = vunpack.c.l.b16 %v609
      %v1662 = vunpack.c.l.b16 %v610
      %v1663 = vunpack.c.l.b16 %v611
      %v1664 = vunpack.c.l.b16 %v612
      %v1665 = vunpack.c.l.b16 %v613
      %v1666 = vunpack.c.l.b16 %v614
      %v1667 = vunpack.c.l.b16 %v615
      %v1668 = vunpack.c.l.b16 %v616
      %v1669 = vunpack.c.l.b16 %v617
      %v1670 = vunpack.c.l.b16 %v618
      %v1671 = vunpack.c.l.b16 %v619
      %v1672 = vunpack.c.l.b16 %v620
      %v1673 = vunpack.c.l.b16 %v621
      %v1674 = vunpack.c.l.b16 %v622
      %v1675 = vunpack.c.l.b16 %v623
      %v1676 = vunpack.c.l.b16 %v624
      %v1677 = vunpack.c.l.b16 %v625
      %v1678 = vunpack.c.l.b16 %v626
      %v1679 = vunpack.c.l.b16 %v627
      %v1680 = vunpack.c.l.b16 %v628
      %v1681 = vunpack.c.l.b16 %v629
      %v1682 = vunpack.c.l.b16 %v630
      %v1683 = vunpack.c.l.b16 %v631
      %v1684 = vunpack.c.l.b16 %v632
      %v1685 = vunpack.c.l.b16 %v633
      %v1686 = vunpack.c.l.b16 %v634
      %v1687 = vunpack.c.l.b16 %v635
      %v1688 = vunpack.c.l.b16 %v636
      %v1689 = vunpack.c.l.b16 %v637
      %v1690 = vunpack.c.l.b16 %v638
      %v1691 = vunpack.c.l.b16 %v639
      %v1692 = vunpack.c.l.b16 %v640
      %v1693 = vunpack.c.l.b16 %v641
      %v1694 = vunpack.c.l.b16 %v642
      %v1695 = vunpack.c.l.b16 %v643
      %v1696 = vunpack.c.l.b16 %v644
      %v1697 = vunpack.c.l.b16 %v645
      %v1698 = vunpack.c.l.b16 %v646
      %v1699 = vunpack.c.l.b16 %v647
      %v1700 = vunpack.c.l.b16 %v648
      %v1701 = vunpack.c.l.b16 %v649
      %v1702 = vunpack.c.l.b16 %v650
      %v1703 = vunpack.c.l.b16 %v651
      %v1704 = vunpack.c.l.b16 %v652
      %v1705 = vunpack.c.l.b16 %v653
      %v1706 = vunpack.c.l.b16 %v654
      %v1707 = vunpack.c.l.b16 %v655
      %v1708 = vunpack.c.l.b16 %v656
      %v1709 = vunpack.c.l.b16 %v657
      %v1710 = vunpack.c.l.b16 %v658
      %v1711 = vunpack.c.l.b16 %v659
      %v1712 = vunpack.c.l.b16 %v660
      %v1713 = vunpack.c.l.b16 %v661
      %v1714 = vunpack.c.l.b16 %v662
      %v1715 = vunpack.c.l.b16 %v663
      %v1716 = vunpack.c.l.b16 %v664
      %v1717 = vunpack.c.l.b16 %v665
      %v1718 = vunpack.c.l.b16 %v666
      %v1719 = vunpack.c.l.b16 %v667
      %v1720 = vunpack.c.l.b16 %v668
      %v1721 = vunpack.c.l.b16 %v669
      %v1722 = vunpack.c.l.b16 %v670
      %v1723 = vunpack.c.l.b16 %v671
      %v1724 = vunpack.c.l.b16 %v672
      %v1725 = vunpack.c.l.b16 %v673
      %v1726 = vunpack.c.l.b16 %v674
      %v1727 = vunpack.c.l.b16 %v675
      %v1728 = vunpack.c.l.b16 %v676
      %v1729 = vunpack.c.l.b16 %v677
      %v1730 = vunpack.c.l.b16 %v678
      %v1731 = vunpack.c.l.b16 %v679
      %v1732 = vunpack.c.l.b16 %v680
      %v1733 = vunpack.c.l.b16 %v681
      %v1734 = vunpack.c.l.b16 %v682
      %v1735 = vunpack.c.l.b16 %v683
      %v1736 = vunpack.c.l.b16 %v684
      %v1737 = vunpack.c.l.b16 %v685
      %v1738 = vunpack.c.l.b16 %v686
      %v1739 = vunpack.c.l.b16 %v687
      %v1740 = vunpack.c.l.b16 %v688
      %v1741 = vunpack.c.l.b16 %v689
      %v1742 = vunpack.c.l.b16 %v690
      %v1743 = vunpack.c.l.b16 %v691
      %v1744 = vunpack.c.l.b16 %v692
      %v1745 = vunpack.c.l.b16 %v693
      %v1746 = vunpack.c.l.b16 %v694
      %v1747 = vunpack.c.l.b16 %v695
      %v1748 = vunpack.c.l.b16 %v696
      %v1749 = vunpack.c.l.b16 %v697
      %v1750 = vunpack.c.l.b16 %v698
      %v1751 = vunpack.c.l.b16 %v699
      %v1752 = vunpack.c.l.b16 %v700
      %v1753 = vunpack.c.l.b16 %v701
      %v1754 = vunpack.c.l.b16 %v702
      %v1755 = vunpack.c.l.b16 %v703
      %v1756 = vunpack.c.l.b16 %v704
      %v1757 = vunpack.c.l.b16 %v705
      %v1758 = vunpack.c.l.b16 %v706
      %v1759 = vunpack.c.l.b16 %v707
      %v1760 = vunpack.c.l.b16 %v708
      %v1761 = vunpack.c.l.b16 %v709
      %v1762 = vunpack.c.l.b16 %v710
      %v1763 = vunpack.c.l.b16 %v711
      %v1764 = vunpack.c.l.b16 %v712
      %v1765 = vunpack.c.l.b16 %v713
      %v1766 = vunpack.c.l.b16 %v714
      %v1767 = vunpack.c.l.b16 %v715
      %v1768 = vunpack.c.l.b16 %v716
      %v1769 = vunpack.c.l.b16 %v717
      %v1770 = vunpack.c.l.b16 %v718
      %v1771 = vunpack.c.l.b16 %v719
      %v1772 = vunpack.c.l.b16 %v720
      %v1773 = vunpack.c.l.b16 %v721
      %v1774 = vunpack.c.l.b16 %v722
      %v1775 = vunpack.c.l.b16 %v723
      %v1776 = vunpack.c.l.b16 %v724
      %v1777 = vunpack.c.l.b16 %v725
      %v1778 = vunpack.c.l.b16 %v726
      %v1779 = vunpack.c.l.b16 %v727
      %v1780 = vunpack.c.l.b16 %v728
      %v1781 = vunpack.c.l.b16 %v729
      %v1782 = vunpack.c.l.b16 %v730
      %v1783 = vunpack.c.l.b16 %v731
      %v1784 = vpack.c.b16 %v1385, %v1384
      %v1785 = vpack.c.b16 %v1387, %v1386
      %v1786 = vpack.c.b16 %v1389, %v1388
      %v1787 = vpack.c.b16 %v1391, %v1390
      %v1788 = vpack.c.b16 %v1393, %v1392
      %v1789 = vpack.c.b16 %v1395, %v1394
      %v1790 = vpack.c.b16 %v1397, %v1396
      %v1791 = vpack.c.b16 %v1399, %v1398
      %v1792 = vpack.c.b16 %v1401, %v1400
      %v1793 = vpack.c.b16 %v1403, %v1402
      %v1794 = vpack.c.b16 %v1405, %v1404
      %v1795 = vpack.c.b16 %v1407, %v1406
      %v1796 = vpack.c.b16 %v1409, %v1408
      %v1797 = vpack.c.b16 %v1411, %v1410
      %v1798 = vpack.c.b16 %v1413, %v1412
      %v1799 = vpack.c.b16 %v1415, %v1414
      %v1800 = vpack.c.b16 %v1417, %v1416
      %v1801 = vpack.c.b16 %v1419, %v1418
      %v1802 = vpack.c.b16 %v1421, %v1420
      %v1803 = vpack.c.b16 %v1423, %v1422
      %v1804 = vpack.c.b16 %v1425, %v1424
      %v1805 = vpack.c.b16 %v1427, %v1426
      %v1806 = vpack.c.b16 %v1429, %v1428
      %v1807 = vpack.c.b16 %v1431, %v1430
      %v1808 = vpack.c.b16 %v1433, %v1432
      %v1809 = vpack.c.b16 %v1435, %v1434
      %v1810 = vpack.c.b16 %v1437, %v1436
      %v1811 = vpack.c.b16 %v1439, %v1438
      %v1812 = vpack.c.b16 %v1441, %v1440
      %v1813 = vpack.c.b16 %v1443, %v1442
      %v1814 = vpack.c.b16 %v1445, %v1444
      %v1815 = vpack.c.b16 %v1447, %v1446
      %v1816 = vpack.c.b16 %v1449, %v1448
      %v1817 = vpack.c.b16 %v1451, %v1450
      %v1818 = vpack.c.b16 %v1453, %v1452
      %v1819 = vpack.c.b16 %v1455, %v1454
      %v1820 = vpack.c.b16 %v1457, %v1456
      %v1821 = vpack.c.b16 %v1459, %v1458
      %v1822 = vpack.c.b16 %v1461, %v1460
      %v1823 = vpack.c.b16 %v1463, %v1462
      %v1824 = vpack.c.b16 %v1465, %v1464
      %v1825 = vpack.c.b16 %v1467, %v1466
      %v1826 = vpack.c.b16 %v1469, %v1468
      %v1827 = vpack.c.b16 %v1471, %v1470
      %v1828 = vpack.c.b16 %v1473, %v1472
      %v1829 = vpack.c.b16 %v1475, %v1474
      %v1830 = vpack.c.b16 %v1477, %v1476
      %v1831 = vpack.c.b16 %v1479, %v1478
      %v1832 = vpack.c.b16 %v1481, %v1480
      %v1833 = vpack.c.b16 %v1483, %v1482
      %v1834 = vpack.c.b16 %v1485, %v1484
      %v1835 = vpack.c.b16 %v1487, %v1486
      %v1836 = vpack.c.b16 %v1489, %v1488
      %v1837 = vpack.c.b16 %v1491, %v1490
      %v1838 = vpack.c.b16 %v1493, %v1492
      %v1839 = vpack.c.b16 %v1495, %v1494
      %v1840 = vpack.c.b16 %v1497, %v1496
      %v1841 = vpack.c.b16 %v1499, %v1498
      %v1842 = vpack.c.b16 %v1501, %v1500
      %v1843 = vpack.c.b16 %v1503, %v1502
      %v1844 = vpack.c.b16 %v1505, %v1504
      %v1845 = vpack.c.b16 %v1507, %v1506
      %v1846 = vpack.c.b16 %v1509, %v1508
      %v1847 = vpack.c.b16 %v1511, %v1510
      %v1848 = vpack.c.b16 %v1513, %v1512
      %v1849 = vpack.c.b16 %v1515, %v1514
      %v1850 = vpack.c.b16 %v1517, %v1516
      %v1851 = vpack.c.b16 %v1519, %v1518
      %v1852 = vpack.c.b16 %v1521, %v1520
      %v1853 = vpack.c.b16 %v1523, %v1522
      %v1854 = vpack.c.b16 %v1525, %v1524
      %v1855 = vpack.c.b16 %v1527, %v1526
      %v1856 = vpack.c.b16 %v1529, %v1528
      %v1857 = vpack.c.b16 %v1531, %v1530
      %v1858 = vpack.c.b16 %v1533, %v1532
      %v1859 = vpack.c.b16 %v1535, %v1534
      %v1860 = vpack.c.b16 %v1537, %v1536
      %v1861 = vpack.c.b16 %v1539, %v1538
      %v1862 = vpack.c.b16 %v1541, %v1540
      %v1863 = vpack.c.b16 %v1543, %v1542
      %v1864 = vpack.c.b16 %v1545, %v1544
      %v1865 = vpack.c.b16 %v1547, %v1546
      %v1866 = vpack.c.b16 %v1549, %v1548
      %v1867 = vpack.c.b16 %v1551, %v1550
      %v1868 = vpack.c.b16 %v1553, %v1552
      %v1869 = vpack.c.b16 %v1555, %v1554
      %v1870 = vpack.c.b16 %v1557, %v1556
      %v1871 = vpack.c.b16 %v1559, %v1558
      %v1872 = vpack.c.b16 %v1561, %v1560
      %v1873 = vpack.c.b16 %v1563, %v1562
      %v1874 = vpack.c.b16 %v1565, %v1564
      %v1875 = vpack.c.b16 %v1567, %v1566
      %v1876 = vpack.c.b16 %v1569, %v1568
      %v1877 = vpack.c.b16 %v1571, %v1570
      %v1878 = vpack.c.b16 %v1573, %v1572
      %v1879 = vpack.c.b16 %v1575, %v1574
      %v1880 = vpack.c.b16 %v1577, %v1576
      %v1881 = vpack.c.b16 %v1579, %v1578
      %v1882 = vpack.c.b16 %v1581, %v1580
      %v1883 = vpack.c.b16 %v1583, %v1582
      %v1884 = vpack.c.b16 %v1585, %v1584
      %v1885 = vpack.c.b16 %v1587, %v1586
      %v1886 = vpack.c.b16 %v1589, %v1588
      %v1887 = vpack.c.b16 %v1591, %v1590
      %v1888 = vpack.c.b16 %v1593, %v1592
      %v1889 = vpack.c.b16 %v1595, %v1594
      %v1890 = vpack.c.b16 %v1597, %v1596
      %v1891 = vpack.c.b16 %v1599, %v1598
      %v1892 = vpack.c.b16 %v1601, %v1600
      %v1893 = vpack.c.b16 %v1603, %v1602
      %v1894 = vpack.c.b16 %v1605, %v1604
      %v1895 = vpack.c.b16 %v1607, %v1606
      %v1896 = vpack.c.b16 %v1609, %v1608
      %v1897 = vpack.c.b16 %v1611, %v1610
      %v1898 = vpack.c.b16 %v1613, %v1612
      %v1899 = vpack.c.b16 %v1615, %v1614
      %v1900 = vpack.c.b16 %v1617, %v1616
      %v1901 = vpack.c.b16 %v1619, %v1618
      %v1902 = vpack.c.b16 %v1621, %v1620
      %v1903 = vpack.c.b16 %v1623, %v1622
      %v1904 = vpack.c.b16 %v1625, %v1624
      %v1905 = vpack.c.b16 %v1627, %v1626
      %v1906 = vpack.c.b16 %v1629, %v1628
      %v1907 = vpack.c.b16 %v1631, %v1630
      %v1908 = vpack.c.b16 %v1633, %v1632
      %v1909 = vpack.c.b16 %v1635, %v1634
      %v1910 = vpack.c.b16 %v1637, %v1636
      %v1911 = vpack.c.b16 %v1639, %v1638
      %v1912 = vpack.c.b16 %v1641, %v1640
      %v1913 = vpack.c.b16 %v1643, %v1642
      %v1914 = vpack.c.b16 %v1645, %v1644
      %v1915 = vpack.c.b16 %v1647, %v1646
      %v1916 = vpack.c.b16 %v1649, %v1648
      %v1917 = vpack.c.b16 %v1651, %v1650
      %v1918 = vpack.c.b16 %v1653, %v1652
      %v1919 = vpack.c.b16 %v1655, %v1654
      %v1920 = vpack.c.b16 %v1657, %v1656
      %v1921 = vpack.c.b16 %v1659, %v1658
      %v1922 = vpack.c.b16 %v1661, %v1660
      %v1923 = vpack.c.b16 %v1663, %v1662
      %v1924 = vpack.c.b16 %v1665, %v1664
      %v1925 = vpack.c.b16 %v1667, %v1666
      %v1926 = vpack.c.b16 %v1669, %v1668
      %v1927 = vpack.c.b16 %v1671, %v1670
      %v1928 = vpack.c.b16 %v1673, %v1672
      %v1929 = vpack.c.b16 %v1675, %v1674
      %v1930 = vpack.c.b16 %v1677, %v1676
      %v1931 = vpack.c.b16 %v1679, %v1678
      %v1932 = vpack.c.b16 %v1681, %v1680
      %v1933 = vpack.c.b16 %v1683, %v1682
      %v1934 = vpack.c.b16 %v1685, %v1684
      %v1935 = vpack.c.b16 %v1687, %v1686
      %v1936 = vpack.c.b16 %v1689, %v1688
      %v1937 = vpack.c.b16 %v1691, %v1690
      %v1938 = vpack.c.b16 %v1693, %v1692
      %v1939 = vpack.c.b16 %v1695, %v1694
      %v1940 = vpack.c.b16 %v1697, %v1696
      %v1941 = vpack.c.b16 %v1699, %v1698
      %v1942 = vpack.c.b16 %v1701, %v1700
      %v1943 = vpack.c.b16 %v1703, %v1702
      %v1944 = vpack.c.b16 %v1705, %v1704
      %v1945 = vpack.c.b16 %v1707, %v1706
      %v1946 = vpack.c.b16 %v1709, %v1708
      %v1947 = vpack.c.b16 %v1711, %v1710
      %v1948 = vpack.c.b16 %v1713, %v1712
      %v1949 = vpack.c.b16 %v1715, %v1714
      %v1950 = vpack.c.b16 %v1717, %v1716
      %v1951 = vpack.c.b16 %v1719, %v1718
      %v1952 = vpack.c.b16 %v1721, %v1720
      %v1953 = vpack.c.b16 %v1723, %v1722
      %v1954 = vpack.c.b16 %v1725, %v1724
      %v1955 = vpack.c.b16 %v1727, %v1726
      %v1956 = vpack.c.b16 %v1729, %v1728
      %v1957 = vpack.c.b16 %v1731, %v1730
      %v1958 = vpack.c.b16 %v1733, %v1732
      %v1959 = vpack.c.b16 %v1735, %v1734
      %v1960 = vpack.c.b16 %v1737, %v1736
      %v1961 = vpack.c.b16 %v1739, %v1738
      %v1962 = vpack.c.b16 %v1741, %v1740
      %v1963 = vpack.c.b16 %v1743, %v1742
      %v1964 = vpack.c.b16 %v1745, %v1744
      %v1965 = vpack.c.b16 %v1747, %v1746
      %v1966 = vpack.c.b16 %v1749, %v1748
      %v1967 = vpack.c.b16 %v1751, %v1750
      %v1968 = vpack.c.b16 %v1753, %v1752
      %v1969 = vpack.c.b16 %v1755, %v1754
      %v1970 = vpack.c.b16 %v1757, %v1756
      %v1971 = vpack.c.b16 %v1759, %v1758
      %v1972 = vpack.c.b16 %v1761, %v1760
      %v1973 = vpack.c.b16 %v1763, %v1762
      %v1974 = vpack.c.b16 %v1765, %v1764
      %v1975 = vpack.c.b16 %v1767, %v1766
      %v1976 = vpack.c.b16 %v1769, %v1768
      %v1977 = vpack.c.b16 %v1771, %v1770
      %v1978 = vpack.c.b16 %v1773, %v1772
      %v1979 = vpack.c.b16 %v1775, %v1774
      %v1980 = vpack.c.b16 %v1777, %v1776
      %v1981 = vpack.c.b16 %v1779, %v1778
      %v1982 = vpack.c.b16 %v1781, %v1780
      %v1983 = vpack.c.b16 %v1783, %v1782
      %2184 = vmatpush.bf16.msra.mxu0 %v1791
      %2185 = vmatpush.bf16.msra.mxu0 %v1790
      %2186 = vmatpush.bf16.msra.mxu0 %v1789
      %2187 = vmatpush.bf16.msra.mxu0 %v1788
      %2188 = vmatpush.bf16.msra.mxu0 %v1787
      %2189 = vmatpush.bf16.msra.mxu0 %v1786
      %2190 = vmatpush.bf16.msra.mxu0 %v1785
      %2191 = vmatpush.bf16.msra.mxu0 %v1784
      %2192 = vmatmul.bf16.gmra.mxu0 %v884
      %v2193 = vpop.f32.mrf.mxu0
      %v2194 = vadd.f32 0.0, %v2193
      %v2195 = vpop.f32.mrf.mxu0
      %v2196 = vadd.f32 0.0, %v2195
      %2197 = vmatmul.bf16.gmra.mxu0 %v909
      %v2198 = vpop.f32.mrf.mxu0
      %v2199 = vadd.f32 0.0, %v2198
      %v2200 = vpop.f32.mrf.mxu0
      %v2201 = vadd.f32 0.0, %v2200
      %2202 = vdwg.mxu0
      %2203 = vmatpush.bf16.msra.mxu0 %v1799
      %2204 = vmatpush.bf16.msra.mxu0 %v1798
      %2205 = vmatpush.bf16.msra.mxu0 %v1797
      %2206 = vmatpush.bf16.msra.mxu0 %v1796
      %2207 = vmatpush.bf16.msra.mxu0 %v1795
      %2208 = vmatpush.bf16.msra.mxu0 %v1794
      %2209 = vmatpush.bf16.msra.mxu0 %v1793
      %2210 = vmatpush.bf16.msra.mxu0 %v1792
      %2211 = vmatmul.bf16.gmra.mxu0 %v885
      %v2212 = vpop.f32.mrf.mxu0
      %v2213 = vadd.f32 %v2194, %v2212
      %v2214 = vpop.f32.mrf.mxu0
      %v2215 = vadd.f32 %v2196, %v2214
      %2216 = vmatmul.bf16.gmra.mxu0 %v910
      %v2217 = vpop.f32.mrf.mxu0
      %v2218 = vadd.f32 %v2199, %v2217
      %v2219 = vpop.f32.mrf.mxu0
      %v2220 = vadd.f32 %v2201, %v2219
      %2221 = vdwg.mxu0
      %2222 = vmatpush.bf16.msra.mxu0 %v1807
      %2223 = vmatpush.bf16.msra.mxu0 %v1806
      %2224 = vmatpush.bf16.msra.mxu0 %v1805
      %2225 = vmatpush.bf16.msra.mxu0 %v1804
      %2226 = vmatpush.bf16.msra.mxu0 %v1803
      %2227 = vmatpush.bf16.msra.mxu0 %v1802
      %2228 = vmatpush.bf16.msra.mxu0 %v1801
      %2229 = vmatpush.bf16.msra.mxu0 %v1800
      %2230 = vmatmul.bf16.gmra.mxu0 %v886
      %v2231 = vpop.f32.mrf.mxu0
      %v2232 = vadd.f32 %v2213, %v2231
      %v2233 = vpop.f32.mrf.mxu0
      %v2234 = vadd.f32 %v2215, %v2233
      %2235 = vmatmul.bf16.gmra.mxu0 %v911
      %v2236 = vpop.f32.mrf.mxu0
      %v2237 = vadd.f32 %v2218, %v2236
      %v2238 = vpop.f32.mrf.mxu0
      %v2239 = vadd.f32 %v2220, %v2238
      %2240 = vdwg.mxu0
      %2241 = vmatpush.bf16.msra.mxu0 %v1815
      %2242 = vmatpush.bf16.msra.mxu0 %v1814
      %2243 = vmatpush.bf16.msra.mxu0 %v1813
      %2244 = vmatpush.bf16.msra.mxu0 %v1812
      %2245 = vmatpush.bf16.msra.mxu0 %v1811
      %2246 = vmatpush.bf16.msra.mxu0 %v1810
      %2247 = vmatpush.bf16.msra.mxu0 %v1809
      %2248 = vmatpush.bf16.msra.mxu0 %v1808
      %2249 = vmatmul.bf16.gmra.mxu0 %v887
      %v2250 = vpop.f32.mrf.mxu0
      %v2251 = vadd.f32 %v2232, %v2250
      %v2252 = vpop.f32.mrf.mxu0
      %v2253 = vadd.f32 %v2234, %v2252
      %2254 = vmatmul.bf16.gmra.mxu0 %v912
      %v2255 = vpop.f32.mrf.mxu0
      %v2256 = vadd.f32 %v2237, %v2255
      %v2257 = vpop.f32.mrf.mxu0
      %v2258 = vadd.f32 %v2239, %v2257
      %2259 = vdwg.mxu0
      %2260 = vmatpush.bf16.msra.mxu0 %v1823
      %2261 = vmatpush.bf16.msra.mxu0 %v1822
      %2262 = vmatpush.bf16.msra.mxu0 %v1821
      %2263 = vmatpush.bf16.msra.mxu0 %v1820
      %2264 = vmatpush.bf16.msra.mxu0 %v1819
      %2265 = vmatpush.bf16.msra.mxu0 %v1818
      %2266 = vmatpush.bf16.msra.mxu0 %v1817
      %2267 = vmatpush.bf16.msra.mxu0 %v1816
      %2268 = vmatmul.bf16.gmra.mxu0 %v888
      %v2269 = vpop.f32.mrf.mxu0
      %v2270 = vadd.f32 %v2251, %v2269
      %v2271 = vpop.f32.mrf.mxu0
      %v2272 = vadd.f32 %v2253, %v2271
      %2273 = vmatmul.bf16.gmra.mxu0 %v913
      %v2274 = vpop.f32.mrf.mxu0
      %v2275 = vadd.f32 %v2256, %v2274
      %v2276 = vpop.f32.mrf.mxu0
      %v2277 = vadd.f32 %v2258, %v2276
      %2278 = vdwg.mxu0
      %2279 = vmatpush.bf16.msra.mxu0 %v1831
      %2280 = vmatpush.bf16.msra.mxu0 %v1830
      %2281 = vmatpush.bf16.msra.mxu0 %v1829
      %2282 = vmatpush.bf16.msra.mxu0 %v1828
      %2283 = vmatpush.bf16.msra.mxu0 %v1827
      %2284 = vmatpush.bf16.msra.mxu0 %v1826
      %2285 = vmatpush.bf16.msra.mxu0 %v1825
      %2286 = vmatpush.bf16.msra.mxu0 %v1824
      %2287 = vmatmul.bf16.gmra.mxu0 %v889
      %v2288 = vpop.f32.mrf.mxu0
      %v2289 = vadd.f32 %v2270, %v2288
      %v2290 = vpop.f32.mrf.mxu0
      %v2291 = vadd.f32 %v2272, %v2290
      %2292 = vmatmul.bf16.gmra.mxu0 %v914
      %v2293 = vpop.f32.mrf.mxu0
      %v2294 = vadd.f32 %v2275, %v2293
      %v2295 = vpop.f32.mrf.mxu0
      %v2296 = vadd.f32 %v2277, %v2295
      %2297 = vdwg.mxu0
      %2298 = vmatpush.bf16.msra.mxu0 %v1839
      %2299 = vmatpush.bf16.msra.mxu0 %v1838
      %2300 = vmatpush.bf16.msra.mxu0 %v1837
      %2301 = vmatpush.bf16.msra.mxu0 %v1836
      %2302 = vmatpush.bf16.msra.mxu0 %v1835
      %2303 = vmatpush.bf16.msra.mxu0 %v1834
      %2304 = vmatpush.bf16.msra.mxu0 %v1833
      %2305 = vmatpush.bf16.msra.mxu0 %v1832
      %2306 = vmatmul.bf16.gmra.mxu0 %v890
      %v2307 = vpop.f32.mrf.mxu0
      %v2308 = vadd.f32 %v2289, %v2307
      %v2309 = vpop.f32.mrf.mxu0
      %v2310 = vadd.f32 %v2291, %v2309
      %2311 = vmatmul.bf16.gmra.mxu0 %v915
      %v2312 = vpop.f32.mrf.mxu0
      %v2313 = vadd.f32 %v2294, %v2312
      %v2314 = vpop.f32.mrf.mxu0
      %v2315 = vadd.f32 %v2296, %v2314
      %2316 = vdwg.mxu0
      %2317 = vmatpush.bf16.msra.mxu0 %v1847
      %2318 = vmatpush.bf16.msra.mxu0 %v1846
      %2319 = vmatpush.bf16.msra.mxu0 %v1845
      %2320 = vmatpush.bf16.msra.mxu0 %v1844
      %2321 = vmatpush.bf16.msra.mxu0 %v1843
      %2322 = vmatpush.bf16.msra.mxu0 %v1842
      %2323 = vmatpush.bf16.msra.mxu0 %v1841
      %2324 = vmatpush.bf16.msra.mxu0 %v1840
      %2325 = vmatmul.bf16.gmra.mxu0 %v891
      %v2326 = vpop.f32.mrf.mxu0
      %v2327 = vadd.f32 %v2308, %v2326
      %v2328 = vpop.f32.mrf.mxu0
      %v2329 = vadd.f32 %v2310, %v2328
      %2330 = vmatmul.bf16.gmra.mxu0 %v916
      %v2331 = vpop.f32.mrf.mxu0
      %v2332 = vadd.f32 %v2313, %v2331
      %v2333 = vpop.f32.mrf.mxu0
      %v2334 = vadd.f32 %v2315, %v2333
      %2335 = vdwg.mxu0
      %2336 = vmatpush.bf16.msra.mxu0 %v1855
      %2337 = vmatpush.bf16.msra.mxu0 %v1854
      %2338 = vmatpush.bf16.msra.mxu0 %v1853
      %2339 = vmatpush.bf16.msra.mxu0 %v1852
      %2340 = vmatpush.bf16.msra.mxu0 %v1851
      %2341 = vmatpush.bf16.msra.mxu0 %v1850
      %2342 = vmatpush.bf16.msra.mxu0 %v1849
      %2343 = vmatpush.bf16.msra.mxu0 %v1848
      %2344 = vmatmul.bf16.gmra.mxu0 %v892
      %v2345 = vpop.f32.mrf.mxu0
      %v2346 = vadd.f32 %v2327, %v2345
      %v2347 = vpop.f32.mrf.mxu0
      %v2348 = vadd.f32 %v2329, %v2347
      %2349 = vmatmul.bf16.gmra.mxu0 %v917
      %v2350 = vpop.f32.mrf.mxu0
      %v2351 = vadd.f32 %v2332, %v2350
      %v2352 = vpop.f32.mrf.mxu0
      %v2353 = vadd.f32 %v2334, %v2352
      %2354 = vdwg.mxu0
      %2355 = vmatpush.bf16.msra.mxu0 %v1863
      %2356 = vmatpush.bf16.msra.mxu0 %v1862
      %2357 = vmatpush.bf16.msra.mxu0 %v1861
      %2358 = vmatpush.bf16.msra.mxu0 %v1860
      %2359 = vmatpush.bf16.msra.mxu0 %v1859
      %2360 = vmatpush.bf16.msra.mxu0 %v1858
      %2361 = vmatpush.bf16.msra.mxu0 %v1857
      %2362 = vmatpush.bf16.msra.mxu0 %v1856
      %2363 = vmatmul.bf16.gmra.mxu0 %v893
      %v2364 = vpop.f32.mrf.mxu0
      %v2365 = vadd.f32 %v2346, %v2364
      %v2366 = vpop.f32.mrf.mxu0
      %v2367 = vadd.f32 %v2348, %v2366
      %2368 = vmatmul.bf16.gmra.mxu0 %v918
      %v2369 = vpop.f32.mrf.mxu0
      %v2370 = vadd.f32 %v2351, %v2369
      %v2371 = vpop.f32.mrf.mxu0
      %v2372 = vadd.f32 %v2353, %v2371
      %2373 = vdwg.mxu0
      %2374 = vmatpush.bf16.msra.mxu0 %v1871
      %2375 = vmatpush.bf16.msra.mxu0 %v1870
      %2376 = vmatpush.bf16.msra.mxu0 %v1869
      %2377 = vmatpush.bf16.msra.mxu0 %v1868
      %2378 = vmatpush.bf16.msra.mxu0 %v1867
      %2379 = vmatpush.bf16.msra.mxu0 %v1866
      %2380 = vmatpush.bf16.msra.mxu0 %v1865
      %2381 = vmatpush.bf16.msra.mxu0 %v1864
      %2382 = vmatmul.bf16.gmra.mxu0 %v894
      %v2383 = vpop.f32.mrf.mxu0
      %v2384 = vadd.f32 %v2365, %v2383
      %v2385 = vpop.f32.mrf.mxu0
      %v2386 = vadd.f32 %v2367, %v2385
      %2387 = vmatmul.bf16.gmra.mxu0 %v919
      %v2388 = vpop.f32.mrf.mxu0
      %v2389 = vadd.f32 %v2370, %v2388
      %v2390 = vpop.f32.mrf.mxu0
      %v2391 = vadd.f32 %v2372, %v2390
      %2392 = vdwg.mxu0
      %2393 = vmatpush.bf16.msra.mxu0 %v1879
      %2394 = vmatpush.bf16.msra.mxu0 %v1878
      %2395 = vmatpush.bf16.msra.mxu0 %v1877
      %2396 = vmatpush.bf16.msra.mxu0 %v1876
      %2397 = vmatpush.bf16.msra.mxu0 %v1875
      %2398 = vmatpush.bf16.msra.mxu0 %v1874
      %2399 = vmatpush.bf16.msra.mxu0 %v1873
      %2400 = vmatpush.bf16.msra.mxu0 %v1872
      %2401 = vmatmul.bf16.gmra.mxu0 %v895
      %v2402 = vpop.f32.mrf.mxu0
      %v2403 = vadd.f32 %v2384, %v2402
      %v2404 = vpop.f32.mrf.mxu0
      %v2405 = vadd.f32 %v2386, %v2404
      %2406 = vmatmul.bf16.gmra.mxu0 %v920
      %v2407 = vpop.f32.mrf.mxu0
      %v2408 = vadd.f32 %v2389, %v2407
      %v2409 = vpop.f32.mrf.mxu0
      %v2410 = vadd.f32 %v2391, %v2409
      %2411 = vdwg.mxu0
      %2412 = vmatpush.bf16.msra.mxu0 %v1887
      %2413 = vmatpush.bf16.msra.mxu0 %v1886
      %2414 = vmatpush.bf16.msra.mxu0 %v1885
      %2415 = vmatpush.bf16.msra.mxu0 %v1884
      %2416 = vmatpush.bf16.msra.mxu0 %v1883
      %2417 = vmatpush.bf16.msra.mxu0 %v1882
      %2418 = vmatpush.bf16.msra.mxu0 %v1881
      %2419 = vmatpush.bf16.msra.mxu0 %v1880
      %2420 = vmatmul.bf16.gmra.mxu0 %v896
      %v2421 = vpop.f32.mrf.mxu0
      %v2422 = vadd.f32 %v2403, %v2421
      %v2423 = vpop.f32.mrf.mxu0
      %v2424 = vadd.f32 %v2405, %v2423
      %2425 = vmatmul.bf16.gmra.mxu0 %v921
      %v2426 = vpop.f32.mrf.mxu0
      %v2427 = vadd.f32 %v2408, %v2426
      %v2428 = vpop.f32.mrf.mxu0
      %v2429 = vadd.f32 %v2410, %v2428
      %2430 = vdwg.mxu0
      %2431 = vmatpush.bf16.msra.mxu0 %v1895
      %2432 = vmatpush.bf16.msra.mxu0 %v1894
      %2433 = vmatpush.bf16.msra.mxu0 %v1893
      %2434 = vmatpush.bf16.msra.mxu0 %v1892
      %2435 = vmatpush.bf16.msra.mxu0 %v1891
      %2436 = vmatpush.bf16.msra.mxu0 %v1890
      %2437 = vmatpush.bf16.msra.mxu0 %v1889
      %2438 = vmatpush.bf16.msra.mxu0 %v1888
      %2439 = vmatmul.bf16.gmra.mxu0 %v897
      %v2440 = vpop.f32.mrf.mxu0
      %v2441 = vadd.f32 %v2422, %v2440
      %v2442 = vpop.f32.mrf.mxu0
      %v2443 = vadd.f32 %v2424, %v2442
      %2444 = vmatmul.bf16.gmra.mxu0 %v922
      %v2445 = vpop.f32.mrf.mxu0
      %v2446 = vadd.f32 %v2427, %v2445
      %v2447 = vpop.f32.mrf.mxu0
      %v2448 = vadd.f32 %v2429, %v2447
      %2449 = vdwg.mxu0
      %2450 = vmatpush.bf16.msra.mxu0 %v1903
      %2451 = vmatpush.bf16.msra.mxu0 %v1902
      %2452 = vmatpush.bf16.msra.mxu0 %v1901
      %2453 = vmatpush.bf16.msra.mxu0 %v1900
      %2454 = vmatpush.bf16.msra.mxu0 %v1899
      %2455 = vmatpush.bf16.msra.mxu0 %v1898
      %2456 = vmatpush.bf16.msra.mxu0 %v1897
      %2457 = vmatpush.bf16.msra.mxu0 %v1896
      %2458 = vmatmul.bf16.gmra.mxu0 %v898
      %v2459 = vpop.f32.mrf.mxu0
      %v2460 = vadd.f32 %v2441, %v2459
      %v2461 = vpop.f32.mrf.mxu0
      %v2462 = vadd.f32 %v2443, %v2461
      %2463 = vmatmul.bf16.gmra.mxu0 %v923
      %v2464 = vpop.f32.mrf.mxu0
      %v2465 = vadd.f32 %v2446, %v2464
      %v2466 = vpop.f32.mrf.mxu0
      %v2467 = vadd.f32 %v2448, %v2466
      %2468 = vdwg.mxu0
      %2469 = vmatpush.bf16.msra.mxu0 %v1911
      %2470 = vmatpush.bf16.msra.mxu0 %v1910
      %2471 = vmatpush.bf16.msra.mxu0 %v1909
      %2472 = vmatpush.bf16.msra.mxu0 %v1908
      %2473 = vmatpush.bf16.msra.mxu0 %v1907
      %2474 = vmatpush.bf16.msra.mxu0 %v1906
      %2475 = vmatpush.bf16.msra.mxu0 %v1905
      %2476 = vmatpush.bf16.msra.mxu0 %v1904
      %2477 = vmatmul.bf16.gmra.mxu0 %v899
      %v2478 = vpop.f32.mrf.mxu0
      %v2479 = vadd.f32 %v2460, %v2478
      %v2480 = vpop.f32.mrf.mxu0
      %v2481 = vadd.f32 %v2462, %v2480
      %2482 = vmatmul.bf16.gmra.mxu0 %v924
      %v2483 = vpop.f32.mrf.mxu0
      %v2484 = vadd.f32 %v2465, %v2483
      %v2485 = vpop.f32.mrf.mxu0
      %v2486 = vadd.f32 %v2467, %v2485
      %2487 = vdwg.mxu0
      %2488 = vmatpush.bf16.msra.mxu0 %v1919
      %2489 = vmatpush.bf16.msra.mxu0 %v1918
      %2490 = vmatpush.bf16.msra.mxu0 %v1917
      %2491 = vmatpush.bf16.msra.mxu0 %v1916
      %2492 = vmatpush.bf16.msra.mxu0 %v1915
      %2493 = vmatpush.bf16.msra.mxu0 %v1914
      %2494 = vmatpush.bf16.msra.mxu0 %v1913
      %2495 = vmatpush.bf16.msra.mxu0 %v1912
      %2496 = vmatmul.bf16.gmra.mxu0 %v900
      %v2497 = vpop.f32.mrf.mxu0
      %v2498 = vadd.f32 %v2479, %v2497
      %v2499 = vpop.f32.mrf.mxu0
      %v2500 = vadd.f32 %v2481, %v2499
      %2501 = vmatmul.bf16.gmra.mxu0 %v925
      %v2502 = vpop.f32.mrf.mxu0
      %v2503 = vadd.f32 %v2484, %v2502
      %v2504 = vpop.f32.mrf.mxu0
      %v2505 = vadd.f32 %v2486, %v2504
      %2506 = vdwg.mxu0
      %2507 = vmatpush.bf16.msra.mxu0 %v1927
      %2508 = vmatpush.bf16.msra.mxu0 %v1926
      %2509 = vmatpush.bf16.msra.mxu0 %v1925
      %2510 = vmatpush.bf16.msra.mxu0 %v1924
      %2511 = vmatpush.bf16.msra.mxu0 %v1923
      %2512 = vmatpush.bf16.msra.mxu0 %v1922
      %2513 = vmatpush.bf16.msra.mxu0 %v1921
      %2514 = vmatpush.bf16.msra.mxu0 %v1920
      %2515 = vmatmul.bf16.gmra.mxu0 %v901
      %v2516 = vpop.f32.mrf.mxu0
      %v2517 = vadd.f32 %v2498, %v2516
      %v2518 = vpop.f32.mrf.mxu0
      %v2519 = vadd.f32 %v2500, %v2518
      %2520 = vmatmul.bf16.gmra.mxu0 %v926
      %v2521 = vpop.f32.mrf.mxu0
      %v2522 = vadd.f32 %v2503, %v2521
      %v2523 = vpop.f32.mrf.mxu0
      %v2524 = vadd.f32 %v2505, %v2523
      %2525 = vdwg.mxu0
      %2526 = vmatpush.bf16.msra.mxu0 %v1935
      %2527 = vmatpush.bf16.msra.mxu0 %v1934
      %2528 = vmatpush.bf16.msra.mxu0 %v1933
      %2529 = vmatpush.bf16.msra.mxu0 %v1932
      %2530 = vmatpush.bf16.msra.mxu0 %v1931
      %2531 = vmatpush.bf16.msra.mxu0 %v1930
      %2532 = vmatpush.bf16.msra.mxu0 %v1929
      %2533 = vmatpush.bf16.msra.mxu0 %v1928
      %2534 = vmatmul.bf16.gmra.mxu0 %v902
      %v2535 = vpop.f32.mrf.mxu0
      %v2536 = vadd.f32 %v2517, %v2535
      %v2537 = vpop.f32.mrf.mxu0
      %v2538 = vadd.f32 %v2519, %v2537
      %2539 = vmatmul.bf16.gmra.mxu0 %v927
      %v2540 = vpop.f32.mrf.mxu0
      %v2541 = vadd.f32 %v2522, %v2540
      %v2542 = vpop.f32.mrf.mxu0
      %v2543 = vadd.f32 %v2524, %v2542
      %2544 = vdwg.mxu0
      %2545 = vmatpush.bf16.msra.mxu0 %v1943
      %2546 = vmatpush.bf16.msra.mxu0 %v1942
      %2547 = vmatpush.bf16.msra.mxu0 %v1941
      %2548 = vmatpush.bf16.msra.mxu0 %v1940
      %2549 = vmatpush.bf16.msra.mxu0 %v1939
      %2550 = vmatpush.bf16.msra.mxu0 %v1938
      %2551 = vmatpush.bf16.msra.mxu0 %v1937
      %2552 = vmatpush.bf16.msra.mxu0 %v1936
      %2553 = vmatmul.bf16.gmra.mxu0 %v903
      %v2554 = vpop.f32.mrf.mxu0
      %v2555 = vadd.f32 %v2536, %v2554
      %v2556 = vpop.f32.mrf.mxu0
      %v2557 = vadd.f32 %v2538, %v2556
      %2558 = vmatmul.bf16.gmra.mxu0 %v928
      %v2559 = vpop.f32.mrf.mxu0
      %v2560 = vadd.f32 %v2541, %v2559
      %v2561 = vpop.f32.mrf.mxu0
      %v2562 = vadd.f32 %v2543, %v2561
      %2563 = vdwg.mxu0
      %2564 = vmatpush.bf16.msra.mxu0 %v1951
      %2565 = vmatpush.bf16.msra.mxu0 %v1950
      %2566 = vmatpush.bf16.msra.mxu0 %v1949
      %2567 = vmatpush.bf16.msra.mxu0 %v1948
      %2568 = vmatpush.bf16.msra.mxu0 %v1947
      %2569 = vmatpush.bf16.msra.mxu0 %v1946
      %2570 = vmatpush.bf16.msra.mxu0 %v1945
      %2571 = vmatpush.bf16.msra.mxu0 %v1944
      %2572 = vmatmul.bf16.gmra.mxu0 %v904
      %v2573 = vpop.f32.mrf.mxu0
      %v2574 = vadd.f32 %v2555, %v2573
      %v2575 = vpop.f32.mrf.mxu0
      %v2576 = vadd.f32 %v2557, %v2575
      %2577 = vmatmul.bf16.gmra.mxu0 %v929
      %v2578 = vpop.f32.mrf.mxu0
      %v2579 = vadd.f32 %v2560, %v2578
      %v2580 = vpop.f32.mrf.mxu0
      %v2581 = vadd.f32 %v2562, %v2580
      %2582 = vdwg.mxu0
      %2583 = vmatpush.bf16.msra.mxu0 %v1959
      %2584 = vmatpush.bf16.msra.mxu0 %v1958
      %2585 = vmatpush.bf16.msra.mxu0 %v1957
      %2586 = vmatpush.bf16.msra.mxu0 %v1956
      %2587 = vmatpush.bf16.msra.mxu0 %v1955
      %2588 = vmatpush.bf16.msra.mxu0 %v1954
      %2589 = vmatpush.bf16.msra.mxu0 %v1953
      %2590 = vmatpush.bf16.msra.mxu0 %v1952
      %2591 = vmatmul.bf16.gmra.mxu0 %v905
      %v2592 = vpop.f32.mrf.mxu0
      %v2593 = vadd.f32 %v2574, %v2592
      %v2594 = vpop.f32.mrf.mxu0
      %v2595 = vadd.f32 %v2576, %v2594
      %2596 = vmatmul.bf16.gmra.mxu0 %v930
      %v2597 = vpop.f32.mrf.mxu0
      %v2598 = vadd.f32 %v2579, %v2597
      %v2599 = vpop.f32.mrf.mxu0
      %v2600 = vadd.f32 %v2581, %v2599
      %2601 = vdwg.mxu0
      %2602 = vmatpush.bf16.msra.mxu0 %v1967
      %2603 = vmatpush.bf16.msra.mxu0 %v1966
      %2604 = vmatpush.bf16.msra.mxu0 %v1965
      %2605 = vmatpush.bf16.msra.mxu0 %v1964
      %2606 = vmatpush.bf16.msra.mxu0 %v1963
      %2607 = vmatpush.bf16.msra.mxu0 %v1962
      %2608 = vmatpush.bf16.msra.mxu0 %v1961
      %2609 = vmatpush.bf16.msra.mxu0 %v1960
      %2610 = vmatmul.bf16.gmra.mxu0 %v906
      %v2611 = vpop.f32.mrf.mxu0
      %v2612 = vadd.f32 %v2593, %v2611
      %v2613 = vpop.f32.mrf.mxu0
      %v2614 = vadd.f32 %v2595, %v2613
      %2615 = vmatmul.bf16.gmra.mxu0 %v931
      %v2616 = vpop.f32.mrf.mxu0
      %v2617 = vadd.f32 %v2598, %v2616
      %v2618 = vpop.f32.mrf.mxu0
      %v2619 = vadd.f32 %v2600, %v2618
      %2620 = vdwg.mxu0
      %2621 = vmatpush.bf16.msra.mxu0 %v1975
      %2622 = vmatpush.bf16.msra.mxu0 %v1974
      %2623 = vmatpush.bf16.msra.mxu0 %v1973
      %2624 = vmatpush.bf16.msra.mxu0 %v1972
      %2625 = vmatpush.bf16.msra.mxu0 %v1971
      %2626 = vmatpush.bf16.msra.mxu0 %v1970
      %2627 = vmatpush.bf16.msra.mxu0 %v1969
      %2628 = vmatpush.bf16.msra.mxu0 %v1968
      %2629 = vmatmul.bf16.gmra.mxu0 %v907
      %v2630 = vpop.f32.mrf.mxu0
      %v2631 = vadd.f32 %v2612, %v2630
      %v2632 = vpop.f32.mrf.mxu0
      %v2633 = vadd.f32 %v2614, %v2632
      %2634 = vmatmul.bf16.gmra.mxu0 %v932
      %v2635 = vpop.f32.mrf.mxu0
      %v2636 = vadd.f32 %v2617, %v2635
      %v2637 = vpop.f32.mrf.mxu0
      %v2638 = vadd.f32 %v2619, %v2637
      %2639 = vdwg.mxu0
      %2640 = vmatpush.bf16.msra.mxu0 %v1983
      %2641 = vmatpush.bf16.msra.mxu0 %v1982
      %2642 = vmatpush.bf16.msra.mxu0 %v1981
      %2643 = vmatpush.bf16.msra.mxu0 %v1980
      %2644 = vmatpush.bf16.msra.mxu0 %v1979
      %2645 = vmatpush.bf16.msra.mxu0 %v1978
      %2646 = vmatpush.bf16.msra.mxu0 %v1977
      %2647 = vmatpush.bf16.msra.mxu0 %v1976
      %2648 = vmatmul.bf16.gmra.mxu0 %v908
      %v2649 = vpop.f32.mrf.mxu0
      %v2650 = vadd.f32 %v2631, %v2649
      %v2651 = vpop.f32.mrf.mxu0
      %v2652 = vadd.f32 %v2633, %v2651
      %2653 = vmatmul.bf16.gmra.mxu0 %v933
      %v2654 = vpop.f32.mrf.mxu0
      %v2655 = vadd.f32 %v2636, %v2654
      %v2656 = vpop.f32.mrf.mxu0
      %v2657 = vadd.f32 %v2638, %v2656
      %2658 = vdwg.mxu0
      %v2659 = vadd.f32 %v276, %v2650
      %v2660 = vadd.f32 %v277, %v2652
      %v2661 = vadd.f32 %v278, %v2655
      %v2662 = vadd.f32 %v279, %v2657
      %vm2663 = vcmask 523264
      %2664 = vst.msk [vmem:[#allocation2] sm:$0xff] %vm2663, %v2659
      %2665 = vst.msk [vmem:[#allocation2 + $0x8] sm:$0xff] %vm2663, %v2660
      %2666 = vst.msk [vmem:[#allocation2 + $0x10] sm:$0xff] %vm2663, %v2661
      %2667 = vst.msk [vmem:[#allocation2 + $0x18] sm:$0xff] %vm2663, %v2662
      // Predicated region
      $region37: #{feature_regression_forward.4} parent=31 // pred_check
        %p2668 = pneg %p267
      $region38: #{feature_regression_forward.4} parent=31 // pred_check_branch
        %2670 = sbr.rel (%p2668) target = $region40
      $region39: #{feature_regression_forward.4} parent=31 // pred_region
        %v2671 = vld [vmem:[#allocation2] sm:$0xff]
        %v2672 = vld [vmem:[#allocation2 + $0x8] sm:$0xff]
        %v2673 = vld [vmem:[#allocation2 + $0x10] sm:$0xff]
        %v2674 = vld [vmem:[#allocation2 + $0x18] sm:$0xff]
        %v2675 = vld [vmem:[%s257] sm:$0x1]
        %v2677 = vperm.slane %v2675, 0
        %v2679 = vadd.f32 %v2671, %v2677
        %v2680 = vadd.f32 %v2672, %v2677
        %v2681 = vadd.f32 %v2673, %v2677
        %v2682 = vadd.f32 %v2674, %v2677
        %v2683 = vmax.f32 %v2679, 0.0
        %v2684 = vmax.f32 %v2680, 0.0
        %v2685 = vmax.f32 %v2681, 0.0
        %v2686 = vmax.f32 %v2682, 0.0
        %v2687 = vpack.c.bf16 %v2683, %v2683
        %v2688 = vpack.c.bf16 %v2684, %v2684
        %v2689 = vpack.c.bf16 %v2685, %v2685
        %v2690 = vpack.c.bf16 %v2686, %v2686
        %vm2691 = vcmask 519168
        %2692 = vst.msk [vmem:[%s265] sm:$0xf] %vm2691, %v2687
        %2693 = vst.msk [vmem:[%s265 + $0x4] sm:$0xf] %vm2691, %v2688
        %2694 = vst.msk [vmem:[%s265 + $0x8] sm:$0xf] %vm2691, %v2689
        %2695 = vst.msk [vmem:[%s265 + $0xc] sm:$0xf] %vm2691, %v2690
      $region40: #{feature_regression_forward.4} parent=31 // pred_fallthru
        _
      %s2696 = smul.u32 4, %s19
      %p2697 = scmp.lt.s32.totalorder %s2696, 7
      %s2698 = scalar_select %p2697, %s2696, 7
      %p2699 = scmp.lt.s32.totalorder %s20, 0
      %s2700 = scalar_select %p2699, %s20, 0
      %s2701 = sadd.s32 %s2700, %s2698
      %s2702 = smul.addr %s2701, 4
      %s2703 = scalar_lea.vmem %s3, %s2702
      // Predicated region
      $region41: #{feature_regression_forward.4} parent=31 // pred_check
        %p2704 = pneg %p135
      $region42: #{feature_regression_forward.4} parent=31 // pred_check_branch
        %2706 = sbr.rel (%p2704) target = $region44
      $region43: #{feature_regression_forward.4} parent=31 // pred_region
        %s2707 = smul.u32 4, %s19
      $region44: #{feature_regression_forward.4} parent=31 // pred_fallthru
        _
    $region32: #{feature_regression_forward.4} parent=5 // pred_fallthru
      _
    %p2708 = scmp.le.s32.totalorder 2, %s9
    // Predicated region
    $region45: #{feature_regression_forward.4} parent=5 // pred_check
      %p2709 = pneg %p2708
    $region46: #{feature_regression_forward.4} parent=5 // pred_check_branch
      %2711 = sbr.rel (%p2709) target = $region48
    $region47: #{feature_regression_forward.4} parent=5 // pred_region
      %s2712 = ssub.s32 %s9, 2
      // Predicated region
      $region49: #{feature_regression_forward.4} parent=47 // pred_check
        %p2713 = pneg %p141
      $region50: #{feature_regression_forward.4} parent=47 // pred_check_branch
        %2715 = sbr.rel (%p2713) target = $region52
      $region51: #{feature_regression_forward.4} parent=47 // pred_region
        %s2716 = smul.u32 4, %s22
        %p2717 = scmp.lt.s32.totalorder %s2716, 7
        %s2718 = scalar_select %p2717, %s2716, 7
        %p2719 = scmp.lt.s32.totalorder %s23, 0
        %s2720 = scalar_select %p2719, %s23, 0
        %s2721 = sadd.s32 %s2720, %s2718
        %s2722 = smul.addr %s2721, 4
        %s2723 = scalar_lea.vmem %s3, %s2722
      $region52: #{feature_regression_forward.4} parent=47 // pred_fallthru
        _
    $region48: #{feature_regression_forward.4} parent=5 // pred_fallthru
      _
  $region6: #{feature_regression_forward.4} parent=0 // loop_footer
    %s13 = sadd.s32 1, %s9
  $region7: #{feature_regression_forward.4} parent=0 // loop_footer_branch
    %8 = sbr.rel target = $region3
  $region8: #{feature_regression_forward.4} parent=0 // loop_exit
    _

// kernel: feature_regression_forward.5
$region0: #{feature_regression_forward.5}
  #allocation0 [shape = 'u32[]', space=smem, size = 0x4, offset = 0x4, fixed_abs, tag = 'smem constant byte address 0x4 - core index']
  #allocation1 [shape = 'u32[72,128]{1,0:T(1,128)}', space=vmem, size = 0x9000, scoped, tag = 'internal scratch']
  #allocation2 [shape = 'f32[16,6]{1,0:T(8,128)}', space=vmem, size = 0x2000, scoped, tag = 'scratch operand']
  %s0 = inlined_call_operand.vmem [shape: bf16[16,1664], index: 0, kind: input, shape index: {}]
  %s1 = inlined_call_operand.vmem [shape: bf16[1664,6], index: 1, kind: input, shape index: {}]
  %s2 = inlined_call_operand.vmem [shape: f32[1,6], index: 2, kind: input, shape index: {}]
  %s3 = inlined_call_operand.vmem [shape: f32[16,6], index: 3, kind: output, shape index: {}]
  %s4 = sld [smem:[#allocation0]]
  $region30: #{feature_regression_forward.5} parent=0
    _
  %s6 = ssub.s32 1, %s4
  %s7 = scalar_select 0, %s6, %s4
  // Predicated region
  $region2: #{feature_regression_forward.5} parent=0 // pred_check
    _
  $region3: #{feature_regression_forward.5} parent=0 // pred_check_branch
    %9 = sbr.rel (0) target = $region5
  $region4: #{feature_regression_forward.5} parent=0 // pred_region
    _
  $region5: #{feature_regression_forward.5} parent=0 // pred_fallthru
    _
  // Predicated region
  $region6: #{feature_regression_forward.5} parent=0 // pred_check
    _
  $region7: #{feature_regression_forward.5} parent=0 // pred_check_branch
    %11 = sbr.rel (0) target = $region9
  $region8: #{feature_regression_forward.5} parent=0 // pred_region
    _
  $region9: #{feature_regression_forward.5} parent=0 // pred_fallthru
    _
  // Predicated region
  $region10: #{feature_regression_forward.5} parent=0 // pred_check
    _
  $region11: #{feature_regression_forward.5} parent=0 // pred_check_branch
    %13 = sbr.rel (0) target = $region13
  $region12: #{feature_regression_forward.5} parent=0 // pred_region
    _
  $region13: #{feature_regression_forward.5} parent=0 // pred_fallthru
    _
  %p14 = scmp.eq.s32.totalorder 0, 0
  // Predicated region
  $region14: #{feature_regression_forward.5} parent=0 // pred_check
    %p15 = pneg %p14
  $region15: #{feature_regression_forward.5} parent=0 // pred_check_branch
    %17 = sbr.rel (%p15) target = $region17
  $region16: #{feature_regression_forward.5} parent=0 // pred_region
    %vm18 = vcmask 48128
    %19 = vst.msk [vmem:[#allocation2] sm:$0xff] %vm18, 0.0
    %20 = vst.msk [vmem:[#allocation2 + $0x8] sm:$0xff] %vm18, 0.0
  $region17: #{feature_regression_forward.5} parent=0 // pred_fallthru
    _
  %v21 = vld [vmem:[#allocation2] sm:$0xff]
  %v22 = vld [vmem:[#allocation2 + $0x8] sm:$0xff]
  %v23 = vld [vmem:[%s0] sm:$0xff]
  %v24 = vld [vmem:[%s0 + $0x8] sm:$0xff]
  %v25 = vld [vmem:[%s0 + $0x10] sm:$0xff]
  %v26 = vld [vmem:[%s0 + $0x18] sm:$0xff]
  %v27 = vld [vmem:[%s0 + $0x20] sm:$0xff]
  %v28 = vld [vmem:[%s0 + $0x28] sm:$0xff]
  %v29 = vld [vmem:[%s0 + $0x30] sm:$0xf]
  %v30 = vld [vmem:[%s0 + $0x34] sm:$0xff]
  %v31 = vld [vmem:[%s0 + $0x3c] sm:$0xff]
  %v32 = vld [vmem:[%s0 + $0x44] sm:$0xff]
  %v33 = vld [vmem:[%s0 + $0x4c] sm:$0xff]
  %v34 = vld [vmem:[%s0 + $0x54] sm:$0xff]
  %v35 = vld [vmem:[%s0 + $0x5c] sm:$0xff]
  %v36 = vld [vmem:[%s0 + $0x64] sm:$0xf]
  %v37 = vld [vmem:[%s1] sm:$0xf]
  %v38 = vld [vmem:[%s1 + $0x4] sm:$0xf]
  %v39 = vld [vmem:[%s1 + $0x8] sm:$0xf]
  %v40 = vld [vmem:[%s1 + $0xc] sm:$0xf]
  %v41 = vld [vmem:[%s1 + $0x10] sm:$0xf]
  %v42 = vld [vmem:[%s1 + $0x14] sm:$0xf]
  %v43 = vld [vmem:[%s1 + $0x18] sm:$0xf]
  %v44 = vld [vmem:[%s1 + $0x1c] sm:$0xf]
  %v45 = vld [vmem:[%s1 + $0x20] sm:$0xf]
  %v46 = vld [vmem:[%s1 + $0x24] sm:$0xf]
  %v47 = vld [vmem:[%s1 + $0x28] sm:$0xf]
  %v48 = vld [vmem:[%s1 + $0x2c] sm:$0xf]
  %v49 = vld [vmem:[%s1 + $0x30] sm:$0xf]
  %v50 = vld [vmem:[%s1 + $0x34] sm:$0xf]
  %v51 = vld [vmem:[%s1 + $0x38] sm:$0xf]
  %v52 = vld [vmem:[%s1 + $0x3c] sm:$0xf]
  %v53 = vld [vmem:[%s1 + $0x40] sm:$0xf]
  %v54 = vld [vmem:[%s1 + $0x44] sm:$0xf]
  %v55 = vld [vmem:[%s1 + $0x48] sm:$0xf]
  %v56 = vld [vmem:[%s1 + $0x4c] sm:$0xf]
  %v57 = vld [vmem:[%s1 + $0x50] sm:$0xf]
  %v58 = vld [vmem:[%s1 + $0x54] sm:$0xf]
  %v59 = vld [vmem:[%s1 + $0x58] sm:$0xf]
  %v60 = vld [vmem:[%s1 + $0x5c] sm:$0xf]
  %v61 = vld [vmem:[%s1 + $0x60] sm:$0xf]
  %v62 = vld [vmem:[%s1 + $0x64] sm:$0xf]
  %v63 = vld [vmem:[%s1 + $0x68] sm:$0xf]
  %v64 = vld [vmem:[%s1 + $0x6c] sm:$0xf]
  %v65 = vld [vmem:[%s1 + $0x70] sm:$0xf]
  %v66 = vld [vmem:[%s1 + $0x74] sm:$0xf]
  %v67 = vld [vmem:[%s1 + $0x78] sm:$0xf]
  %v68 = vld [vmem:[%s1 + $0x7c] sm:$0xf]
  %v69 = vld [vmem:[%s1 + $0x80] sm:$0xf]
  %v70 = vld [vmem:[%s1 + $0x84] sm:$0xf]
  %v71 = vld [vmem:[%s1 + $0x88] sm:$0xf]
  %v72 = vld [vmem:[%s1 + $0x8c] sm:$0xf]
  %v73 = vld [vmem:[%s1 + $0x90] sm:$0xf]
  %v74 = vld [vmem:[%s1 + $0x94] sm:$0xf]
  %v75 = vld [vmem:[%s1 + $0x98] sm:$0xf]
  %v76 = vld [vmem:[%s1 + $0x9c] sm:$0xf]
  %v77 = vld [vmem:[%s1 + $0xa0] sm:$0xf]
  %v78 = vld [vmem:[%s1 + $0xa4] sm:$0xf]
  %v79 = vld [vmem:[%s1 + $0xa8] sm:$0xf]
  %v80 = vld [vmem:[%s1 + $0xac] sm:$0xf]
  %v81 = vld [vmem:[%s1 + $0xb0] sm:$0xf]
  %v82 = vld [vmem:[%s1 + $0xb4] sm:$0xf]
  %v83 = vld [vmem:[%s1 + $0xb8] sm:$0xf]
  %v84 = vld [vmem:[%s1 + $0xbc] sm:$0xf]
  %v85 = vld [vmem:[%s1 + $0xc0] sm:$0xf]
  %v86 = vld [vmem:[%s1 + $0xc4] sm:$0xf]
  %v87 = vld [vmem:[%s1 + $0xc8] sm:$0xf]
  %v88 = vld [vmem:[%s1 + $0xcc] sm:$0xf]
  %v89 = vld [vmem:[%s1 + $0xd0] sm:$0xf]
  %v90 = vld [vmem:[%s1 + $0xd4] sm:$0xf]
  %v91 = vld [vmem:[%s1 + $0xd8] sm:$0xf]
  %v92 = vld [vmem:[%s1 + $0xdc] sm:$0xf]
  %v93 = vld [vmem:[%s1 + $0xe0] sm:$0xf]
  %v94 = vld [vmem:[%s1 + $0xe4] sm:$0xf]
  %v95 = vld [vmem:[%s1 + $0xe8] sm:$0xf]
  %v96 = vld [vmem:[%s1 + $0xec] sm:$0xf]
  %v97 = vld [vmem:[%s1 + $0xf0] sm:$0xf]
  %v98 = vld [vmem:[%s1 + $0xf4] sm:$0xf]
  %v99 = vld [vmem:[%s1 + $0xf8] sm:$0xf]
  %v100 = vld [vmem:[%s1 + $0xfc] sm:$0xf]
  %v101 = vld [vmem:[%s1 + $0x100] sm:$0xf]
  %v102 = vld [vmem:[%s1 + $0x104] sm:$0xf]
  %v103 = vld [vmem:[%s1 + $0x108] sm:$0xf]
  %v104 = vld [vmem:[%s1 + $0x10c] sm:$0xf]
  %v105 = vld [vmem:[%s1 + $0x110] sm:$0xf]
  %v106 = vld [vmem:[%s1 + $0x114] sm:$0xf]
  %v107 = vld [vmem:[%s1 + $0x118] sm:$0xf]
  %v108 = vld [vmem:[%s1 + $0x11c] sm:$0xf]
  %v109 = vld [vmem:[%s1 + $0x120] sm:$0xf]
  %v110 = vld [vmem:[%s1 + $0x124] sm:$0xf]
  %v111 = vld [vmem:[%s1 + $0x128] sm:$0xf]
  %v112 = vld [vmem:[%s1 + $0x12c] sm:$0xf]
  %v113 = vld [vmem:[%s1 + $0x130] sm:$0xf]
  %v114 = vld [vmem:[%s1 + $0x134] sm:$0xf]
  %v115 = vld [vmem:[%s1 + $0x138] sm:$0xf]
  %v116 = vld [vmem:[%s1 + $0x13c] sm:$0xf]
  %v117 = vld [vmem:[%s1 + $0x140] sm:$0xf]
  %v118 = vld [vmem:[%s1 + $0x144] sm:$0xf]
  %v119 = vld [vmem:[%s1 + $0x148] sm:$0xf]
  %v120 = vld [vmem:[%s1 + $0x14c] sm:$0xf]
  %v121 = vld [vmem:[%s1 + $0x150] sm:$0xf]
  %v122 = vld [vmem:[%s1 + $0x154] sm:$0xf]
  %v123 = vld [vmem:[%s1 + $0x158] sm:$0xf]
  %v124 = vld [vmem:[%s1 + $0x15c] sm:$0xf]
  %v125 = vld [vmem:[%s1 + $0x160] sm:$0xf]
  %v126 = vld [vmem:[%s1 + $0x164] sm:$0xf]
  %v127 = vld [vmem:[%s1 + $0x168] sm:$0xf]
  %v128 = vld [vmem:[%s1 + $0x16c] sm:$0xf]
  %v129 = vld [vmem:[%s1 + $0x170] sm:$0xf]
  %v130 = vld [vmem:[%s1 + $0x174] sm:$0xf]
  %v131 = vld [vmem:[%s1 + $0x178] sm:$0xf]
  %v132 = vld [vmem:[%s1 + $0x17c] sm:$0xf]
  %v133 = vld [vmem:[%s1 + $0x180] sm:$0xf]
  %v134 = vld [vmem:[%s1 + $0x184] sm:$0xf]
  %v135 = vld [vmem:[%s1 + $0x188] sm:$0xf]
  %v136 = vld [vmem:[%s1 + $0x18c] sm:$0xf]
  %v137 = vld [vmem:[%s1 + $0x190] sm:$0xf]
  %v138 = vld [vmem:[%s1 + $0x194] sm:$0xf]
  %v139 = vld [vmem:[%s1 + $0x198] sm:$0xf]
  %v140 = vld [vmem:[%s1 + $0x19c] sm:$0xf]
  %v141 = vld [vmem:[%s1 + $0x1a0] sm:$0xf]
  %v142 = vld [vmem:[%s1 + $0x1a4] sm:$0xf]
  %v143 = vld [vmem:[%s1 + $0x1a8] sm:$0xf]
  %v144 = vld [vmem:[%s1 + $0x1ac] sm:$0xf]
  %v145 = vld [vmem:[%s1 + $0x1b0] sm:$0xf]
  %v146 = vld [vmem:[%s1 + $0x1b4] sm:$0xf]
  %v147 = vld [vmem:[%s1 + $0x1b8] sm:$0xf]
  %v148 = vld [vmem:[%s1 + $0x1bc] sm:$0xf]
  %v149 = vld [vmem:[%s1 + $0x1c0] sm:$0xf]
  %v150 = vld [vmem:[%s1 + $0x1c4] sm:$0xf]
  %v151 = vld [vmem:[%s1 + $0x1c8] sm:$0xf]
  %v152 = vld [vmem:[%s1 + $0x1cc] sm:$0xf]
  %v153 = vld [vmem:[%s1 + $0x1d0] sm:$0xf]
  %v154 = vld [vmem:[%s1 + $0x1d4] sm:$0xf]
  %v155 = vld [vmem:[%s1 + $0x1d8] sm:$0xf]
  %v156 = vld [vmem:[%s1 + $0x1dc] sm:$0xf]
  %v157 = vld [vmem:[%s1 + $0x1e0] sm:$0xf]
  %v158 = vld [vmem:[%s1 + $0x1e4] sm:$0xf]
  %v159 = vld [vmem:[%s1 + $0x1e8] sm:$0xf]
  %v160 = vld [vmem:[%s1 + $0x1ec] sm:$0xf]
  %v161 = vld [vmem:[%s1 + $0x1f0] sm:$0xf]
  %v162 = vld [vmem:[%s1 + $0x1f4] sm:$0xf]
  %v163 = vld [vmem:[%s1 + $0x1f8] sm:$0xf]
  %v164 = vld [vmem:[%s1 + $0x1fc] sm:$0xf]
  %v165 = vld [vmem:[%s1 + $0x200] sm:$0xf]
  %v166 = vld [vmem:[%s1 + $0x204] sm:$0xf]
  %v167 = vld [vmem:[%s1 + $0x208] sm:$0xf]
  %v168 = vld [vmem:[%s1 + $0x20c] sm:$0xf]
  %v169 = vld [vmem:[%s1 + $0x210] sm:$0xf]
  %v170 = vld [vmem:[%s1 + $0x214] sm:$0xf]
  %v171 = vld [vmem:[%s1 + $0x218] sm:$0xf]
  %v172 = vld [vmem:[%s1 + $0x21c] sm:$0xf]
  %v173 = vld [vmem:[%s1 + $0x220] sm:$0xf]
  %v174 = vld [vmem:[%s1 + $0x224] sm:$0xf]
  %v175 = vld [vmem:[%s1 + $0x228] sm:$0xf]
  %v176 = vld [vmem:[%s1 + $0x22c] sm:$0xf]
  %v177 = vld [vmem:[%s1 + $0x230] sm:$0xf]
  %v178 = vld [vmem:[%s1 + $0x234] sm:$0xf]
  %v179 = vld [vmem:[%s1 + $0x238] sm:$0xf]
  %v180 = vld [vmem:[%s1 + $0x23c] sm:$0xf]
  %v181 = vld [vmem:[%s1 + $0x240] sm:$0xf]
  %v182 = vld [vmem:[%s1 + $0x244] sm:$0xf]
  %v183 = vld [vmem:[%s1 + $0x248] sm:$0xf]
  %v184 = vld [vmem:[%s1 + $0x24c] sm:$0xf]
  %v185 = vld [vmem:[%s1 + $0x250] sm:$0xf]
  %v186 = vld [vmem:[%s1 + $0x254] sm:$0xf]
  %v187 = vld [vmem:[%s1 + $0x258] sm:$0xf]
  %v188 = vld [vmem:[%s1 + $0x25c] sm:$0xf]
  %v189 = vld [vmem:[%s1 + $0x260] sm:$0xf]
  %v190 = vld [vmem:[%s1 + $0x264] sm:$0xf]
  %v191 = vld [vmem:[%s1 + $0x268] sm:$0xf]
  %v192 = vld [vmem:[%s1 + $0x26c] sm:$0xf]
  %v193 = vld [vmem:[%s1 + $0x270] sm:$0xf]
  %v194 = vld [vmem:[%s1 + $0x274] sm:$0xf]
  %v195 = vld [vmem:[%s1 + $0x278] sm:$0xf]
  %v196 = vld [vmem:[%s1 + $0x27c] sm:$0xf]
  %v197 = vld [vmem:[%s1 + $0x280] sm:$0xf]
  %v198 = vld [vmem:[%s1 + $0x284] sm:$0xf]
  %v199 = vld [vmem:[%s1 + $0x288] sm:$0xf]
  %v200 = vld [vmem:[%s1 + $0x28c] sm:$0xf]
  %v201 = vld [vmem:[%s1 + $0x290] sm:$0xf]
  %v202 = vld [vmem:[%s1 + $0x294] sm:$0xf]
  %v203 = vld [vmem:[%s1 + $0x298] sm:$0xf]
  %v204 = vld [vmem:[%s1 + $0x29c] sm:$0xf]
  %v205 = vld [vmem:[%s1 + $0x2a0] sm:$0xf]
  %v206 = vld [vmem:[%s1 + $0x2a4] sm:$0xf]
  %v207 = vld [vmem:[%s1 + $0x2a8] sm:$0xf]
  %v208 = vld [vmem:[%s1 + $0x2ac] sm:$0xf]
  %v209 = vld [vmem:[%s1 + $0x2b0] sm:$0xf]
  %v210 = vld [vmem:[%s1 + $0x2b4] sm:$0xf]
  %v211 = vld [vmem:[%s1 + $0x2b8] sm:$0xf]
  %v212 = vld [vmem:[%s1 + $0x2bc] sm:$0xf]
  %v213 = vld [vmem:[%s1 + $0x2c0] sm:$0xf]
  %v214 = vld [vmem:[%s1 + $0x2c4] sm:$0xf]
  %v215 = vld [vmem:[%s1 + $0x2c8] sm:$0xf]
  %v216 = vld [vmem:[%s1 + $0x2cc] sm:$0xf]
  %v217 = vld [vmem:[%s1 + $0x2d0] sm:$0xf]
  %v218 = vld [vmem:[%s1 + $0x2d4] sm:$0xf]
  %v219 = vld [vmem:[%s1 + $0x2d8] sm:$0xf]
  %v220 = vld [vmem:[%s1 + $0x2dc] sm:$0xf]
  %v221 = vld [vmem:[%s1 + $0x2e0] sm:$0xf]
  %v222 = vld [vmem:[%s1 + $0x2e4] sm:$0xf]
  %v223 = vld [vmem:[%s1 + $0x2e8] sm:$0xf]
  %v224 = vld [vmem:[%s1 + $0x2ec] sm:$0xf]
  %v225 = vld [vmem:[%s1 + $0x2f0] sm:$0xf]
  %v226 = vld [vmem:[%s1 + $0x2f4] sm:$0xf]
  %v227 = vld [vmem:[%s1 + $0x2f8] sm:$0xf]
  %v228 = vld [vmem:[%s1 + $0x2fc] sm:$0xf]
  %v229 = vld [vmem:[%s1 + $0x300] sm:$0xf]
  %v230 = vld [vmem:[%s1 + $0x304] sm:$0xf]
  %v231 = vld [vmem:[%s1 + $0x308] sm:$0xf]
  %v232 = vld [vmem:[%s1 + $0x30c] sm:$0xf]
  %v233 = vld [vmem:[%s1 + $0x310] sm:$0xf]
  %v234 = vld [vmem:[%s1 + $0x314] sm:$0xf]
  %v235 = vld [vmem:[%s1 + $0x318] sm:$0xf]
  %v236 = vld [vmem:[%s1 + $0x31c] sm:$0xf]
  %v237 = vld [vmem:[%s1 + $0x320] sm:$0xf]
  %v238 = vld [vmem:[%s1 + $0x324] sm:$0xf]
  %v239 = vld [vmem:[%s1 + $0x328] sm:$0xf]
  %v240 = vld [vmem:[%s1 + $0x32c] sm:$0xf]
  %v241 = vld [vmem:[%s1 + $0x330] sm:$0xf]
  %v242 = vld [vmem:[%s1 + $0x334] sm:$0xf]
  %v243 = vld [vmem:[%s1 + $0x338] sm:$0xf]
  %v244 = vld [vmem:[%s1 + $0x33c] sm:$0xf]
  %v259 = vunpack.c.l.b16 %v23
  %v260 = vunpack.c.h.b16 %v23
  %v261 = vunpack.c.l.b16 %v24
  %v262 = vunpack.c.h.b16 %v24
  %v263 = vunpack.c.l.b16 %v25
  %v264 = vunpack.c.h.b16 %v25
  %v265 = vunpack.c.l.b16 %v26
  %v266 = vunpack.c.h.b16 %v26
  %v267 = vunpack.c.l.b16 %v27
  %v268 = vunpack.c.h.b16 %v27
  %v269 = vunpack.c.l.b16 %v28
  %v270 = vunpack.c.h.b16 %v28
  %v271 = vunpack.c.l.b16 %v29
  %v272 = vunpack.c.l.b16 %v30
  %v273 = vunpack.c.h.b16 %v30
  %v274 = vunpack.c.l.b16 %v31
  %v275 = vunpack.c.h.b16 %v31
  %v276 = vunpack.c.l.b16 %v32
  %v277 = vunpack.c.h.b16 %v32
  %v278 = vunpack.c.l.b16 %v33
  %v279 = vunpack.c.h.b16 %v33
  %v280 = vunpack.c.l.b16 %v34
  %v281 = vunpack.c.h.b16 %v34
  %v282 = vunpack.c.l.b16 %v35
  %v283 = vunpack.c.h.b16 %v35
  %v284 = vunpack.c.l.b16 %v36
  %v285 = vpack.c.b16 %v272, %v259
  %v286 = vpack.c.b16 %v273, %v260
  %v287 = vpack.c.b16 %v274, %v261
  %v288 = vpack.c.b16 %v275, %v262
  %v289 = vpack.c.b16 %v276, %v263
  %v290 = vpack.c.b16 %v277, %v264
  %v291 = vpack.c.b16 %v278, %v265
  %v292 = vpack.c.b16 %v279, %v266
  %v293 = vpack.c.b16 %v280, %v267
  %v294 = vpack.c.b16 %v281, %v268
  %v295 = vpack.c.b16 %v282, %v269
  %v296 = vpack.c.b16 %v283, %v270
  %v297 = vpack.c.b16 %v284, %v271
  %v519 = vunpack.c.l.b16 %v37
  %v520 = vunpack.c.l.b16 %v38
  %v521 = vunpack.c.l.b16 %v39
  %v522 = vunpack.c.l.b16 %v40
  %v523 = vunpack.c.l.b16 %v41
  %v524 = vunpack.c.l.b16 %v42
  %v525 = vunpack.c.l.b16 %v43
  %v526 = vunpack.c.l.b16 %v44
  %v527 = vunpack.c.l.b16 %v45
  %v528 = vunpack.c.l.b16 %v46
  %v529 = vunpack.c.l.b16 %v47
  %v530 = vunpack.c.l.b16 %v48
  %v531 = vunpack.c.l.b16 %v49
  %v532 = vunpack.c.l.b16 %v50
  %v533 = vunpack.c.l.b16 %v51
  %v534 = vunpack.c.l.b16 %v52
  %v535 = vunpack.c.l.b16 %v53
  %v536 = vunpack.c.l.b16 %v54
  %v537 = vunpack.c.l.b16 %v55
  %v538 = vunpack.c.l.b16 %v56
  %v539 = vunpack.c.l.b16 %v57
  %v540 = vunpack.c.l.b16 %v58
  %v541 = vunpack.c.l.b16 %v59
  %v542 = vunpack.c.l.b16 %v60
  %v543 = vunpack.c.l.b16 %v61
  %v544 = vunpack.c.l.b16 %v62
  %v545 = vunpack.c.l.b16 %v63
  %v546 = vunpack.c.l.b16 %v64
  %v547 = vunpack.c.l.b16 %v65
  %v548 = vunpack.c.l.b16 %v66
  %v549 = vunpack.c.l.b16 %v67
  %v550 = vunpack.c.l.b16 %v68
  %v551 = vunpack.c.l.b16 %v69
  %v552 = vunpack.c.l.b16 %v70
  %v553 = vunpack.c.l.b16 %v71
  %v554 = vunpack.c.l.b16 %v72
  %v555 = vunpack.c.l.b16 %v73
  %v556 = vunpack.c.l.b16 %v74
  %v557 = vunpack.c.l.b16 %v75
  %v558 = vunpack.c.l.b16 %v76
  %v559 = vunpack.c.l.b16 %v77
  %v560 = vunpack.c.l.b16 %v78
  %v561 = vunpack.c.l.b16 %v79
  %v562 = vunpack.c.l.b16 %v80
  %v563 = vunpack.c.l.b16 %v81
  %v564 = vunpack.c.l.b16 %v82
  %v565 = vunpack.c.l.b16 %v83
  %v566 = vunpack.c.l.b16 %v84
  %v567 = vunpack.c.l.b16 %v85
  %v568 = vunpack.c.l.b16 %v86
  %v569 = vunpack.c.l.b16 %v87
  %v570 = vunpack.c.l.b16 %v88
  %v571 = vunpack.c.l.b16 %v89
  %v572 = vunpack.c.l.b16 %v90
  %v573 = vunpack.c.l.b16 %v91
  %v574 = vunpack.c.l.b16 %v92
  %v575 = vunpack.c.l.b16 %v93
  %v576 = vunpack.c.l.b16 %v94
  %v577 = vunpack.c.l.b16 %v95
  %v578 = vunpack.c.l.b16 %v96
  %v579 = vunpack.c.l.b16 %v97
  %v580 = vunpack.c.l.b16 %v98
  %v581 = vunpack.c.l.b16 %v99
  %v582 = vunpack.c.l.b16 %v100
  %v583 = vunpack.c.l.b16 %v101
  %v584 = vunpack.c.l.b16 %v102
  %v585 = vunpack.c.l.b16 %v103
  %v586 = vunpack.c.l.b16 %v104
  %v587 = vunpack.c.l.b16 %v105
  %v588 = vunpack.c.l.b16 %v106
  %v589 = vunpack.c.l.b16 %v107
  %v590 = vunpack.c.l.b16 %v108
  %v591 = vunpack.c.l.b16 %v109
  %v592 = vunpack.c.l.b16 %v110
  %v593 = vunpack.c.l.b16 %v111
  %v594 = vunpack.c.l.b16 %v112
  %v595 = vunpack.c.l.b16 %v113
  %v596 = vunpack.c.l.b16 %v114
  %v597 = vunpack.c.l.b16 %v115
  %v598 = vunpack.c.l.b16 %v116
  %v599 = vunpack.c.l.b16 %v117
  %v600 = vunpack.c.l.b16 %v118
  %v601 = vunpack.c.l.b16 %v119
  %v602 = vunpack.c.l.b16 %v120
  %v603 = vunpack.c.l.b16 %v121
  %v604 = vunpack.c.l.b16 %v122
  %v605 = vunpack.c.l.b16 %v123
  %v606 = vunpack.c.l.b16 %v124
  %v607 = vunpack.c.l.b16 %v125
  %v608 = vunpack.c.l.b16 %v126
  %v609 = vunpack.c.l.b16 %v127
  %v610 = vunpack.c.l.b16 %v128
  %v611 = vunpack.c.l.b16 %v129
  %v612 = vunpack.c.l.b16 %v130
  %v613 = vunpack.c.l.b16 %v131
  %v614 = vunpack.c.l.b16 %v132
  %v615 = vunpack.c.l.b16 %v133
  %v616 = vunpack.c.l.b16 %v134
  %v617 = vunpack.c.l.b16 %v135
  %v618 = vunpack.c.l.b16 %v136
  %v619 = vunpack.c.l.b16 %v137
  %v620 = vunpack.c.l.b16 %v138
  %v621 = vunpack.c.l.b16 %v139
  %v622 = vunpack.c.l.b16 %v140
  %v623 = vunpack.c.l.b16 %v141
  %v624 = vunpack.c.l.b16 %v142
  %v625 = vunpack.c.l.b16 %v143
  %v626 = vunpack.c.l.b16 %v144
  %v627 = vunpack.c.l.b16 %v145
  %v628 = vunpack.c.l.b16 %v146
  %v629 = vunpack.c.l.b16 %v147
  %v630 = vunpack.c.l.b16 %v148
  %v631 = vunpack.c.l.b16 %v149
  %v632 = vunpack.c.l.b16 %v150
  %v633 = vunpack.c.l.b16 %v151
  %v634 = vunpack.c.l.b16 %v152
  %v635 = vunpack.c.l.b16 %v153
  %v636 = vunpack.c.l.b16 %v154
  %v637 = vunpack.c.l.b16 %v155
  %v638 = vunpack.c.l.b16 %v156
  %v639 = vunpack.c.l.b16 %v157
  %v640 = vunpack.c.l.b16 %v158
  %v641 = vunpack.c.l.b16 %v159
  %v642 = vunpack.c.l.b16 %v160
  %v643 = vunpack.c.l.b16 %v161
  %v644 = vunpack.c.l.b16 %v162
  %v645 = vunpack.c.l.b16 %v163
  %v646 = vunpack.c.l.b16 %v164
  %v647 = vunpack.c.l.b16 %v165
  %v648 = vunpack.c.l.b16 %v166
  %v649 = vunpack.c.l.b16 %v167
  %v650 = vunpack.c.l.b16 %v168
  %v651 = vunpack.c.l.b16 %v169
  %v652 = vunpack.c.l.b16 %v170
  %v653 = vunpack.c.l.b16 %v171
  %v654 = vunpack.c.l.b16 %v172
  %v655 = vunpack.c.l.b16 %v173
  %v656 = vunpack.c.l.b16 %v174
  %v657 = vunpack.c.l.b16 %v175
  %v658 = vunpack.c.l.b16 %v176
  %v659 = vunpack.c.l.b16 %v177
  %v660 = vunpack.c.l.b16 %v178
  %v661 = vunpack.c.l.b16 %v179
  %v662 = vunpack.c.l.b16 %v180
  %v663 = vunpack.c.l.b16 %v181
  %v664 = vunpack.c.l.b16 %v182
  %v665 = vunpack.c.l.b16 %v183
  %v666 = vunpack.c.l.b16 %v184
  %v667 = vunpack.c.l.b16 %v185
  %v668 = vunpack.c.l.b16 %v186
  %v669 = vunpack.c.l.b16 %v187
  %v670 = vunpack.c.l.b16 %v188
  %v671 = vunpack.c.l.b16 %v189
  %v672 = vunpack.c.l.b16 %v190
  %v673 = vunpack.c.l.b16 %v191
  %v674 = vunpack.c.l.b16 %v192
  %v675 = vunpack.c.l.b16 %v193
  %v676 = vunpack.c.l.b16 %v194
  %v677 = vunpack.c.l.b16 %v195
  %v678 = vunpack.c.l.b16 %v196
  %v679 = vunpack.c.l.b16 %v197
  %v680 = vunpack.c.l.b16 %v198
  %v681 = vunpack.c.l.b16 %v199
  %v682 = vunpack.c.l.b16 %v200
  %v683 = vunpack.c.l.b16 %v201
  %v684 = vunpack.c.l.b16 %v202
  %v685 = vunpack.c.l.b16 %v203
  %v686 = vunpack.c.l.b16 %v204
  %v687 = vunpack.c.l.b16 %v205
  %v688 = vunpack.c.l.b16 %v206
  %v689 = vunpack.c.l.b16 %v207
  %v690 = vunpack.c.l.b16 %v208
  %v691 = vunpack.c.l.b16 %v209
  %v692 = vunpack.c.l.b16 %v210
  %v693 = vunpack.c.l.b16 %v211
  %v694 = vunpack.c.l.b16 %v212
  %v695 = vunpack.c.l.b16 %v213
  %v696 = vunpack.c.l.b16 %v214
  %v697 = vunpack.c.l.b16 %v215
  %v698 = vunpack.c.l.b16 %v216
  %v699 = vunpack.c.l.b16 %v217
  %v700 = vunpack.c.l.b16 %v218
  %v701 = vunpack.c.l.b16 %v219
  %v702 = vunpack.c.l.b16 %v220
  %v703 = vunpack.c.l.b16 %v221
  %v704 = vunpack.c.l.b16 %v222
  %v705 = vunpack.c.l.b16 %v223
  %v706 = vunpack.c.l.b16 %v224
  %v707 = vunpack.c.l.b16 %v225
  %v708 = vunpack.c.l.b16 %v226
  %v709 = vunpack.c.l.b16 %v227
  %v710 = vunpack.c.l.b16 %v228
  %v711 = vunpack.c.l.b16 %v229
  %v712 = vunpack.c.l.b16 %v230
  %v713 = vunpack.c.l.b16 %v231
  %v714 = vunpack.c.l.b16 %v232
  %v715 = vunpack.c.l.b16 %v233
  %v716 = vunpack.c.l.b16 %v234
  %v717 = vunpack.c.l.b16 %v235
  %v718 = vunpack.c.l.b16 %v236
  %v719 = vunpack.c.l.b16 %v237
  %v720 = vunpack.c.l.b16 %v238
  %v721 = vunpack.c.l.b16 %v239
  %v722 = vunpack.c.l.b16 %v240
  %v723 = vunpack.c.l.b16 %v241
  %v724 = vunpack.c.l.b16 %v242
  %v725 = vunpack.c.l.b16 %v243
  %v726 = vunpack.c.l.b16 %v244
  %v727 = vpack.c.b16 %v520, %v519
  %v728 = vpack.c.b16 %v522, %v521
  %v729 = vpack.c.b16 %v524, %v523
  %v730 = vpack.c.b16 %v526, %v525
  %v731 = vpack.c.b16 %v528, %v527
  %v732 = vpack.c.b16 %v530, %v529
  %v733 = vpack.c.b16 %v532, %v531
  %v734 = vpack.c.b16 %v534, %v533
  %v735 = vpack.c.b16 %v536, %v535
  %v736 = vpack.c.b16 %v538, %v537
  %v737 = vpack.c.b16 %v540, %v539
  %v738 = vpack.c.b16 %v542, %v541
  %v739 = vpack.c.b16 %v544, %v543
  %v740 = vpack.c.b16 %v546, %v545
  %v741 = vpack.c.b16 %v548, %v547
  %v742 = vpack.c.b16 %v550, %v549
  %v743 = vpack.c.b16 %v552, %v551
  %v744 = vpack.c.b16 %v554, %v553
  %v745 = vpack.c.b16 %v556, %v555
  %v746 = vpack.c.b16 %v558, %v557
  %v747 = vpack.c.b16 %v560, %v559
  %v748 = vpack.c.b16 %v562, %v561
  %v749 = vpack.c.b16 %v564, %v563
  %v750 = vpack.c.b16 %v566, %v565
  %v751 = vpack.c.b16 %v568, %v567
  %v752 = vpack.c.b16 %v570, %v569
  %v753 = vpack.c.b16 %v572, %v571
  %v754 = vpack.c.b16 %v574, %v573
  %v755 = vpack.c.b16 %v576, %v575
  %v756 = vpack.c.b16 %v578, %v577
  %v757 = vpack.c.b16 %v580, %v579
  %v758 = vpack.c.b16 %v582, %v581
  %v759 = vpack.c.b16 %v584, %v583
  %v760 = vpack.c.b16 %v586, %v585
  %v761 = vpack.c.b16 %v588, %v587
  %v762 = vpack.c.b16 %v590, %v589
  %v763 = vpack.c.b16 %v592, %v591
  %v764 = vpack.c.b16 %v594, %v593
  %v765 = vpack.c.b16 %v596, %v595
  %v766 = vpack.c.b16 %v598, %v597
  %v767 = vpack.c.b16 %v600, %v599
  %v768 = vpack.c.b16 %v602, %v601
  %v769 = vpack.c.b16 %v604, %v603
  %v770 = vpack.c.b16 %v606, %v605
  %v771 = vpack.c.b16 %v608, %v607
  %v772 = vpack.c.b16 %v610, %v609
  %v773 = vpack.c.b16 %v612, %v611
  %v774 = vpack.c.b16 %v614, %v613
  %v775 = vpack.c.b16 %v616, %v615
  %v776 = vpack.c.b16 %v618, %v617
  %v777 = vpack.c.b16 %v620, %v619
  %v778 = vpack.c.b16 %v622, %v621
  %v779 = vpack.c.b16 %v624, %v623
  %v780 = vpack.c.b16 %v626, %v625
  %v781 = vpack.c.b16 %v628, %v627
  %v782 = vpack.c.b16 %v630, %v629
  %v783 = vpack.c.b16 %v632, %v631
  %v784 = vpack.c.b16 %v634, %v633
  %v785 = vpack.c.b16 %v636, %v635
  %v786 = vpack.c.b16 %v638, %v637
  %v787 = vpack.c.b16 %v640, %v639
  %v788 = vpack.c.b16 %v642, %v641
  %v789 = vpack.c.b16 %v644, %v643
  %v790 = vpack.c.b16 %v646, %v645
  %v791 = vpack.c.b16 %v648, %v647
  %v792 = vpack.c.b16 %v650, %v649
  %v793 = vpack.c.b16 %v652, %v651
  %v794 = vpack.c.b16 %v654, %v653
  %v795 = vpack.c.b16 %v656, %v655
  %v796 = vpack.c.b16 %v658, %v657
  %v797 = vpack.c.b16 %v660, %v659
  %v798 = vpack.c.b16 %v662, %v661
  %v799 = vpack.c.b16 %v664, %v663
  %v800 = vpack.c.b16 %v666, %v665
  %v801 = vpack.c.b16 %v668, %v667
  %v802 = vpack.c.b16 %v670, %v669
  %v803 = vpack.c.b16 %v672, %v671
  %v804 = vpack.c.b16 %v674, %v673
  %v805 = vpack.c.b16 %v676, %v675
  %v806 = vpack.c.b16 %v678, %v677
  %v807 = vpack.c.b16 %v680, %v679
  %v808 = vpack.c.b16 %v682, %v681
  %v809 = vpack.c.b16 %v684, %v683
  %v810 = vpack.c.b16 %v686, %v685
  %v811 = vpack.c.b16 %v688, %v687
  %v812 = vpack.c.b16 %v690, %v689
  %v813 = vpack.c.b16 %v692, %v691
  %v814 = vpack.c.b16 %v694, %v693
  %v815 = vpack.c.b16 %v696, %v695
  %v816 = vpack.c.b16 %v698, %v697
  %v817 = vpack.c.b16 %v700, %v699
  %v818 = vpack.c.b16 %v702, %v701
  %v819 = vpack.c.b16 %v704, %v703
  %v820 = vpack.c.b16 %v706, %v705
  %v821 = vpack.c.b16 %v708, %v707
  %v822 = vpack.c.b16 %v710, %v709
  %v823 = vpack.c.b16 %v712, %v711
  %v824 = vpack.c.b16 %v714, %v713
  %v825 = vpack.c.b16 %v716, %v715
  %v826 = vpack.c.b16 %v718, %v717
  %v827 = vpack.c.b16 %v720, %v719
  %v828 = vpack.c.b16 %v722, %v721
  %v829 = vpack.c.b16 %v724, %v723
  %v830 = vpack.c.b16 %v726, %v725
  %935 = vmatpush.bf16.msra.mxu0 %v734
  %936 = vmatpush.bf16.msra.mxu0 %v733
  %937 = vmatpush.bf16.msra.mxu0 %v732
  %938 = vmatpush.bf16.msra.mxu0 %v731
  %939 = vmatpush.bf16.msra.mxu0 %v730
  %940 = vmatpush.bf16.msra.mxu0 %v729
  %941 = vmatpush.bf16.msra.mxu0 %v728
  %942 = vmatpush.bf16.msra.mxu0 %v727
  %943 = vmatmul.bf16.gmra.mxu0 %v285
  %v944 = vpop.f32.mrf.mxu0
  %v945 = vadd.f32 0.0, %v944
  %v946 = vpop.f32.mrf.mxu0
  %v947 = vadd.f32 0.0, %v946
  %948 = vdwg.mxu0
  %949 = vmatpush.bf16.msra.mxu0 %v742
  %950 = vmatpush.bf16.msra.mxu0 %v741
  %951 = vmatpush.bf16.msra.mxu0 %v740
  %952 = vmatpush.bf16.msra.mxu0 %v739
  %953 = vmatpush.bf16.msra.mxu0 %v738
  %954 = vmatpush.bf16.msra.mxu0 %v737
  %955 = vmatpush.bf16.msra.mxu0 %v736
  %956 = vmatpush.bf16.msra.mxu0 %v735
  %957 = vmatmul.bf16.gmra.mxu0 %v286
  %v958 = vpop.f32.mrf.mxu0
  %v959 = vadd.f32 %v945, %v958
  %v960 = vpop.f32.mrf.mxu0
  %v961 = vadd.f32 %v947, %v960
  %962 = vdwg.mxu0
  %963 = vmatpush.bf16.msra.mxu0 %v750
  %964 = vmatpush.bf16.msra.mxu0 %v749
  %965 = vmatpush.bf16.msra.mxu0 %v748
  %966 = vmatpush.bf16.msra.mxu0 %v747
  %967 = vmatpush.bf16.msra.mxu0 %v746
  %968 = vmatpush.bf16.msra.mxu0 %v745
  %969 = vmatpush.bf16.msra.mxu0 %v744
  %970 = vmatpush.bf16.msra.mxu0 %v743
  %971 = vmatmul.bf16.gmra.mxu0 %v287
  %v972 = vpop.f32.mrf.mxu0
  %v973 = vadd.f32 %v959, %v972
  %v974 = vpop.f32.mrf.mxu0
  %v975 = vadd.f32 %v961, %v974
  %976 = vdwg.mxu0
  %977 = vmatpush.bf16.msra.mxu0 %v758
  %978 = vmatpush.bf16.msra.mxu0 %v757
  %979 = vmatpush.bf16.msra.mxu0 %v756
  %980 = vmatpush.bf16.msra.mxu0 %v755
  %981 = vmatpush.bf16.msra.mxu0 %v754
  %982 = vmatpush.bf16.msra.mxu0 %v753
  %983 = vmatpush.bf16.msra.mxu0 %v752
  %984 = vmatpush.bf16.msra.mxu0 %v751
  %985 = vmatmul.bf16.gmra.mxu0 %v288
  %v986 = vpop.f32.mrf.mxu0
  %v987 = vadd.f32 %v973, %v986
  %v988 = vpop.f32.mrf.mxu0
  %v989 = vadd.f32 %v975, %v988
  %990 = vdwg.mxu0
  %991 = vmatpush.bf16.msra.mxu0 %v766
  %992 = vmatpush.bf16.msra.mxu0 %v765
  %993 = vmatpush.bf16.msra.mxu0 %v764
  %994 = vmatpush.bf16.msra.mxu0 %v763
  %995 = vmatpush.bf16.msra.mxu0 %v762
  %996 = vmatpush.bf16.msra.mxu0 %v761
  %997 = vmatpush.bf16.msra.mxu0 %v760
  %998 = vmatpush.bf16.msra.mxu0 %v759
  %999 = vmatmul.bf16.gmra.mxu0 %v289
  %v1000 = vpop.f32.mrf.mxu0
  %v1001 = vadd.f32 %v987, %v1000
  %v1002 = vpop.f32.mrf.mxu0
  %v1003 = vadd.f32 %v989, %v1002
  %1004 = vdwg.mxu0
  %1005 = vmatpush.bf16.msra.mxu0 %v774
  %1006 = vmatpush.bf16.msra.mxu0 %v773
  %1007 = vmatpush.bf16.msra.mxu0 %v772
  %1008 = vmatpush.bf16.msra.mxu0 %v771
  %1009 = vmatpush.bf16.msra.mxu0 %v770
  %1010 = vmatpush.bf16.msra.mxu0 %v769
  %1011 = vmatpush.bf16.msra.mxu0 %v768
  %1012 = vmatpush.bf16.msra.mxu0 %v767
  %1013 = vmatmul.bf16.gmra.mxu0 %v290
  %v1014 = vpop.f32.mrf.mxu0
  %v1015 = vadd.f32 %v1001, %v1014
  %v1016 = vpop.f32.mrf.mxu0
  %v1017 = vadd.f32 %v1003, %v1016
  %1018 = vdwg.mxu0
  %1019 = vmatpush.bf16.msra.mxu0 %v782
  %1020 = vmatpush.bf16.msra.mxu0 %v781
  %1021 = vmatpush.bf16.msra.mxu0 %v780
  %1022 = vmatpush.bf16.msra.mxu0 %v779
  %1023 = vmatpush.bf16.msra.mxu0 %v778
  %1024 = vmatpush.bf16.msra.mxu0 %v777
  %1025 = vmatpush.bf16.msra.mxu0 %v776
  %1026 = vmatpush.bf16.msra.mxu0 %v775
  %1027 = vmatmul.bf16.gmra.mxu0 %v291
  %v1028 = vpop.f32.mrf.mxu0
  %v1029 = vadd.f32 %v1015, %v1028
  %v1030 = vpop.f32.mrf.mxu0
  %v1031 = vadd.f32 %v1017, %v1030
  %1032 = vdwg.mxu0
  %1033 = vmatpush.bf16.msra.mxu0 %v790
  %1034 = vmatpush.bf16.msra.mxu0 %v789
  %1035 = vmatpush.bf16.msra.mxu0 %v788
  %1036 = vmatpush.bf16.msra.mxu0 %v787
  %1037 = vmatpush.bf16.msra.mxu0 %v786
  %1038 = vmatpush.bf16.msra.mxu0 %v785
  %1039 = vmatpush.bf16.msra.mxu0 %v784
  %1040 = vmatpush.bf16.msra.mxu0 %v783
  %1041 = vmatmul.bf16.gmra.mxu0 %v292
  %v1042 = vpop.f32.mrf.mxu0
  %v1043 = vadd.f32 %v1029, %v1042
  %v1044 = vpop.f32.mrf.mxu0
  %v1045 = vadd.f32 %v1031, %v1044
  %1046 = vdwg.mxu0
  %1047 = vmatpush.bf16.msra.mxu0 %v798
  %1048 = vmatpush.bf16.msra.mxu0 %v797
  %1049 = vmatpush.bf16.msra.mxu0 %v796
  %1050 = vmatpush.bf16.msra.mxu0 %v795
  %1051 = vmatpush.bf16.msra.mxu0 %v794
  %1052 = vmatpush.bf16.msra.mxu0 %v793
  %1053 = vmatpush.bf16.msra.mxu0 %v792
  %1054 = vmatpush.bf16.msra.mxu0 %v791
  %1055 = vmatmul.bf16.gmra.mxu0 %v293
  %v1056 = vpop.f32.mrf.mxu0
  %v1057 = vadd.f32 %v1043, %v1056
  %v1058 = vpop.f32.mrf.mxu0
  %v1059 = vadd.f32 %v1045, %v1058
  %1060 = vdwg.mxu0
  %1061 = vmatpush.bf16.msra.mxu0 %v806
  %1062 = vmatpush.bf16.msra.mxu0 %v805
  %1063 = vmatpush.bf16.msra.mxu0 %v804
  %1064 = vmatpush.bf16.msra.mxu0 %v803
  %1065 = vmatpush.bf16.msra.mxu0 %v802
  %1066 = vmatpush.bf16.msra.mxu0 %v801
  %1067 = vmatpush.bf16.msra.mxu0 %v800
  %1068 = vmatpush.bf16.msra.mxu0 %v799
  %1069 = vmatmul.bf16.gmra.mxu0 %v294
  %v1070 = vpop.f32.mrf.mxu0
  %v1071 = vadd.f32 %v1057, %v1070
  %v1072 = vpop.f32.mrf.mxu0
  %v1073 = vadd.f32 %v1059, %v1072
  %1074 = vdwg.mxu0
  %1075 = vmatpush.bf16.msra.mxu0 %v814
  %1076 = vmatpush.bf16.msra.mxu0 %v813
  %1077 = vmatpush.bf16.msra.mxu0 %v812
  %1078 = vmatpush.bf16.msra.mxu0 %v811
  %1079 = vmatpush.bf16.msra.mxu0 %v810
  %1080 = vmatpush.bf16.msra.mxu0 %v809
  %1081 = vmatpush.bf16.msra.mxu0 %v808
  %1082 = vmatpush.bf16.msra.mxu0 %v807
  %1083 = vmatmul.bf16.gmra.mxu0 %v295
  %v1084 = vpop.f32.mrf.mxu0
  %v1085 = vadd.f32 %v1071, %v1084
  %v1086 = vpop.f32.mrf.mxu0
  %v1087 = vadd.f32 %v1073, %v1086
  %1088 = vdwg.mxu0
  %1089 = vmatpush.bf16.msra.mxu0 %v822
  %1090 = vmatpush.bf16.msra.mxu0 %v821
  %1091 = vmatpush.bf16.msra.mxu0 %v820
  %1092 = vmatpush.bf16.msra.mxu0 %v819
  %1093 = vmatpush.bf16.msra.mxu0 %v818
  %1094 = vmatpush.bf16.msra.mxu0 %v817
  %1095 = vmatpush.bf16.msra.mxu0 %v816
  %1096 = vmatpush.bf16.msra.mxu0 %v815
  %1097 = vmatmul.bf16.gmra.mxu0 %v296
  %v1098 = vpop.f32.mrf.mxu0
  %v1099 = vadd.f32 %v1085, %v1098
  %v1100 = vpop.f32.mrf.mxu0
  %v1101 = vadd.f32 %v1087, %v1100
  %1102 = vdwg.mxu0
  %1103 = vmatpush.bf16.msra.mxu0 %v830
  %1104 = vmatpush.bf16.msra.mxu0 %v829
  %1105 = vmatpush.bf16.msra.mxu0 %v828
  %1106 = vmatpush.bf16.msra.mxu0 %v827
  %1107 = vmatpush.bf16.msra.mxu0 %v826
  %1108 = vmatpush.bf16.msra.mxu0 %v825
  %1109 = vmatpush.bf16.msra.mxu0 %v824
  %1110 = vmatpush.bf16.msra.mxu0 %v823
  %1111 = vmatmul.bf16.gmra.mxu0 %v297
  %v1112 = vpop.f32.mrf.mxu0
  %v1113 = vadd.f32 %v1099, %v1112
  %v1114 = vpop.f32.mrf.mxu0
  %v1115 = vadd.f32 %v1101, %v1114
  %1116 = vdwg.mxu0
  %v1117 = vadd.f32 %v21, %v1113
  %v1118 = vadd.f32 %v22, %v1115
  %vm1119 = vcmask 48128
  %1120 = vst.msk [vmem:[#allocation2] sm:$0xff] %vm1119, %v1117
  %1121 = vst.msk [vmem:[#allocation2 + $0x8] sm:$0xff] %vm1119, %v1118
  // Predicated region
  $region18: #{feature_regression_forward.5} parent=0 // pred_check
    %p1122 = pneg %p14
  $region19: #{feature_regression_forward.5} parent=0 // pred_check_branch
    %1124 = sbr.rel (%p1122) target = $region21
  $region20: #{feature_regression_forward.5} parent=0 // pred_region
    %v1125 = vld [vmem:[#allocation2] sm:$0xff]
    %v1126 = vld [vmem:[#allocation2 + $0x8] sm:$0xff]
    %v1127 = vld [vmem:[%s2] sm:$0x1]
    %v1129 = vperm.slane %v1127, 0
    %v1131 = vadd.f32 %v1125, %v1129
    %v1132 = vadd.f32 %v1126, %v1129
    %1133 = vst.msk [vmem:[%s3] sm:$0xff] %vm1119, %v1131
    %1134 = vst.msk [vmem:[%s3 + $0x8] sm:$0xff] %vm1119, %v1132
  $region21: #{feature_regression_forward.5} parent=0 // pred_fallthru
    _
  // Predicated region
  $region22: #{feature_regression_forward.5} parent=0 // pred_check
    _
  $region23: #{feature_regression_forward.5} parent=0 // pred_check_branch
    %1136 = sbr.rel (0) target = $region25
  $region24: #{feature_regression_forward.5} parent=0 // pred_region
    _
  $region25: #{feature_regression_forward.5} parent=0 // pred_fallthru
    _
  // Predicated region
  $region26: #{feature_regression_forward.5} parent=0 // pred_check
    _
  $region27: #{feature_regression_forward.5} parent=0 // pred_check_branch
    %1138 = sbr.rel (0) target = $region29
  $region28: #{feature_regression_forward.5} parent=0 // pred_region
    _
  $region29: #{feature_regression_forward.5} parent=0 // pred_fallthru
    _

</llo_original>
